<compile_context>
chip_gen: v6e
topology: v6e:2x2x1
jax: 0.10.0
libtpu: 0.0.40
codegen_flags: <defaults>
</compile_context>

<pallas_src>
import functools

import jax
import jax.numpy as jnp
from jax import lax
from jax.experimental import pallas as pl
from jax.experimental.pallas import tpu as pltpu

D_MODEL = 64          # d_model
NHEAD   = 4           # nhead  (head_dim = 16)
DIM_FF  = 128         # dim_feedforward
EPS     = 1e-5        # layer_norm_eps
LANES   = 128         # vreg lane width / packed-slab width
HEAD_D  = D_MODEL // NHEAD

# memory-projection slab lanes: [ wk (64) | wv_h@wo_h per head (4*64) | zero pad ]
KVO_LANES = ((D_MODEL + NHEAD * D_MODEL + LANES - 1) // LANES) * LANES   # 384

# Row ranges inside the x-path weight slab WX [256, 128] (bf16)
_WQ_R0, _WQ_R1 = 0, D_MODEL                          # wq*scale (lanes 0:64)
_W1_R0, _W1_R1 = D_MODEL, 2 * D_MODEL                # linear1 weight (128 lanes)
_W2_R0, _W2_R1 = 2 * D_MODEL, 2 * D_MODEL + DIM_FF   # linear2 weight (lanes 0:64)
_WX_ROWS = _W2_R1                                    # 256

# Rows inside the bias / LayerNorm slab B_pack [8, 128] (f32)
_ROW_BQ   = 0     # lanes 0:64  : bq * scale
_ROW_BIAS = 1     # lanes 0:64  : bo + bv@wo        lanes 64:128 : bf2
_ROW_BF1  = 2     # lanes 0:128 : bf1
_ROW_LN1  = 3     # lanes 0:64  : gamma1            lanes 64:128 : beta1
_ROW_LN2  = 4
_ROW_LN3  = 5
_B_ROWS   = 8

_UNROLL_MAX  = 8                   # statically unroll the attention batch loop up to here
_VMEM_BUDGET = 12 * 1024 * 1024    # per-step block + live-value budget (bytes)


def _layer_norm(x, g, b):
    mu = jnp.mean(x, axis=-1, keepdims=True)
    var = jnp.mean((x - mu) ** 2, axis=-1, keepdims=True)
    return (x - mu) * lax.rsqrt(var + EPS) * g + b


def decoder_layer_kernel(tgt_ref, mem_ref, wx_ref, wm_ref, b_ref, out_ref,
                         *scratch, block_batch, unroll):
    E, dh = D_MODEL, HEAD_D
    Nq = tgt_ref.shape[0] // block_batch
    Nf = mem_ref.shape[0] // block_batch
    f32, bf16 = jnp.float32, jnp.bfloat16

    def ln(x, row):
        return _layer_norm(x, b_ref[row:row + 1, 0:E], b_ref[row:row + 1, E:])

    tgt = tgt_ref[...]                       # [Bb*Nq, E] f32
    mem = mem_ref[...]                       # [Bb*Nf, E] f32

    # tgt = tgt + dropout1(tgt)  (eval: identity) ; norm1  (stats in f32)
    x = ln(tgt + tgt, _ROW_LN1)
    x_bf = x.astype(bf16)

    # Q projection: 1/sqrt(dh) folded into wq/bq at pack time; 64 output lanes only.
    q = jnp.dot(x_bf, wx_ref[_WQ_R0:_WQ_R1, 0:E],
                preferred_element_type=f32) + b_ref[_ROW_BQ:_ROW_BQ + 1, 0:E]
    q_bf = q.astype(bf16)                    # [Bb*Nq, E]

    # Fused memory projection: lanes 0:64 = K (bk dropped -- a per-query constant
    # added to every score is softmax-invariant); lanes 64:320 = per-head V already
    # projected through wo (wv_h @ wo_h); lanes 320:384 = zero pad.
    kvo = jnp.dot(mem.astype(bf16), wm_ref[...], preferred_element_type=f32)
    kvo_bf = kvo.astype(bf16)                # [Bb*Nf, KVO_LANES]

    def attend_heads(q_b, kvo_b):
        """q_b [Nq,E] bf16, kvo_b [Nf,KVO_LANES] bf16 -> attention output [Nq,E] f32."""
        dn = (((1,), (1,)), ((), ()))        # contract last dims: q @ k^T with no XLU transpose
        scores = [lax.dot_general(q_b[:, h * dh:(h + 1) * dh],
                                  kvo_b[:, h * dh:(h + 1) * dh],
                                  dn, preferred_element_type=f32)
                  for h in range(NHEAD)]
        s = jnp.concatenate(scores, axis=0)  # [NHEAD*Nq, Nf]: one softmax for all heads
        s = s - jnp.max(s, axis=-1, keepdims=True)
        p = jnp.exp(s)
        p = p * pl.reciprocal(jnp.sum(p, axis=-1, keepdims=True), approx=True)
        p_bf = p.astype(bf16)
        acc = None
        for h in range(NHEAD):
            vo_h = kvo_b[:, E + h * E:E + (h + 1) * E]     # wo already folded in
            c = jnp.dot(p_bf[h * Nq:(h + 1) * Nq, :], vo_h,
                        preferred_element_type=f32)
            acc = c if acc is None else acc + c
        return acc

    if unroll:
        # Small block_batch: keep everything in vregs, no scratch round-trip.
        parts = [attend_heads(q_bf[b * Nq:(b + 1) * Nq, :],
                              kvo_bf[b * Nf:(b + 1) * Nf, :])
                 for b in range(block_batch)]
        attn = parts[0] if block_batch == 1 else jnp.concatenate(parts, axis=0)
    else:
        # Large block_batch: in-kernel loop over pl.ds ref slices to bound live
        # ranges (static unrolling would blow up vreg pressure / compile time).
        q_scr, kvo_scr, attn_scr = scratch
        q_scr[...] = q_bf
        kvo_scr[...] = kvo_bf

        @pl.loop(0, block_batch)
        def _(b):
            rq, rm = b * Nq, b * Nf
            if Nq % 8 == 0:
                rq = pl.multiple_of(rq, 8)
            if Nf % 8 == 0:
                rm = pl.multiple_of(rm, 8)
            attn_scr[pl.ds(rq, Nq), :] = attend_heads(q_scr[pl.ds(rq, Nq), :],
                                                      kvo_scr[pl.ds(rm, Nf), :])
        attn = attn_scr[...]

    attn = attn + b_ref[_ROW_BIAS:_ROW_BIAS + 1, 0:E]   # bo + bv@wo (folded)

    # residual + norm2
    x2 = ln(x + attn, _ROW_LN2)

    # FFN: linear2(relu(linear1(x)))  (dropout is identity in eval)
    hdn = jnp.dot(x2.astype(bf16), wx_ref[_W1_R0:_W1_R1, :],
                  preferred_element_type=f32) + b_ref[_ROW_BF1:_ROW_BF1 + 1, :]
    hdn = jnp.maximum(hdn, 0.0)
    ff = jnp.dot(hdn.astype(bf16), wx_ref[_W2_R0:_W2_R1, 0:E],
                 preferred_element_type=f32) + b_ref[_ROW_BIAS:_ROW_BIAS + 1, E:]

    # residual + norm3; lane-dense [rows/2,128] store when out_ref is packed.
    y = ln(x2 + ff, _ROW_LN3)
    out_ref[...] = y.reshape(out_ref.shape).astype(out_ref.dtype)


def pack_params(p):
    """Pack all weights/biases into 3 slabs; fold 1/sqrt(dh) into wq/bq, fold
    wo into the per-head V projection and bv@wo + bo into one attention bias."""
    f32 = jnp.float32
    scale = 1.0 / jnp.sqrt(f32(HEAD_D))
    pad = LANES - D_MODEL

    # x-path weight slab (bf16): [wq*scale | 0], w1, [w2 | 0]
    wq = jnp.pad(p["wq"].astype(f32) * scale, ((0, 0), (0, pad)))
    w1 = p["w1"].astype(f32)
    w2 = jnp.pad(p["w2"].astype(f32), ((0, 0), (0, pad)))
    wx = jnp.concatenate([wq, w1, w2], axis=0).astype(jnp.bfloat16)      # [256,128]

    # memory-path slab (bf16): [wk | wv_h @ wo_h per head | 0]   (bk dropped)
    wvo = jnp.concatenate(
        [p["wv"][:, h * HEAD_D:(h + 1) * HEAD_D].astype(f32)
         @ p["wo"][h * HEAD_D:(h + 1) * HEAD_D, :].astype(f32)
         for h in range(NHEAD)], axis=1)                                  # [64, 256]
    wm = jnp.concatenate(
        [p["wk"].astype(f32), wvo,
         jnp.zeros((D_MODEL, KVO_LANES - D_MODEL - NHEAD * D_MODEL), f32)],
        axis=1).astype(jnp.bfloat16)                                      # [64, 384]

    # bias / LayerNorm slab (f32)
    battn = p["bo"].astype(f32) + p["bv"].astype(f32) @ p["wo"].astype(f32)
    zeros64 = jnp.zeros((1, D_MODEL), f32)
    rows = [
        jnp.concatenate([p["bq"].astype(f32) * scale, zeros64], axis=1),
        jnp.concatenate([battn, p["bf2"].astype(f32)], axis=1),
        p["bf1"].astype(f32),
        jnp.concatenate([p["g1"], p["be1"]], axis=1).astype(f32),
        jnp.concatenate([p["g2"], p["be2"]], axis=1).astype(f32),
        jnp.concatenate([p["g3"], p["be3"]], axis=1).astype(f32),
        jnp.zeros((_B_ROWS - 6, LANES), f32),
    ]
    b_pack = jnp.concatenate(rows, axis=0)                                # [8, 128]
    return wx, wm, b_pack


def _num_tensorcores():
    try:
        kind = jax.devices()[0].device_kind.lower()
    except Exception:
        return 1
    if "v7" in kind:
        return 2
    if ("v5p" in kind) or ("v4" in kind and "lite" not in kind):
        return 2                      # megacore chips expose 2 TCs behind one device
    return 1


def _bytes_per_batch_elem(Nq, Nf, out_lanes):
    f32b, bf16b = 4, 2
    blocks = 2 * f32b * (Nq * D_MODEL + Nf * D_MODEL + Nq * out_lanes)   # double-buffered I/O
    live = (Nq * D_MODEL * (6 * f32b + 3 * bf16b)       # x, q, attn, x2, ff (+ bf16 copies)
            + Nf * KVO_LANES * (f32b + 2 * bf16b)       # kvo + bf16 copy + scratch
            + Nq * DIM_FF * (f32b + bf16b)              # FFN hidden
            + NHEAD * Nq * Nf * f32b)                   # one batch element's scores
    return blocks + live


def _pick_block_batch(B, Nq, Nf, out_lanes):
    """Largest batch-per-step that fits the VMEM budget, keeps (8,128)-legal
    blocks, and (on 2-TC chips) keeps the grid a multiple of the core count."""
    max_bb = max(1, _VMEM_BUDGET // _bytes_per_batch_elem(Nq, Nf, out_lanes))
    n_tc = _num_tensorcores()

    def legal(d):
        if d == B:                                      # full-array block is always legal
            return True
        if (d * Nq) % 8 or (d * Nf) % 8:
            return False
        if (d * Nq * D_MODEL) % out_lanes:
            return False
        return ((d * Nq * D_MODEL) // out_lanes) % 8 == 0

    cands = [d for d in range(1, B + 1) if B % d == 0 and d <= max_bb and legal(d)]
    if not cands:
        return B
    if n_tc > 1:
        pref = [d for d in cands if (B // d) % n_tc == 0]
        if pref:
            cands = pref
    return max(cands)


def _run(tgt2d, mem2d, wx, wm, b_pack, B, Nq, Nf, out_dtype, out_lanes, force_loop):
    Bb = _pick_block_batch(B, Nq, Nf, out_lanes)
    unroll = (Bb <= _UNROLL_MAX) and not force_loop
    out_rows = B * Nq * D_MODEL // out_lanes
    blk_out_rows = Bb * Nq * D_MODEL // out_lanes

    scratch = []
    if not unroll:
        scratch = [pltpu.VMEM((Bb * Nq, D_MODEL), jnp.bfloat16),
                   pltpu.VMEM((Bb * Nf, KVO_LANES), jnp.bfloat16),
                   pltpu.VMEM((Bb * Nq, D_MODEL), jnp.float32)]

    kernel = functools.partial(decoder_layer_kernel, block_batch=Bb, unroll=unroll)
    return pl.pallas_call(
        kernel,
        out_shape=jax.ShapeDtypeStruct((out_rows, out_lanes), out_dtype),
        grid=(B // Bb,),
        in_specs=[
            pl.BlockSpec((Bb * Nq, D_MODEL), lambda i: (i, 0)),
            pl.BlockSpec((Bb * Nf, D_MODEL), lambda i: (i, 0)),
            pl.BlockSpec((_WX_ROWS, LANES), lambda i: (0, 0)),
            pl.BlockSpec((D_MODEL, KVO_LANES), lambda i: (0, 0)),
            pl.BlockSpec((_B_ROWS, LANES), lambda i: (0, 0)),
        ],
        out_specs=pl.BlockSpec((blk_out_rows, out_lanes), lambda i: (i, 0)),
        scratch_shapes=scratch,
        compiler_params=pltpu.CompilerParams(
            dimension_semantics=("parallel",),
            vmem_limit_bytes=32 * 1024 * 1024),
    )(tgt2d, mem2d, wx, wm, b_pack)


def decoder_layer(tgt, memory, params, *, force_loop=False):
    B, Nq, E = tgt.shape
    Bm, Nf, Em = memory.shape
    assert E == D_MODEL and Em == D_MODEL and Bm == B

    wx, wm, b_pack = pack_params(params)
    tgt2d = tgt.reshape(B * Nq, E)
    mem2d = memory.reshape(B * Nf, E)

    # Prefer a lane-dense output ([B*Nq,64] viewed as [B*Nq/2,128]); fall back to
    # the plain 64-lane layout if the lane-merge reshape does not lower.
    if (B * Nq * E) % LANES == 0:
        try:
            out = _run(tgt2d, mem2d, wx, wm, b_pack, B, Nq, Nf, tgt.dtype,
                       out_lanes=LANES, force_loop=force_loop)
            return out.reshape(B, Nq, E)
        except Exception:
            # TODO(synk): lane-merge reshape [rows,64]->[rows/2,128] unsupported on
            # this Mosaic version; falling back to the masked 64-lane output store.
            pass
    out = _run(tgt2d, mem2d, wx, wm, b_pack, B, Nq, Nf, tgt.dtype,
               out_lanes=E, force_loop=force_loop)
    return out.reshape(B, Nq, E)


def init_params(key):
    keys = jax.random.split(key, 16)

    def w(k, shape, scale=0.02):
        return (scale * jax.random.normal(k, shape)).astype(jnp.float32)

    return {
        "wq": w(keys[0], (D_MODEL, D_MODEL)),  "bq": w(keys[1], (1, D_MODEL)),
        "wk": w(keys[2], (D_MODEL, D_MODEL)),  "bk": w(keys[3], (1, D_MODEL)),
        "wv": w(keys[4], (D_MODEL, D_MODEL)),  "bv": w(keys[5], (1, D_MODEL)),
        "wo": w(keys[6], (D_MODEL, D_MODEL)),  "bo": w(keys[7], (1, D_MODEL)),
        "w1": w(keys[8], (D_MODEL, DIM_FF)),   "bf1": w(keys[9], (1, DIM_FF)),
        "w2": w(keys[10], (DIM_FF, D_MODEL)),  "bf2": w(keys[11], (1, D_MODEL)),
        "g1": 1.0 + w(keys[12], (1, D_MODEL), 0.05), "be1": w(keys[13], (1, D_MODEL), 0.05),
        "g2": 1.0 + w(keys[14], (1, D_MODEL), 0.05), "be2": w(keys[15], (1, D_MODEL), 0.05),
        "g3": jnp.ones((1, D_MODEL), jnp.float32),   "be3": jnp.zeros((1, D_MODEL), jnp.float32),
    }


def reference(tgt, memory, p):
    def ln(x, g, b):
        mu = x.mean(-1, keepdims=True)
        var = ((x - mu) ** 2).mean(-1, keepdims=True)
        return (x - mu) / jnp.sqrt(var + EPS) * g + b

    tgt = tgt + tgt
    tgt = ln(tgt, p["g1"], p["be1"])
    q = tgt @ p["wq"] + p["bq"]
    k = memory @ p["wk"] + p["bk"]
    v = memory @ p["wv"] + p["bv"]
    B, Nq, E = q.shape
    Nf = k.shape[1]
    dh = E // NHEAD
    qh = q.reshape(B, Nq, NHEAD, dh).transpose(0, 2, 1, 3)
    kh = k.reshape(B, Nf, NHEAD, dh).transpose(0, 2, 1, 3)
    vh = v.reshape(B, Nf, NHEAD, dh).transpose(0, 2, 1, 3)
    s = jnp.einsum("bhqd,bhkd->bhqk", qh / jnp.sqrt(jnp.float32(dh)), kh)
    pa = jax.nn.softmax(s, axis=-1)
    attn = jnp.einsum("bhqk,bhkd->bhqd", pa, vh).transpose(0, 2, 1, 3).reshape(B, Nq, E)
    attn = attn @ p["wo"] + p["bo"]
    tgt = tgt + attn
    tgt = ln(tgt, p["g2"], p["be2"])
    ff = jax.nn.relu(tgt @ p["w1"] + p["bf1"]) @ p["w2"] + p["bf2"]
    tgt = tgt + ff
    tgt = ln(tgt, p["g3"], p["be3"])
    return tgt


if __name__ == "__main__":
    key = jax.random.PRNGKey(0)
    k_tgt, k_mem, k_par = jax.random.split(key, 3)

    B, NQ, NF = 4, 8, 16
    tgt = jax.random.normal(k_tgt, (B, NQ, D_MODEL), dtype=jnp.float32)
    memory = jax.random.normal(k_mem, (B, NF, D_MODEL), dtype=jnp.float32)
    params = init_params(k_par)

    ref = jax.block_until_ready(reference(tgt, memory, params))

    # default path (static unrolled attention batch loop)
    out = jax.block_until_ready(decoder_layer(tgt, memory, params))
    assert out.shape == (B, NQ, D_MODEL)
    # tolerance covers bf16 MXU operands + pl.reciprocal(approx=True)
    assert jnp.allclose(out, ref, atol=2e-2, rtol=2e-2), "mismatch (unrolled path)"

    # also exercise the pl.loop attention path (used when block_batch is large)
    out_loop = jax.block_until_ready(decoder_layer(tgt, memory, params, force_loop=True))
    assert jnp.allclose(out_loop, ref, atol=2e-2, rtol=2e-2), "mismatch (loop path)"

    print("KERNEL_OK")
</pallas_src>

<mosaic_0001>
module attributes {stable_mosaic.version = 11 : i64} {
  func.func @decoder_layer_kernel(%arg0: i32, %arg1: memref<32x64xf32, #tpu.memory_space<vmem>>, %arg2: memref<64x64xf32, #tpu.memory_space<vmem>>, %arg3: memref<256x128xbf16, #tpu.memory_space<vmem>>, %arg4: memref<64x384xbf16, #tpu.memory_space<vmem>>, %arg5: memref<8x128xf32, #tpu.memory_space<vmem>>, %arg6: memref<16x128xf32, #tpu.memory_space<vmem>>) attributes {dimension_semantics = [#tpu.dimension_semantics<parallel>], iteration_bounds = array<i64: 1>, scalar_prefetch = 0 : i64, scratch_operands = 0 : i64, tpu.core_type = #tpu.core_type<tc>, window_params = [{transform_indices = @transform_0, window_bounds = array<i64: 32, 64>}, {transform_indices = @transform_1, window_bounds = array<i64: 64, 64>}, {pipeline_mode = #tpu.pipeline_mode<synchronous>, transform_indices = @transform_2, window_bounds = array<i64: 256, 128>}, {pipeline_mode = #tpu.pipeline_mode<synchronous>, transform_indices = @transform_3, window_bounds = array<i64: 64, 384>}, {pipeline_mode = #tpu.pipeline_mode<synchronous>, transform_indices = @transform_4, window_bounds = array<i64: 8, 128>}, {transform_indices = @transform_5, window_bounds = array<i64: 16, 128>}]} {
    %c0 = arith.constant 0 : index
    %c0_0 = arith.constant 0 : index
    %0 = vector.load %arg1[%c0, %c0_0] : memref<32x64xf32, #tpu.memory_space<vmem>>, vector<32x64xf32>
    %c0_1 = arith.constant 0 : index
    %c0_2 = arith.constant 0 : index
    %1 = vector.load %arg2[%c0_1, %c0_2] : memref<64x64xf32, #tpu.memory_space<vmem>>, vector<64x64xf32>
    %2 = arith.addf %0, %0 : vector<32x64xf32>
    %c3 = arith.constant 3 : index
    %c0_3 = arith.constant 0 : index
    %3 = vector.load %arg5[%c3, %c0_3] : memref<8x128xf32, #tpu.memory_space<vmem>>, vector<1x64xf32>
    %c3_4 = arith.constant 3 : index
    %c64 = arith.constant 64 : index
    %4 = vector.load %arg5[%c3_4, %c64] : memref<8x128xf32, #tpu.memory_space<vmem>>, vector<1x64xf32>
    %cst = arith.constant dense<0.000000e+00> : vector<32xf32>
    %5 = vector.multi_reduction <add>, %2, %cst [1] : vector<32x64xf32> to vector<32xf32>
    %6 = vector.shape_cast %5 : vector<32xf32> to vector<32x1xf32>
    %cst_5 = arith.constant 6.400000e+01 : f32
    %7 = vector.broadcast %cst_5 : f32 to vector<32x1xf32>
    %8 = arith.divf %6, %7 : vector<32x1xf32>
    %9 = vector.broadcast %8 : vector<32x1xf32> to vector<32x64xf32>
    %10 = arith.subf %2, %9 : vector<32x64xf32>
    %11 = arith.mulf %10, %10 : vector<32x64xf32>
    %cst_6 = arith.constant dense<0.000000e+00> : vector<32xf32>
    %12 = vector.multi_reduction <add>, %11, %cst_6 [1] : vector<32x64xf32> to vector<32xf32>
    %13 = vector.shape_cast %12 : vector<32xf32> to vector<32x1xf32>
    %cst_7 = arith.constant 6.400000e+01 : f32
    %14 = vector.broadcast %cst_7 : f32 to vector<32x1xf32>
    %15 = arith.divf %13, %14 : vector<32x1xf32>
    %16 = vector.broadcast %8 : vector<32x1xf32> to vector<32x64xf32>
    %17 = arith.subf %2, %16 : vector<32x64xf32>
    %cst_8 = arith.constant 9.99999974E-6 : f32
    %18 = vector.broadcast %cst_8 : f32 to vector<32x1xf32>
    %19 = arith.addf %15, %18 : vector<32x1xf32>
    %20 = math.rsqrt %19 : vector<32x1xf32>
    %21 = vector.broadcast %20 : vector<32x1xf32> to vector<32x64xf32>
    %22 = arith.mulf %17, %21 : vector<32x64xf32>
    %23 = vector.broadcast %3 : vector<1x64xf32> to vector<32x64xf32>
    %24 = arith.mulf %22, %23 : vector<32x64xf32>
    %25 = vector.broadcast %4 : vector<1x64xf32> to vector<32x64xf32>
    %26 = arith.addf %24, %25 : vector<32x64xf32>
    %27 = arith.truncf %26 : vector<32x64xf32> to vector<32x64xbf16>
    %c0_9 = arith.constant 0 : index
    %c0_10 = arith.constant 0 : index
    %28 = vector.load %arg3[%c0_9, %c0_10] : memref<256x128xbf16, #tpu.memory_space<vmem>>, vector<64x64xbf16>
    %cst_11 = arith.constant dense<0.000000e+00> : vector<32x64xf32>
    %29 = tpu.matmul %27, %28, %cst_11 {dimension_numbers = #tpu.dot_dimension_numbers<[1], [0], [0], [1], [0, 0, 1, 1], [], []>} : vector<32x64xbf16>, vector<64x64xbf16>, vector<32x64xf32> -> vector<32x64xf32>
    %c0_12 = arith.constant 0 : index
    %c0_13 = arith.constant 0 : index
    %30 = vector.load %arg5[%c0_12, %c0_13] : memref<8x128xf32, #tpu.memory_space<vmem>>, vector<1x64xf32>
    %31 = vector.broadcast %30 : vector<1x64xf32> to vector<32x64xf32>
    %32 = arith.addf %29, %31 : vector<32x64xf32>
    %33 = arith.truncf %32 : vector<32x64xf32> to vector<32x64xbf16>
    %34 = arith.truncf %1 : vector<64x64xf32> to vector<64x64xbf16>
    %c0_14 = arith.constant 0 : index
    %c0_15 = arith.constant 0 : index
    %35 = vector.load %arg4[%c0_14, %c0_15] : memref<64x384xbf16, #tpu.memory_space<vmem>>, vector<64x384xbf16>
    %cst_16 = arith.constant dense<0.000000e+00> : vector<64x384xf32>
    %36 = tpu.matmul %34, %35, %cst_16 {dimension_numbers = #tpu.dot_dimension_numbers<[1], [0], [0], [1], [0, 0, 1, 1], [], []>} : vector<64x64xbf16>, vector<64x384xbf16>, vector<64x384xf32> -> vector<64x384xf32>
    %37 = arith.truncf %36 : vector<64x384xf32> to vector<64x384xbf16>
    %38 = vector.extract_strided_slice %33 {offsets = [0, 0], sizes = [8, 64], strides = [1, 1]} : vector<32x64xbf16> to vector<8x64xbf16>
    %39 = vector.extract_strided_slice %37 {offsets = [0, 0], sizes = [16, 384], strides = [1, 1]} : vector<64x384xbf16> to vector<16x384xbf16>
    %40 = vector.extract_strided_slice %38 {offsets = [0, 0], sizes = [8, 16], strides = [1, 1]} : vector<8x64xbf16> to vector<8x16xbf16>
    %41 = vector.extract_strided_slice %39 {offsets = [0, 0], sizes = [16, 16], strides = [1, 1]} : vector<16x384xbf16> to vector<16x16xbf16>
    %cst_17 = arith.constant dense<0.000000e+00> : vector<8x16xf32>
    %42 = tpu.matmul %40, %41, %cst_17 {dimension_numbers = #tpu.dot_dimension_numbers<[1], [1], [0], [0], [0, 0, 1, 0], [], []>} : vector<8x16xbf16>, vector<16x16xbf16>, vector<8x16xf32> -> vector<8x16xf32>
    %43 = vector.extract_strided_slice %38 {offsets = [0, 16], sizes = [8, 16], strides = [1, 1]} : vector<8x64xbf16> to vector<8x16xbf16>
    %44 = vector.extract_strided_slice %39 {offsets = [0, 16], sizes = [16, 16], strides = [1, 1]} : vector<16x384xbf16> to vector<16x16xbf16>
    %cst_18 = arith.constant dense<0.000000e+00> : vector<8x16xf32>
    %45 = tpu.matmul %43, %44, %cst_18 {dimension_numbers = #tpu.dot_dimension_numbers<[1], [1], [0], [0], [0, 0, 1, 0], [], []>} : vector<8x16xbf16>, vector<16x16xbf16>, vector<8x16xf32> -> vector<8x16xf32>
    %46 = vector.extract_strided_slice %38 {offsets = [0, 32], sizes = [8, 16], strides = [1, 1]} : vector<8x64xbf16> to vector<8x16xbf16>
    %47 = vector.extract_strided_slice %39 {offsets = [0, 32], sizes = [16, 16], strides = [1, 1]} : vector<16x384xbf16> to vector<16x16xbf16>
    %cst_19 = arith.constant dense<0.000000e+00> : vector<8x16xf32>
    %48 = tpu.matmul %46, %47, %cst_19 {dimension_numbers = #tpu.dot_dimension_numbers<[1], [1], [0], [0], [0, 0, 1, 0], [], []>} : vector<8x16xbf16>, vector<16x16xbf16>, vector<8x16xf32> -> vector<8x16xf32>
    %49 = vector.extract_strided_slice %38 {offsets = [0, 48], sizes = [8, 16], strides = [1, 1]} : vector<8x64xbf16> to vector<8x16xbf16>
    %50 = vector.extract_strided_slice %39 {offsets = [0, 48], sizes = [16, 16], strides = [1, 1]} : vector<16x384xbf16> to vector<16x16xbf16>
    %cst_20 = arith.constant dense<0.000000e+00> : vector<8x16xf32>
    %51 = tpu.matmul %49, %50, %cst_20 {dimension_numbers = #tpu.dot_dimension_numbers<[1], [1], [0], [0], [0, 0, 1, 0], [], []>} : vector<8x16xbf16>, vector<16x16xbf16>, vector<8x16xf32> -> vector<8x16xf32>
    %52 = tpu.concatenate %42, %45, %48, %51 in 0 : vector<8x16xf32>, vector<8x16xf32>, vector<8x16xf32>, vector<8x16xf32> -> vector<32x16xf32>
    %cst_21 = arith.constant dense<0xFF800000> : vector<32xf32>
    %53 = vector.multi_reduction <maximumf>, %52, %cst_21 [1] : vector<32x16xf32> to vector<32xf32>
    %54 = vector.shape_cast %53 : vector<32xf32> to vector<32x1xf32>
    %55 = vector.broadcast %54 : vector<32x1xf32> to vector<32x16xf32>
    %56 = arith.subf %52, %55 : vector<32x16xf32>
    %57 = math.exp %56 : vector<32x16xf32>
    %cst_22 = arith.constant dense<0.000000e+00> : vector<32xf32>
    %58 = vector.multi_reduction <add>, %57, %cst_22 [1] : vector<32x16xf32> to vector<32xf32>
    %59 = vector.shape_cast %58 : vector<32xf32> to vector<32x1xf32>
    %60 = tpu.reciprocal %59 {approx = true} : vector<32x1xf32> -> vector<32x1xf32>
    %61 = vector.broadcast %60 : vector<32x1xf32> to vector<32x16xf32>
    %62 = arith.mulf %57, %61 : vector<32x16xf32>
    %63 = arith.truncf %62 : vector<32x16xf32> to vector<32x16xbf16>
    %64 = vector.extract_strided_slice %39 {offsets = [0, 64], sizes = [16, 64], strides = [1, 1]} : vector<16x384xbf16> to vector<16x64xbf16>
    %65 = vector.extract_strided_slice %63 {offsets = [0, 0], sizes = [8, 16], strides = [1, 1]} : vector<32x16xbf16> to vector<8x16xbf16>
    %cst_23 = arith.constant dense<0.000000e+00> : vector<8x64xf32>
    %66 = tpu.matmul %65, %64, %cst_23 {dimension_numbers = #tpu.dot_dimension_numbers<[1], [0], [0], [1], [0, 0, 1, 1], [], []>} : vector<8x16xbf16>, vector<16x64xbf16>, vector<8x64xf32> -> vector<8x64xf32>
    %67 = vector.extract_strided_slice %39 {offsets = [0, 128], sizes = [16, 64], strides = [1, 1]} : vector<16x384xbf16> to vector<16x64xbf16>
    %68 = vector.extract_strided_slice %63 {offsets = [8, 0], sizes = [8, 16], strides = [1, 1]} : vector<32x16xbf16> to vector<8x16xbf16>
    %cst_24 = arith.constant dense<0.000000e+00> : vector<8x64xf32>
    %69 = tpu.matmul %68, %67, %cst_24 {dimension_numbers = #tpu.dot_dimension_numbers<[1], [0], [0], [1], [0, 0, 1, 1], [], []>} : vector<8x16xbf16>, vector<16x64xbf16>, vector<8x64xf32> -> vector<8x64xf32>
    %70 = arith.addf %66, %69 : vector<8x64xf32>
    %71 = vector.extract_strided_slice %39 {offsets = [0, 192], sizes = [16, 64], strides = [1, 1]} : vector<16x384xbf16> to vector<16x64xbf16>
    %72 = vector.extract_strided_slice %63 {offsets = [16, 0], sizes = [8, 16], strides = [1, 1]} : vector<32x16xbf16> to vector<8x16xbf16>
    %cst_25 = arith.constant dense<0.000000e+00> : vector<8x64xf32>
    %73 = tpu.matmul %72, %71, %cst_25 {dimension_numbers = #tpu.dot_dimension_numbers<[1], [0], [0], [1], [0, 0, 1, 1], [], []>} : vector<8x16xbf16>, vector<16x64xbf16>, vector<8x64xf32> -> vector<8x64xf32>
    %74 = arith.addf %70, %73 : vector<8x64xf32>
    %75 = vector.extract_strided_slice %39 {offsets = [0, 256], sizes = [16, 64], strides = [1, 1]} : vector<16x384xbf16> to vector<16x64xbf16>
    %76 = vector.extract_strided_slice %63 {offsets = [24, 0], sizes = [8, 16], strides = [1, 1]} : vector<32x16xbf16> to vector<8x16xbf16>
    %cst_26 = arith.constant dense<0.000000e+00> : vector<8x64xf32>
    %77 = tpu.matmul %76, %75, %cst_26 {dimension_numbers = #tpu.dot_dimension_numbers<[1], [0], [0], [1], [0, 0, 1, 1], [], []>} : vector<8x16xbf16>, vector<16x64xbf16>, vector<8x64xf32> -> vector<8x64xf32>
    %78 = arith.addf %74, %77 : vector<8x64xf32>
    %79 = vector.extract_strided_slice %33 {offsets = [8, 0], sizes = [8, 64], strides = [1, 1]} : vector<32x64xbf16> to vector<8x64xbf16>
    %80 = vector.extract_strided_slice %37 {offsets = [16, 0], sizes = [16, 384], strides = [1, 1]} : vector<64x384xbf16> to vector<16x384xbf16>
    %81 = vector.extract_strided_slice %79 {offsets = [0, 0], sizes = [8, 16], strides = [1, 1]} : vector<8x64xbf16> to vector<8x16xbf16>
    %82 = vector.extract_strided_slice %80 {offsets = [0, 0], sizes = [16, 16], strides = [1, 1]} : vector<16x384xbf16> to vector<16x16xbf16>
    %cst_27 = arith.constant dense<0.000000e+00> : vector<8x16xf32>
    %83 = tpu.matmul %81, %82, %cst_27 {dimension_numbers = #tpu.dot_dimension_numbers<[1], [1], [0], [0], [0, 0, 1, 0], [], []>} : vector<8x16xbf16>, vector<16x16xbf16>, vector<8x16xf32> -> vector<8x16xf32>
    %84 = vector.extract_strided_slice %79 {offsets = [0, 16], sizes = [8, 16], strides = [1, 1]} : vector<8x64xbf16> to vector<8x16xbf16>
    %85 = vector.extract_strided_slice %80 {offsets = [0, 16], sizes = [16, 16], strides = [1, 1]} : vector<16x384xbf16> to vector<16x16xbf16>
    %cst_28 = arith.constant dense<0.000000e+00> : vector<8x16xf32>
    %86 = tpu.matmul %84, %85, %cst_28 {dimension_numbers = #tpu.dot_dimension_numbers<[1], [1], [0], [0], [0, 0, 1, 0], [], []>} : vector<8x16xbf16>, vector<16x16xbf16>, vector<8x16xf32> -> vector<8x16xf32>
    %87 = vector.extract_strided_slice %79 {offsets = [0, 32], sizes = [8, 16], strides = [1, 1]} : vector<8x64xbf16> to vector<8x16xbf16>
    %88 = vector.extract_strided_slice %80 {offsets = [0, 32], sizes = [16, 16], strides = [1, 1]} : vector<16x384xbf16> to vector<16x16xbf16>
    %cst_29 = arith.constant dense<0.000000e+00> : vector<8x16xf32>
    %89 = tpu.matmul %87, %88, %cst_29 {dimension_numbers = #tpu.dot_dimension_numbers<[1], [1], [0], [0], [0, 0, 1, 0], [], []>} : vector<8x16xbf16>, vector<16x16xbf16>, vector<8x16xf32> -> vector<8x16xf32>
    %90 = vector.extract_strided_slice %79 {offsets = [0, 48], sizes = [8, 16], strides = [1, 1]} : vector<8x64xbf16> to vector<8x16xbf16>
    %91 = vector.extract_strided_slice %80 {offsets = [0, 48], sizes = [16, 16], strides = [1, 1]} : vector<16x384xbf16> to vector<16x16xbf16>
    %cst_30 = arith.constant dense<0.000000e+00> : vector<8x16xf32>
    %92 = tpu.matmul %90, %91, %cst_30 {dimension_numbers = #tpu.dot_dimension_numbers<[1], [1], [0], [0], [0, 0, 1, 0], [], []>} : vector<8x16xbf16>, vector<16x16xbf16>, vector<8x16xf32> -> vector<8x16xf32>
    %93 = tpu.concatenate %83, %86, %89, %92 in 0 : vector<8x16xf32>, vector<8x16xf32>, vector<8x16xf32>, vector<8x16xf32> -> vector<32x16xf32>
    %cst_31 = arith.constant dense<0xFF800000> : vector<32xf32>
    %94 = vector.multi_reduction <maximumf>, %93, %cst_31 [1] : vector<32x16xf32> to vector<32xf32>
    %95 = vector.shape_cast %94 : vector<32xf32> to vector<32x1xf32>
    %96 = vector.broadcast %95 : vector<32x1xf32> to vector<32x16xf32>
    %97 = arith.subf %93, %96 : vector<32x16xf32>
    %98 = math.exp %97 : vector<32x16xf32>
    %cst_32 = arith.constant dense<0.000000e+00> : vector<32xf32>
    %99 = vector.multi_reduction <add>, %98, %cst_32 [1] : vector<32x16xf32> to vector<32xf32>
    %100 = vector.shape_cast %99 : vector<32xf32> to vector<32x1xf32>
    %101 = tpu.reciprocal %100 {approx = true} : vector<32x1xf32> -> vector<32x1xf32>
    %102 = vector.broadcast %101 : vector<32x1xf32> to vector<32x16xf32>
    %103 = arith.mulf %98, %102 : vector<32x16xf32>
    %104 = arith.truncf %103 : vector<32x16xf32> to vector<32x16xbf16>
    %105 = vector.extract_strided_slice %80 {offsets = [0, 64], sizes = [16, 64], strides = [1, 1]} : vector<16x384xbf16> to vector<16x64xbf16>
    %106 = vector.extract_strided_slice %104 {offsets = [0, 0], sizes = [8, 16], strides = [1, 1]} : vector<32x16xbf16> to vector<8x16xbf16>
    %cst_33 = arith.constant dense<0.000000e+00> : vector<8x64xf32>
    %107 = tpu.matmul %106, %105, %cst_33 {dimension_numbers = #tpu.dot_dimension_numbers<[1], [0], [0], [1], [0, 0, 1, 1], [], []>} : vector<8x16xbf16>, vector<16x64xbf16>, vector<8x64xf32> -> vector<8x64xf32>
    %108 = vector.extract_strided_slice %80 {offsets = [0, 128], sizes = [16, 64], strides = [1, 1]} : vector<16x384xbf16> to vector<16x64xbf16>
    %109 = vector.extract_strided_slice %104 {offsets = [8, 0], sizes = [8, 16], strides = [1, 1]} : vector<32x16xbf16> to vector<8x16xbf16>
    %cst_34 = arith.constant dense<0.000000e+00> : vector<8x64xf32>
    %110 = tpu.matmul %109, %108, %cst_34 {dimension_numbers = #tpu.dot_dimension_numbers<[1], [0], [0], [1], [0, 0, 1, 1], [], []>} : vector<8x16xbf16>, vector<16x64xbf16>, vector<8x64xf32> -> vector<8x64xf32>
    %111 = arith.addf %107, %110 : vector<8x64xf32>
    %112 = vector.extract_strided_slice %80 {offsets = [0, 192], sizes = [16, 64], strides = [1, 1]} : vector<16x384xbf16> to vector<16x64xbf16>
    %113 = vector.extract_strided_slice %104 {offsets = [16, 0], sizes = [8, 16], strides = [1, 1]} : vector<32x16xbf16> to vector<8x16xbf16>
    %cst_35 = arith.constant dense<0.000000e+00> : vector<8x64xf32>
    %114 = tpu.matmul %113, %112, %cst_35 {dimension_numbers = #tpu.dot_dimension_numbers<[1], [0], [0], [1], [0, 0, 1, 1], [], []>} : vector<8x16xbf16>, vector<16x64xbf16>, vector<8x64xf32> -> vector<8x64xf32>
    %115 = arith.addf %111, %114 : vector<8x64xf32>
    %116 = vector.extract_strided_slice %80 {offsets = [0, 256], sizes = [16, 64], strides = [1, 1]} : vector<16x384xbf16> to vector<16x64xbf16>
    %117 = vector.extract_strided_slice %104 {offsets = [24, 0], sizes = [8, 16], strides = [1, 1]} : vector<32x16xbf16> to vector<8x16xbf16>
    %cst_36 = arith.constant dense<0.000000e+00> : vector<8x64xf32>
    %118 = tpu.matmul %117, %116, %cst_36 {dimension_numbers = #tpu.dot_dimension_numbers<[1], [0], [0], [1], [0, 0, 1, 1], [], []>} : vector<8x16xbf16>, vector<16x64xbf16>, vector<8x64xf32> -> vector<8x64xf32>
    %119 = arith.addf %115, %118 : vector<8x64xf32>
    %120 = vector.extract_strided_slice %33 {offsets = [16, 0], sizes = [8, 64], strides = [1, 1]} : vector<32x64xbf16> to vector<8x64xbf16>
    %121 = vector.extract_strided_slice %37 {offsets = [32, 0], sizes = [16, 384], strides = [1, 1]} : vector<64x384xbf16> to vector<16x384xbf16>
    %122 = vector.extract_strided_slice %120 {offsets = [0, 0], sizes = [8, 16], strides = [1, 1]} : vector<8x64xbf16> to vector<8x16xbf16>
    %123 = vector.extract_strided_slice %121 {offsets = [0, 0], sizes = [16, 16], strides = [1, 1]} : vector<16x384xbf16> to vector<16x16xbf16>
    %cst_37 = arith.constant dense<0.000000e+00> : vector<8x16xf32>
    %124 = tpu.matmul %122, %123, %cst_37 {dimension_numbers = #tpu.dot_dimension_numbers<[1], [1], [0], [0], [0, 0, 1, 0], [], []>} : vector<8x16xbf16>, vector<16x16xbf16>, vector<8x16xf32> -> vector<8x16xf32>
    %125 = vector.extract_strided_slice %120 {offsets = [0, 16], sizes = [8, 16], strides = [1, 1]} : vector<8x64xbf16> to vector<8x16xbf16>
    %126 = vector.extract_strided_slice %121 {offsets = [0, 16], sizes = [16, 16], strides = [1, 1]} : vector<16x384xbf16> to vector<16x16xbf16>
    %cst_38 = arith.constant dense<0.000000e+00> : vector<8x16xf32>
    %127 = tpu.matmul %125, %126, %cst_38 {dimension_numbers = #tpu.dot_dimension_numbers<[1], [1], [0], [0], [0, 0, 1, 0], [], []>} : vector<8x16xbf16>, vector<16x16xbf16>, vector<8x16xf32> -> vector<8x16xf32>
    %128 = vector.extract_strided_slice %120 {offsets = [0, 32], sizes = [8, 16], strides = [1, 1]} : vector<8x64xbf16> to vector<8x16xbf16>
    %129 = vector.extract_strided_slice %121 {offsets = [0, 32], sizes = [16, 16], strides = [1, 1]} : vector<16x384xbf16> to vector<16x16xbf16>
    %cst_39 = arith.constant dense<0.000000e+00> : vector<8x16xf32>
    %130 = tpu.matmul %128, %129, %cst_39 {dimension_numbers = #tpu.dot_dimension_numbers<[1], [1], [0], [0], [0, 0, 1, 0], [], []>} : vector<8x16xbf16>, vector<16x16xbf16>, vector<8x16xf32> -> vector<8x16xf32>
    %131 = vector.extract_strided_slice %120 {offsets = [0, 48], sizes = [8, 16], strides = [1, 1]} : vector<8x64xbf16> to vector<8x16xbf16>
    %132 = vector.extract_strided_slice %121 {offsets = [0, 48], sizes = [16, 16], strides = [1, 1]} : vector<16x384xbf16> to vector<16x16xbf16>
    %cst_40 = arith.constant dense<0.000000e+00> : vector<8x16xf32>
    %133 = tpu.matmul %131, %132, %cst_40 {dimension_numbers = #tpu.dot_dimension_numbers<[1], [1], [0], [0], [0, 0, 1, 0], [], []>} : vector<8x16xbf16>, vector<16x16xbf16>, vector<8x16xf32> -> vector<8x16xf32>
    %134 = tpu.concatenate %124, %127, %130, %133 in 0 : vector<8x16xf32>, vector<8x16xf32>, vector<8x16xf32>, vector<8x16xf32> -> vector<32x16xf32>
    %cst_41 = arith.constant dense<0xFF800000> : vector<32xf32>
    %135 = vector.multi_reduction <maximumf>, %134, %cst_41 [1] : vector<32x16xf32> to vector<32xf32>
    %136 = vector.shape_cast %135 : vector<32xf32> to vector<32x1xf32>
    %137 = vector.broadcast %136 : vector<32x1xf32> to vector<32x16xf32>
    %138 = arith.subf %134, %137 : vector<32x16xf32>
    %139 = math.exp %138 : vector<32x16xf32>
    %cst_42 = arith.constant dense<0.000000e+00> : vector<32xf32>
    %140 = vector.multi_reduction <add>, %139, %cst_42 [1] : vector<32x16xf32> to vector<32xf32>
    %141 = vector.shape_cast %140 : vector<32xf32> to vector<32x1xf32>
    %142 = tpu.reciprocal %141 {approx = true} : vector<32x1xf32> -> vector<32x1xf32>
    %143 = vector.broadcast %142 : vector<32x1xf32> to vector<32x16xf32>
    %144 = arith.mulf %139, %143 : vector<32x16xf32>
    %145 = arith.truncf %144 : vector<32x16xf32> to vector<32x16xbf16>
    %146 = vector.extract_strided_slice %121 {offsets = [0, 64], sizes = [16, 64], strides = [1, 1]} : vector<16x384xbf16> to vector<16x64xbf16>
    %147 = vector.extract_strided_slice %145 {offsets = [0, 0], sizes = [8, 16], strides = [1, 1]} : vector<32x16xbf16> to vector<8x16xbf16>
    %cst_43 = arith.constant dense<0.000000e+00> : vector<8x64xf32>
    %148 = tpu.matmul %147, %146, %cst_43 {dimension_numbers = #tpu.dot_dimension_numbers<[1], [0], [0], [1], [0, 0, 1, 1], [], []>} : vector<8x16xbf16>, vector<16x64xbf16>, vector<8x64xf32> -> vector<8x64xf32>
    %149 = vector.extract_strided_slice %121 {offsets = [0, 128], sizes = [16, 64], strides = [1, 1]} : vector<16x384xbf16> to vector<16x64xbf16>
    %150 = vector.extract_strided_slice %145 {offsets = [8, 0], sizes = [8, 16], strides = [1, 1]} : vector<32x16xbf16> to vector<8x16xbf16>
    %cst_44 = arith.constant dense<0.000000e+00> : vector<8x64xf32>
    %151 = tpu.matmul %150, %149, %cst_44 {dimension_numbers = #tpu.dot_dimension_numbers<[1], [0], [0], [1], [0, 0, 1, 1], [], []>} : vector<8x16xbf16>, vector<16x64xbf16>, vector<8x64xf32> -> vector<8x64xf32>
    %152 = arith.addf %148, %151 : vector<8x64xf32>
    %153 = vector.extract_strided_slice %121 {offsets = [0, 192], sizes = [16, 64], strides = [1, 1]} : vector<16x384xbf16> to vector<16x64xbf16>
    %154 = vector.extract_strided_slice %145 {offsets = [16, 0], sizes = [8, 16], strides = [1, 1]} : vector<32x16xbf16> to vector<8x16xbf16>
    %cst_45 = arith.constant dense<0.000000e+00> : vector<8x64xf32>
    %155 = tpu.matmul %154, %153, %cst_45 {dimension_numbers = #tpu.dot_dimension_numbers<[1], [0], [0], [1], [0, 0, 1, 1], [], []>} : vector<8x16xbf16>, vector<16x64xbf16>, vector<8x64xf32> -> vector<8x64xf32>
    %156 = arith.addf %152, %155 : vector<8x64xf32>
    %157 = vector.extract_strided_slice %121 {offsets = [0, 256], sizes = [16, 64], strides = [1, 1]} : vector<16x384xbf16> to vector<16x64xbf16>
    %158 = vector.extract_strided_slice %145 {offsets = [24, 0], sizes = [8, 16], strides = [1, 1]} : vector<32x16xbf16> to vector<8x16xbf16>
    %cst_46 = arith.constant dense<0.000000e+00> : vector<8x64xf32>
    %159 = tpu.matmul %158, %157, %cst_46 {dimension_numbers = #tpu.dot_dimension_numbers<[1], [0], [0], [1], [0, 0, 1, 1], [], []>} : vector<8x16xbf16>, vector<16x64xbf16>, vector<8x64xf32> -> vector<8x64xf32>
    %160 = arith.addf %156, %159 : vector<8x64xf32>
    %161 = vector.extract_strided_slice %33 {offsets = [24, 0], sizes = [8, 64], strides = [1, 1]} : vector<32x64xbf16> to vector<8x64xbf16>
    %162 = vector.extract_strided_slice %37 {offsets = [48, 0], sizes = [16, 384], strides = [1, 1]} : vector<64x384xbf16> to vector<16x384xbf16>
    %163 = vector.extract_strided_slice %161 {offsets = [0, 0], sizes = [8, 16], strides = [1, 1]} : vector<8x64xbf16> to vector<8x16xbf16>
    %164 = vector.extract_strided_slice %162 {offsets = [0, 0], sizes = [16, 16], strides = [1, 1]} : vector<16x384xbf16> to vector<16x16xbf16>
    %cst_47 = arith.constant dense<0.000000e+00> : vector<8x16xf32>
    %165 = tpu.matmul %163, %164, %cst_47 {dimension_numbers = #tpu.dot_dimension_numbers<[1], [1], [0], [0], [0, 0, 1, 0], [], []>} : vector<8x16xbf16>, vector<16x16xbf16>, vector<8x16xf32> -> vector<8x16xf32>
    %166 = vector.extract_strided_slice %161 {offsets = [0, 16], sizes = [8, 16], strides = [1, 1]} : vector<8x64xbf16> to vector<8x16xbf16>
    %167 = vector.extract_strided_slice %162 {offsets = [0, 16], sizes = [16, 16], strides = [1, 1]} : vector<16x384xbf16> to vector<16x16xbf16>
    %cst_48 = arith.constant dense<0.000000e+00> : vector<8x16xf32>
    %168 = tpu.matmul %166, %167, %cst_48 {dimension_numbers = #tpu.dot_dimension_numbers<[1], [1], [0], [0], [0, 0, 1, 0], [], []>} : vector<8x16xbf16>, vector<16x16xbf16>, vector<8x16xf32> -> vector<8x16xf32>
    %169 = vector.extract_strided_slice %161 {offsets = [0, 32], sizes = [8, 16], strides = [1, 1]} : vector<8x64xbf16> to vector<8x16xbf16>
    %170 = vector.extract_strided_slice %162 {offsets = [0, 32], sizes = [16, 16], strides = [1, 1]} : vector<16x384xbf16> to vector<16x16xbf16>
    %cst_49 = arith.constant dense<0.000000e+00> : vector<8x16xf32>
    %171 = tpu.matmul %169, %170, %cst_49 {dimension_numbers = #tpu.dot_dimension_numbers<[1], [1], [0], [0], [0, 0, 1, 0], [], []>} : vector<8x16xbf16>, vector<16x16xbf16>, vector<8x16xf32> -> vector<8x16xf32>
    %172 = vector.extract_strided_slice %161 {offsets = [0, 48], sizes = [8, 16], strides = [1, 1]} : vector<8x64xbf16> to vector<8x16xbf16>
    %173 = vector.extract_strided_slice %162 {offsets = [0, 48], sizes = [16, 16], strides = [1, 1]} : vector<16x384xbf16> to vector<16x16xbf16>
    %cst_50 = arith.constant dense<0.000000e+00> : vector<8x16xf32>
    %174 = tpu.matmul %172, %173, %cst_50 {dimension_numbers = #tpu.dot_dimension_numbers<[1], [1], [0], [0], [0, 0, 1, 0], [], []>} : vector<8x16xbf16>, vector<16x16xbf16>, vector<8x16xf32> -> vector<8x16xf32>
    %175 = tpu.concatenate %165, %168, %171, %174 in 0 : vector<8x16xf32>, vector<8x16xf32>, vector<8x16xf32>, vector<8x16xf32> -> vector<32x16xf32>
    %cst_51 = arith.constant dense<0xFF800000> : vector<32xf32>
    %176 = vector.multi_reduction <maximumf>, %175, %cst_51 [1] : vector<32x16xf32> to vector<32xf32>
    %177 = vector.shape_cast %176 : vector<32xf32> to vector<32x1xf32>
    %178 = vector.broadcast %177 : vector<32x1xf32> to vector<32x16xf32>
    %179 = arith.subf %175, %178 : vector<32x16xf32>
    %180 = math.exp %179 : vector<32x16xf32>
    %cst_52 = arith.constant dense<0.000000e+00> : vector<32xf32>
    %181 = vector.multi_reduction <add>, %180, %cst_52 [1] : vector<32x16xf32> to vector<32xf32>
    %182 = vector.shape_cast %181 : vector<32xf32> to vector<32x1xf32>
    %183 = tpu.reciprocal %182 {approx = true} : vector<32x1xf32> -> vector<32x1xf32>
    %184 = vector.broadcast %183 : vector<32x1xf32> to vector<32x16xf32>
    %185 = arith.mulf %180, %184 : vector<32x16xf32>
    %186 = arith.truncf %185 : vector<32x16xf32> to vector<32x16xbf16>
    %187 = vector.extract_strided_slice %162 {offsets = [0, 64], sizes = [16, 64], strides = [1, 1]} : vector<16x384xbf16> to vector<16x64xbf16>
    %188 = vector.extract_strided_slice %186 {offsets = [0, 0], sizes = [8, 16], strides = [1, 1]} : vector<32x16xbf16> to vector<8x16xbf16>
    %cst_53 = arith.constant dense<0.000000e+00> : vector<8x64xf32>
    %189 = tpu.matmul %188, %187, %cst_53 {dimension_numbers = #tpu.dot_dimension_numbers<[1], [0], [0], [1], [0, 0, 1, 1], [], []>} : vector<8x16xbf16>, vector<16x64xbf16>, vector<8x64xf32> -> vector<8x64xf32>
    %190 = vector.extract_strided_slice %162 {offsets = [0, 128], sizes = [16, 64], strides = [1, 1]} : vector<16x384xbf16> to vector<16x64xbf16>
    %191 = vector.extract_strided_slice %186 {offsets = [8, 0], sizes = [8, 16], strides = [1, 1]} : vector<32x16xbf16> to vector<8x16xbf16>
    %cst_54 = arith.constant dense<0.000000e+00> : vector<8x64xf32>
    %192 = tpu.matmul %191, %190, %cst_54 {dimension_numbers = #tpu.dot_dimension_numbers<[1], [0], [0], [1], [0, 0, 1, 1], [], []>} : vector<8x16xbf16>, vector<16x64xbf16>, vector<8x64xf32> -> vector<8x64xf32>
    %193 = arith.addf %189, %192 : vector<8x64xf32>
    %194 = vector.extract_strided_slice %162 {offsets = [0, 192], sizes = [16, 64], strides = [1, 1]} : vector<16x384xbf16> to vector<16x64xbf16>
    %195 = vector.extract_strided_slice %186 {offsets = [16, 0], sizes = [8, 16], strides = [1, 1]} : vector<32x16xbf16> to vector<8x16xbf16>
    %cst_55 = arith.constant dense<0.000000e+00> : vector<8x64xf32>
    %196 = tpu.matmul %195, %194, %cst_55 {dimension_numbers = #tpu.dot_dimension_numbers<[1], [0], [0], [1], [0, 0, 1, 1], [], []>} : vector<8x16xbf16>, vector<16x64xbf16>, vector<8x64xf32> -> vector<8x64xf32>
    %197 = arith.addf %193, %196 : vector<8x64xf32>
    %198 = vector.extract_strided_slice %162 {offsets = [0, 256], sizes = [16, 64], strides = [1, 1]} : vector<16x384xbf16> to vector<16x64xbf16>
    %199 = vector.extract_strided_slice %186 {offsets = [24, 0], sizes = [8, 16], strides = [1, 1]} : vector<32x16xbf16> to vector<8x16xbf16>
    %cst_56 = arith.constant dense<0.000000e+00> : vector<8x64xf32>
    %200 = tpu.matmul %199, %198, %cst_56 {dimension_numbers = #tpu.dot_dimension_numbers<[1], [0], [0], [1], [0, 0, 1, 1], [], []>} : vector<8x16xbf16>, vector<16x64xbf16>, vector<8x64xf32> -> vector<8x64xf32>
    %201 = arith.addf %197, %200 : vector<8x64xf32>
    %202 = tpu.concatenate %78, %119, %160, %201 in 0 : vector<8x64xf32>, vector<8x64xf32>, vector<8x64xf32>, vector<8x64xf32> -> vector<32x64xf32>
    %c1 = arith.constant 1 : index
    %c0_57 = arith.constant 0 : index
    %203 = vector.load %arg5[%c1, %c0_57] : memref<8x128xf32, #tpu.memory_space<vmem>>, vector<1x64xf32>
    %204 = vector.broadcast %203 : vector<1x64xf32> to vector<32x64xf32>
    %205 = arith.addf %202, %204 : vector<32x64xf32>
    %206 = arith.addf %26, %205 : vector<32x64xf32>
    %c4 = arith.constant 4 : index
    %c0_58 = arith.constant 0 : index
    %207 = vector.load %arg5[%c4, %c0_58] : memref<8x128xf32, #tpu.memory_space<vmem>>, vector<1x64xf32>
    %c4_59 = arith.constant 4 : index
    %c64_60 = arith.constant 64 : index
    %208 = vector.load %arg5[%c4_59, %c64_60] : memref<8x128xf32, #tpu.memory_space<vmem>>, vector<1x64xf32>
    %cst_61 = arith.constant dense<0.000000e+00> : vector<32xf32>
    %209 = vector.multi_reduction <add>, %206, %cst_61 [1] : vector<32x64xf32> to vector<32xf32>
    %210 = vector.shape_cast %209 : vector<32xf32> to vector<32x1xf32>
    %cst_62 = arith.constant 6.400000e+01 : f32
    %211 = vector.broadcast %cst_62 : f32 to vector<32x1xf32>
    %212 = arith.divf %210, %211 : vector<32x1xf32>
    %213 = vector.broadcast %212 : vector<32x1xf32> to vector<32x64xf32>
    %214 = arith.subf %206, %213 : vector<32x64xf32>
    %215 = arith.mulf %214, %214 : vector<32x64xf32>
    %cst_63 = arith.constant dense<0.000000e+00> : vector<32xf32>
    %216 = vector.multi_reduction <add>, %215, %cst_63 [1] : vector<32x64xf32> to vector<32xf32>
    %217 = vector.shape_cast %216 : vector<32xf32> to vector<32x1xf32>
    %cst_64 = arith.constant 6.400000e+01 : f32
    %218 = vector.broadcast %cst_64 : f32 to vector<32x1xf32>
    %219 = arith.divf %217, %218 : vector<32x1xf32>
    %220 = vector.broadcast %212 : vector<32x1xf32> to vector<32x64xf32>
    %221 = arith.subf %206, %220 : vector<32x64xf32>
    %cst_65 = arith.constant 9.99999974E-6 : f32
    %222 = vector.broadcast %cst_65 : f32 to vector<32x1xf32>
    %223 = arith.addf %219, %222 : vector<32x1xf32>
    %224 = math.rsqrt %223 : vector<32x1xf32>
    %225 = vector.broadcast %224 : vector<32x1xf32> to vector<32x64xf32>
    %226 = arith.mulf %221, %225 : vector<32x64xf32>
    %227 = vector.broadcast %207 : vector<1x64xf32> to vector<32x64xf32>
    %228 = arith.mulf %226, %227 : vector<32x64xf32>
    %229 = vector.broadcast %208 : vector<1x64xf32> to vector<32x64xf32>
    %230 = arith.addf %228, %229 : vector<32x64xf32>
    %231 = arith.truncf %230 : vector<32x64xf32> to vector<32x64xbf16>
    %c64_66 = arith.constant 64 : index
    %c0_67 = arith.constant 0 : index
    %232 = vector.load %arg3[%c64_66, %c0_67] : memref<256x128xbf16, #tpu.memory_space<vmem>>, vector<64x128xbf16>
    %cst_68 = arith.constant dense<0.000000e+00> : vector<32x128xf32>
    %233 = tpu.matmul %231, %232, %cst_68 {dimension_numbers = #tpu.dot_dimension_numbers<[1], [0], [0], [1], [0, 0, 1, 1], [], []>} : vector<32x64xbf16>, vector<64x128xbf16>, vector<32x128xf32> -> vector<32x128xf32>
    %c2 = arith.constant 2 : index
    %c0_69 = arith.constant 0 : index
    %234 = vector.load %arg5[%c2, %c0_69] : memref<8x128xf32, #tpu.memory_space<vmem>>, vector<1x128xf32>
    %235 = vector.broadcast %234 : vector<1x128xf32> to vector<32x128xf32>
    %236 = arith.addf %233, %235 : vector<32x128xf32>
    %cst_70 = arith.constant 0.000000e+00 : f32
    %237 = vector.broadcast %cst_70 : f32 to vector<32x128xf32>
    %238 = arith.maximumf %236, %237 : vector<32x128xf32>
    %239 = arith.truncf %238 : vector<32x128xf32> to vector<32x128xbf16>
    %c128 = arith.constant 128 : index
    %c0_71 = arith.constant 0 : index
    %240 = vector.load %arg3[%c128, %c0_71] : memref<256x128xbf16, #tpu.memory_space<vmem>>, vector<128x64xbf16>
    %cst_72 = arith.constant dense<0.000000e+00> : vector<32x64xf32>
    %241 = tpu.matmul %239, %240, %cst_72 {dimension_numbers = #tpu.dot_dimension_numbers<[1], [0], [0], [1], [0, 0, 1, 1], [], []>} : vector<32x128xbf16>, vector<128x64xbf16>, vector<32x64xf32> -> vector<32x64xf32>
    %c1_73 = arith.constant 1 : index
    %c64_74 = arith.constant 64 : index
    %242 = vector.load %arg5[%c1_73, %c64_74] : memref<8x128xf32, #tpu.memory_space<vmem>>, vector<1x64xf32>
    %243 = vector.broadcast %242 : vector<1x64xf32> to vector<32x64xf32>
    %244 = arith.addf %241, %243 : vector<32x64xf32>
    %245 = arith.addf %230, %244 : vector<32x64xf32>
    %c5 = arith.constant 5 : index
    %c0_75 = arith.constant 0 : index
    %246 = vector.load %arg5[%c5, %c0_75] : memref<8x128xf32, #tpu.memory_space<vmem>>, vector<1x64xf32>
    %c5_76 = arith.constant 5 : index
    %c64_77 = arith.constant 64 : index
    %247 = vector.load %arg5[%c5_76, %c64_77] : memref<8x128xf32, #tpu.memory_space<vmem>>, vector<1x64xf32>
    %cst_78 = arith.constant dense<0.000000e+00> : vector<32xf32>
    %248 = vector.multi_reduction <add>, %245, %cst_78 [1] : vector<32x64xf32> to vector<32xf32>
    %249 = vector.shape_cast %248 : vector<32xf32> to vector<32x1xf32>
    %cst_79 = arith.constant 6.400000e+01 : f32
    %250 = vector.broadcast %cst_79 : f32 to vector<32x1xf32>
    %251 = arith.divf %249, %250 : vector<32x1xf32>
    %252 = vector.broadcast %251 : vector<32x1xf32> to vector<32x64xf32>
    %253 = arith.subf %245, %252 : vector<32x64xf32>
    %254 = arith.mulf %253, %253 : vector<32x64xf32>
    %cst_80 = arith.constant dense<0.000000e+00> : vector<32xf32>
    %255 = vector.multi_reduction <add>, %254, %cst_80 [1] : vector<32x64xf32> to vector<32xf32>
    %256 = vector.shape_cast %255 : vector<32xf32> to vector<32x1xf32>
    %cst_81 = arith.constant 6.400000e+01 : f32
    %257 = vector.broadcast %cst_81 : f32 to vector<32x1xf32>
    %258 = arith.divf %256, %257 : vector<32x1xf32>
    %259 = vector.broadcast %251 : vector<32x1xf32> to vector<32x64xf32>
    %260 = arith.subf %245, %259 : vector<32x64xf32>
    %cst_82 = arith.constant 9.99999974E-6 : f32
    %261 = vector.broadcast %cst_82 : f32 to vector<32x1xf32>
    %262 = arith.addf %258, %261 : vector<32x1xf32>
    %263 = math.rsqrt %262 : vector<32x1xf32>
    %264 = vector.broadcast %263 : vector<32x1xf32> to vector<32x64xf32>
    %265 = arith.mulf %260, %264 : vector<32x64xf32>
    %266 = vector.broadcast %246 : vector<1x64xf32> to vector<32x64xf32>
    %267 = arith.mulf %265, %266 : vector<32x64xf32>
    %268 = vector.broadcast %247 : vector<1x64xf32> to vector<32x64xf32>
    %269 = arith.addf %267, %268 : vector<32x64xf32>
    %270 = vector.shape_cast %269 : vector<32x64xf32> to vector<16x128xf32>
    %c0_83 = arith.constant 0 : index
    %c0_84 = arith.constant 0 : index
    %271 = vector.load %arg6[%c0_83, %c0_84] : memref<16x128xf32, #tpu.memory_space<vmem>>, vector<16x128xf32>
    tpu.vector_store %arg6[%c0_83, %c0_84], %270 {strides = array<i32>} : memref<16x128xf32, #tpu.memory_space<vmem>>, vector<16x128xf32>,
    return
  }
  func.func @transform_0(%arg0: i32) -> (i32, i32) {
    %c0_i32 = arith.constant 0 : i32
    %c0_i32_0 = arith.constant 0 : i32
    return %arg0, %c0_i32 : i32, i32
  }
  func.func @transform_1(%arg0: i32) -> (i32, i32) {
    %c0_i32 = arith.constant 0 : i32
    %c0_i32_0 = arith.constant 0 : i32
    return %arg0, %c0_i32 : i32, i32
  }
  func.func @transform_2(%arg0: i32) -> (i32, i32) {
    %c0_i32 = arith.constant 0 : i32
    %c0_i32_0 = arith.constant 0 : i32
    %c0_i32_1 = arith.constant 0 : i32
    return %c0_i32, %c0_i32_0 : i32, i32
  }
  func.func @transform_3(%arg0: i32) -> (i32, i32) {
    %c0_i32 = arith.constant 0 : i32
    %c0_i32_0 = arith.constant 0 : i32
    %c0_i32_1 = arith.constant 0 : i32
    return %c0_i32, %c0_i32_0 : i32, i32
  }
  func.func @transform_4(%arg0: i32) -> (i32, i32) {
    %c0_i32 = arith.constant 0 : i32
    %c0_i32_0 = arith.constant 0 : i32
    %c0_i32_1 = arith.constant 0 : i32
    return %c0_i32, %c0_i32_0 : i32, i32
  }
  func.func @transform_5(%arg0: i32) -> (i32, i32) {
    %c0_i32 = arith.constant 0 : i32
    %c0_i32_0 = arith.constant 0 : i32
    return %arg0, %c0_i32 : i32, i32
  }
}

module attributes {stable_mosaic.version = 11 : i64} {
  func.func @decoder_layer_kernel(%arg0: i32, %arg1: memref<32x64xf32, #tpu.memory_space<vmem>>, %arg2: memref<64x64xf32, #tpu.memory_space<vmem>>, %arg3: memref<256x128xbf16, #tpu.memory_space<vmem>>, %arg4: memref<64x384xbf16, #tpu.memory_space<vmem>>, %arg5: memref<8x128xf32, #tpu.memory_space<vmem>>, %arg6: memref<32x64xf32, #tpu.memory_space<vmem>>) attributes {dimension_semantics = [#tpu.dimension_semantics<parallel>], iteration_bounds = array<i64: 1>, scalar_prefetch = 0 : i64, scratch_operands = 0 : i64, tpu.core_type = #tpu.core_type<tc>, window_params = [{transform_indices = @transform_0, window_bounds = array<i64: 32, 64>}, {transform_indices = @transform_1, window_bounds = array<i64: 64, 64>}, {pipeline_mode = #tpu.pipeline_mode<synchronous>, transform_indices = @transform_2, window_bounds = array<i64: 256, 128>}, {pipeline_mode = #tpu.pipeline_mode<synchronous>, transform_indices = @transform_3, window_bounds = array<i64: 64, 384>}, {pipeline_mode = #tpu.pipeline_mode<synchronous>, transform_indices = @transform_4, window_bounds = array<i64: 8, 128>}, {transform_indices = @transform_5, window_bounds = array<i64: 32, 64>}]} {
    %c0 = arith.constant 0 : index
    %c0_0 = arith.constant 0 : index
    %0 = vector.load %arg1[%c0, %c0_0] : memref<32x64xf32, #tpu.memory_space<vmem>>, vector<32x64xf32>
    %c0_1 = arith.constant 0 : index
    %c0_2 = arith.constant 0 : index
    %1 = vector.load %arg2[%c0_1, %c0_2] : memref<64x64xf32, #tpu.memory_space<vmem>>, vector<64x64xf32>
    %2 = arith.addf %0, %0 : vector<32x64xf32>
    %c3 = arith.constant 3 : index
    %c0_3 = arith.constant 0 : index
    %3 = vector.load %arg5[%c3, %c0_3] : memref<8x128xf32, #tpu.memory_space<vmem>>, vector<1x64xf32>
    %c3_4 = arith.constant 3 : index
    %c64 = arith.constant 64 : index
    %4 = vector.load %arg5[%c3_4, %c64] : memref<8x128xf32, #tpu.memory_space<vmem>>, vector<1x64xf32>
    %cst = arith.constant dense<0.000000e+00> : vector<32xf32>
    %5 = vector.multi_reduction <add>, %2, %cst [1] : vector<32x64xf32> to vector<32xf32>
    %6 = vector.shape_cast %5 : vector<32xf32> to vector<32x1xf32>
    %cst_5 = arith.constant 6.400000e+01 : f32
    %7 = vector.broadcast %cst_5 : f32 to vector<32x1xf32>
    %8 = arith.divf %6, %7 : vector<32x1xf32>
    %9 = vector.broadcast %8 : vector<32x1xf32> to vector<32x64xf32>
    %10 = arith.subf %2, %9 : vector<32x64xf32>
    %11 = arith.mulf %10, %10 : vector<32x64xf32>
    %cst_6 = arith.constant dense<0.000000e+00> : vector<32xf32>
    %12 = vector.multi_reduction <add>, %11, %cst_6 [1] : vector<32x64xf32> to vector<32xf32>
    %13 = vector.shape_cast %12 : vector<32xf32> to vector<32x1xf32>
    %cst_7 = arith.constant 6.400000e+01 : f32
    %14 = vector.broadcast %cst_7 : f32 to vector<32x1xf32>
    %15 = arith.divf %13, %14 : vector<32x1xf32>
    %16 = vector.broadcast %8 : vector<32x1xf32> to vector<32x64xf32>
    %17 = arith.subf %2, %16 : vector<32x64xf32>
    %cst_8 = arith.constant 9.99999974E-6 : f32
    %18 = vector.broadcast %cst_8 : f32 to vector<32x1xf32>
    %19 = arith.addf %15, %18 : vector<32x1xf32>
    %20 = math.rsqrt %19 : vector<32x1xf32>
    %21 = vector.broadcast %20 : vector<32x1xf32> to vector<32x64xf32>
    %22 = arith.mulf %17, %21 : vector<32x64xf32>
    %23 = vector.broadcast %3 : vector<1x64xf32> to vector<32x64xf32>
    %24 = arith.mulf %22, %23 : vector<32x64xf32>
    %25 = vector.broadcast %4 : vector<1x64xf32> to vector<32x64xf32>
    %26 = arith.addf %24, %25 : vector<32x64xf32>
    %27 = arith.truncf %26 : vector<32x64xf32> to vector<32x64xbf16>
    %c0_9 = arith.constant 0 : index
    %c0_10 = arith.constant 0 : index
    %28 = vector.load %arg3[%c0_9, %c0_10] : memref<256x128xbf16, #tpu.memory_space<vmem>>, vector<64x64xbf16>
    %cst_11 = arith.constant dense<0.000000e+00> : vector<32x64xf32>
    %29 = tpu.matmul %27, %28, %cst_11 {dimension_numbers = #tpu.dot_dimension_numbers<[1], [0], [0], [1], [0, 0, 1, 1], [], []>} : vector<32x64xbf16>, vector<64x64xbf16>, vector<32x64xf32> -> vector<32x64xf32>
    %c0_12 = arith.constant 0 : index
    %c0_13 = arith.constant 0 : index
    %30 = vector.load %arg5[%c0_12, %c0_13] : memref<8x128xf32, #tpu.memory_space<vmem>>, vector<1x64xf32>
    %31 = vector.broadcast %30 : vector<1x64xf32> to vector<32x64xf32>
    %32 = arith.addf %29, %31 : vector<32x64xf32>
    %33 = arith.truncf %32 : vector<32x64xf32> to vector<32x64xbf16>
    %34 = arith.truncf %1 : vector<64x64xf32> to vector<64x64xbf16>
    %c0_14 = arith.constant 0 : index
    %c0_15 = arith.constant 0 : index
    %35 = vector.load %arg4[%c0_14, %c0_15] : memref<64x384xbf16, #tpu.memory_space<vmem>>, vector<64x384xbf16>
    %cst_16 = arith.constant dense<0.000000e+00> : vector<64x384xf32>
    %36 = tpu.matmul %34, %35, %cst_16 {dimension_numbers = #tpu.dot_dimension_numbers<[1], [0], [0], [1], [0, 0, 1, 1], [], []>} : vector<64x64xbf16>, vector<64x384xbf16>, vector<64x384xf32> -> vector<64x384xf32>
    %37 = arith.truncf %36 : vector<64x384xf32> to vector<64x384xbf16>
    %38 = vector.extract_strided_slice %33 {offsets = [0, 0], sizes = [8, 64], strides = [1, 1]} : vector<32x64xbf16> to vector<8x64xbf16>
    %39 = vector.extract_strided_slice %37 {offsets = [0, 0], sizes = [16, 384], strides = [1, 1]} : vector<64x384xbf16> to vector<16x384xbf16>
    %40 = vector.extract_strided_slice %38 {offsets = [0, 0], sizes = [8, 16], strides = [1, 1]} : vector<8x64xbf16> to vector<8x16xbf16>
    %41 = vector.extract_strided_slice %39 {offsets = [0, 0], sizes = [16, 16], strides = [1, 1]} : vector<16x384xbf16> to vector<16x16xbf16>
    %cst_17 = arith.constant dense<0.000000e+00> : vector<8x16xf32>
    %42 = tpu.matmul %40, %41, %cst_17 {dimension_numbers = #tpu.dot_dimension_numbers<[1], [1], [0], [0], [0, 0, 1, 0], [], []>} : vector<8x16xbf16>, vector<16x16xbf16>, vector<8x16xf32> -> vector<8x16xf32>
    %43 = vector.extract_strided_slice %38 {offsets = [0, 16], sizes = [8, 16], strides = [1, 1]} : vector<8x64xbf16> to vector<8x16xbf16>
    %44 = vector.extract_strided_slice %39 {offsets = [0, 16], sizes = [16, 16], strides = [1, 1]} : vector<16x384xbf16> to vector<16x16xbf16>
    %cst_18 = arith.constant dense<0.000000e+00> : vector<8x16xf32>
    %45 = tpu.matmul %43, %44, %cst_18 {dimension_numbers = #tpu.dot_dimension_numbers<[1], [1], [0], [0], [0, 0, 1, 0], [], []>} : vector<8x16xbf16>, vector<16x16xbf16>, vector<8x16xf32> -> vector<8x16xf32>
    %46 = vector.extract_strided_slice %38 {offsets = [0, 32], sizes = [8, 16], strides = [1, 1]} : vector<8x64xbf16> to vector<8x16xbf16>
    %47 = vector.extract_strided_slice %39 {offsets = [0, 32], sizes = [16, 16], strides = [1, 1]} : vector<16x384xbf16> to vector<16x16xbf16>
    %cst_19 = arith.constant dense<0.000000e+00> : vector<8x16xf32>
    %48 = tpu.matmul %46, %47, %cst_19 {dimension_numbers = #tpu.dot_dimension_numbers<[1], [1], [0], [0], [0, 0, 1, 0], [], []>} : vector<8x16xbf16>, vector<16x16xbf16>, vector<8x16xf32> -> vector<8x16xf32>
    %49 = vector.extract_strided_slice %38 {offsets = [0, 48], sizes = [8, 16], strides = [1, 1]} : vector<8x64xbf16> to vector<8x16xbf16>
    %50 = vector.extract_strided_slice %39 {offsets = [0, 48], sizes = [16, 16], strides = [1, 1]} : vector<16x384xbf16> to vector<16x16xbf16>
    %cst_20 = arith.constant dense<0.000000e+00> : vector<8x16xf32>
    %51 = tpu.matmul %49, %50, %cst_20 {dimension_numbers = #tpu.dot_dimension_numbers<[1], [1], [0], [0], [0, 0, 1, 0], [], []>} : vector<8x16xbf16>, vector<16x16xbf16>, vector<8x16xf32> -> vector<8x16xf32>
    %52 = tpu.concatenate %42, %45, %48, %51 in 0 : vector<8x16xf32>, vector<8x16xf32>, vector<8x16xf32>, vector<8x16xf32> -> vector<32x16xf32>
    %cst_21 = arith.constant dense<0xFF800000> : vector<32xf32>
    %53 = vector.multi_reduction <maximumf>, %52, %cst_21 [1] : vector<32x16xf32> to vector<32xf32>
    %54 = vector.shape_cast %53 : vector<32xf32> to vector<32x1xf32>
    %55 = vector.broadcast %54 : vector<32x1xf32> to vector<32x16xf32>
    %56 = arith.subf %52, %55 : vector<32x16xf32>
    %57 = math.exp %56 : vector<32x16xf32>
    %cst_22 = arith.constant dense<0.000000e+00> : vector<32xf32>
    %58 = vector.multi_reduction <add>, %57, %cst_22 [1] : vector<32x16xf32> to vector<32xf32>
    %59 = vector.shape_cast %58 : vector<32xf32> to vector<32x1xf32>
    %60 = tpu.reciprocal %59 {approx = true} : vector<32x1xf32> -> vector<32x1xf32>
    %61 = vector.broadcast %60 : vector<32x1xf32> to vector<32x16xf32>
    %62 = arith.mulf %57, %61 : vector<32x16xf32>
    %63 = arith.truncf %62 : vector<32x16xf32> to vector<32x16xbf16>
    %64 = vector.extract_strided_slice %39 {offsets = [0, 64], sizes = [16, 64], strides = [1, 1]} : vector<16x384xbf16> to vector<16x64xbf16>
    %65 = vector.extract_strided_slice %63 {offsets = [0, 0], sizes = [8, 16], strides = [1, 1]} : vector<32x16xbf16> to vector<8x16xbf16>
    %cst_23 = arith.constant dense<0.000000e+00> : vector<8x64xf32>
    %66 = tpu.matmul %65, %64, %cst_23 {dimension_numbers = #tpu.dot_dimension_numbers<[1], [0], [0], [1], [0, 0, 1, 1], [], []>} : vector<8x16xbf16>, vector<16x64xbf16>, vector<8x64xf32> -> vector<8x64xf32>
    %67 = vector.extract_strided_slice %39 {offsets = [0, 128], sizes = [16, 64], strides = [1, 1]} : vector<16x384xbf16> to vector<16x64xbf16>
    %68 = vector.extract_strided_slice %63 {offsets = [8, 0], sizes = [8, 16], strides = [1, 1]} : vector<32x16xbf16> to vector<8x16xbf16>
    %cst_24 = arith.constant dense<0.000000e+00> : vector<8x64xf32>
    %69 = tpu.matmul %68, %67, %cst_24 {dimension_numbers = #tpu.dot_dimension_numbers<[1], [0], [0], [1], [0, 0, 1, 1], [], []>} : vector<8x16xbf16>, vector<16x64xbf16>, vector<8x64xf32> -> vector<8x64xf32>
    %70 = arith.addf %66, %69 : vector<8x64xf32>
    %71 = vector.extract_strided_slice %39 {offsets = [0, 192], sizes = [16, 64], strides = [1, 1]} : vector<16x384xbf16> to vector<16x64xbf16>
    %72 = vector.extract_strided_slice %63 {offsets = [16, 0], sizes = [8, 16], strides = [1, 1]} : vector<32x16xbf16> to vector<8x16xbf16>
    %cst_25 = arith.constant dense<0.000000e+00> : vector<8x64xf32>
    %73 = tpu.matmul %72, %71, %cst_25 {dimension_numbers = #tpu.dot_dimension_numbers<[1], [0], [0], [1], [0, 0, 1, 1], [], []>} : vector<8x16xbf16>, vector<16x64xbf16>, vector<8x64xf32> -> vector<8x64xf32>
    %74 = arith.addf %70, %73 : vector<8x64xf32>
    %75 = vector.extract_strided_slice %39 {offsets = [0, 256], sizes = [16, 64], strides = [1, 1]} : vector<16x384xbf16> to vector<16x64xbf16>
    %76 = vector.extract_strided_slice %63 {offsets = [24, 0], sizes = [8, 16], strides = [1, 1]} : vector<32x16xbf16> to vector<8x16xbf16>
    %cst_26 = arith.constant dense<0.000000e+00> : vector<8x64xf32>
    %77 = tpu.matmul %76, %75, %cst_26 {dimension_numbers = #tpu.dot_dimension_numbers<[1], [0], [0], [1], [0, 0, 1, 1], [], []>} : vector<8x16xbf16>, vector<16x64xbf16>, vector<8x64xf32> -> vector<8x64xf32>
    %78 = arith.addf %74, %77 : vector<8x64xf32>
    %79 = vector.extract_strided_slice %33 {offsets = [8, 0], sizes = [8, 64], strides = [1, 1]} : vector<32x64xbf16> to vector<8x64xbf16>
    %80 = vector.extract_strided_slice %37 {offsets = [16, 0], sizes = [16, 384], strides = [1, 1]} : vector<64x384xbf16> to vector<16x384xbf16>
    %81 = vector.extract_strided_slice %79 {offsets = [0, 0], sizes = [8, 16], strides = [1, 1]} : vector<8x64xbf16> to vector<8x16xbf16>
    %82 = vector.extract_strided_slice %80 {offsets = [0, 0], sizes = [16, 16], strides = [1, 1]} : vector<16x384xbf16> to vector<16x16xbf16>
    %cst_27 = arith.constant dense<0.000000e+00> : vector<8x16xf32>
    %83 = tpu.matmul %81, %82, %cst_27 {dimension_numbers = #tpu.dot_dimension_numbers<[1], [1], [0], [0], [0, 0, 1, 0], [], []>} : vector<8x16xbf16>, vector<16x16xbf16>, vector<8x16xf32> -> vector<8x16xf32>
    %84 = vector.extract_strided_slice %79 {offsets = [0, 16], sizes = [8, 16], strides = [1, 1]} : vector<8x64xbf16> to vector<8x16xbf16>
    %85 = vector.extract_strided_slice %80 {offsets = [0, 16], sizes = [16, 16], strides = [1, 1]} : vector<16x384xbf16> to vector<16x16xbf16>
    %cst_28 = arith.constant dense<0.000000e+00> : vector<8x16xf32>
    %86 = tpu.matmul %84, %85, %cst_28 {dimension_numbers = #tpu.dot_dimension_numbers<[1], [1], [0], [0], [0, 0, 1, 0], [], []>} : vector<8x16xbf16>, vector<16x16xbf16>, vector<8x16xf32> -> vector<8x16xf32>
    %87 = vector.extract_strided_slice %79 {offsets = [0, 32], sizes = [8, 16], strides = [1, 1]} : vector<8x64xbf16> to vector<8x16xbf16>
    %88 = vector.extract_strided_slice %80 {offsets = [0, 32], sizes = [16, 16], strides = [1, 1]} : vector<16x384xbf16> to vector<16x16xbf16>
    %cst_29 = arith.constant dense<0.000000e+00> : vector<8x16xf32>
    %89 = tpu.matmul %87, %88, %cst_29 {dimension_numbers = #tpu.dot_dimension_numbers<[1], [1], [0], [0], [0, 0, 1, 0], [], []>} : vector<8x16xbf16>, vector<16x16xbf16>, vector<8x16xf32> -> vector<8x16xf32>
    %90 = vector.extract_strided_slice %79 {offsets = [0, 48], sizes = [8, 16], strides = [1, 1]} : vector<8x64xbf16> to vector<8x16xbf16>
    %91 = vector.extract_strided_slice %80 {offsets = [0, 48], sizes = [16, 16], strides = [1, 1]} : vector<16x384xbf16> to vector<16x16xbf16>
    %cst_30 = arith.constant dense<0.000000e+00> : vector<8x16xf32>
    %92 = tpu.matmul %90, %91, %cst_30 {dimension_numbers = #tpu.dot_dimension_numbers<[1], [1], [0], [0], [0, 0, 1, 0], [], []>} : vector<8x16xbf16>, vector<16x16xbf16>, vector<8x16xf32> -> vector<8x16xf32>
    %93 = tpu.concatenate %83, %86, %89, %92 in 0 : vector<8x16xf32>, vector<8x16xf32>, vector<8x16xf32>, vector<8x16xf32> -> vector<32x16xf32>
    %cst_31 = arith.constant dense<0xFF800000> : vector<32xf32>
    %94 = vector.multi_reduction <maximumf>, %93, %cst_31 [1] : vector<32x16xf32> to vector<32xf32>
    %95 = vector.shape_cast %94 : vector<32xf32> to vector<32x1xf32>
    %96 = vector.broadcast %95 : vector<32x1xf32> to vector<32x16xf32>
    %97 = arith.subf %93, %96 : vector<32x16xf32>
    %98 = math.exp %97 : vector<32x16xf32>
    %cst_32 = arith.constant dense<0.000000e+00> : vector<32xf32>
    %99 = vector.multi_reduction <add>, %98, %cst_32 [1] : vector<32x16xf32> to vector<32xf32>
    %100 = vector.shape_cast %99 : vector<32xf32> to vector<32x1xf32>
    %101 = tpu.reciprocal %100 {approx = true} : vector<32x1xf32> -> vector<32x1xf32>
    %102 = vector.broadcast %101 : vector<32x1xf32> to vector<32x16xf32>
    %103 = arith.mulf %98, %102 : vector<32x16xf32>
    %104 = arith.truncf %103 : vector<32x16xf32> to vector<32x16xbf16>
    %105 = vector.extract_strided_slice %80 {offsets = [0, 64], sizes = [16, 64], strides = [1, 1]} : vector<16x384xbf16> to vector<16x64xbf16>
    %106 = vector.extract_strided_slice %104 {offsets = [0, 0], sizes = [8, 16], strides = [1, 1]} : vector<32x16xbf16> to vector<8x16xbf16>
    %cst_33 = arith.constant dense<0.000000e+00> : vector<8x64xf32>
    %107 = tpu.matmul %106, %105, %cst_33 {dimension_numbers = #tpu.dot_dimension_numbers<[1], [0], [0], [1], [0, 0, 1, 1], [], []>} : vector<8x16xbf16>, vector<16x64xbf16>, vector<8x64xf32> -> vector<8x64xf32>
    %108 = vector.extract_strided_slice %80 {offsets = [0, 128], sizes = [16, 64], strides = [1, 1]} : vector<16x384xbf16> to vector<16x64xbf16>
    %109 = vector.extract_strided_slice %104 {offsets = [8, 0], sizes = [8, 16], strides = [1, 1]} : vector<32x16xbf16> to vector<8x16xbf16>
    %cst_34 = arith.constant dense<0.000000e+00> : vector<8x64xf32>
    %110 = tpu.matmul %109, %108, %cst_34 {dimension_numbers = #tpu.dot_dimension_numbers<[1], [0], [0], [1], [0, 0, 1, 1], [], []>} : vector<8x16xbf16>, vector<16x64xbf16>, vector<8x64xf32> -> vector<8x64xf32>
    %111 = arith.addf %107, %110 : vector<8x64xf32>
    %112 = vector.extract_strided_slice %80 {offsets = [0, 192], sizes = [16, 64], strides = [1, 1]} : vector<16x384xbf16> to vector<16x64xbf16>
    %113 = vector.extract_strided_slice %104 {offsets = [16, 0], sizes = [8, 16], strides = [1, 1]} : vector<32x16xbf16> to vector<8x16xbf16>
    %cst_35 = arith.constant dense<0.000000e+00> : vector<8x64xf32>
    %114 = tpu.matmul %113, %112, %cst_35 {dimension_numbers = #tpu.dot_dimension_numbers<[1], [0], [0], [1], [0, 0, 1, 1], [], []>} : vector<8x16xbf16>, vector<16x64xbf16>, vector<8x64xf32> -> vector<8x64xf32>
    %115 = arith.addf %111, %114 : vector<8x64xf32>
    %116 = vector.extract_strided_slice %80 {offsets = [0, 256], sizes = [16, 64], strides = [1, 1]} : vector<16x384xbf16> to vector<16x64xbf16>
    %117 = vector.extract_strided_slice %104 {offsets = [24, 0], sizes = [8, 16], strides = [1, 1]} : vector<32x16xbf16> to vector<8x16xbf16>
    %cst_36 = arith.constant dense<0.000000e+00> : vector<8x64xf32>
    %118 = tpu.matmul %117, %116, %cst_36 {dimension_numbers = #tpu.dot_dimension_numbers<[1], [0], [0], [1], [0, 0, 1, 1], [], []>} : vector<8x16xbf16>, vector<16x64xbf16>, vector<8x64xf32> -> vector<8x64xf32>
    %119 = arith.addf %115, %118 : vector<8x64xf32>
    %120 = vector.extract_strided_slice %33 {offsets = [16, 0], sizes = [8, 64], strides = [1, 1]} : vector<32x64xbf16> to vector<8x64xbf16>
    %121 = vector.extract_strided_slice %37 {offsets = [32, 0], sizes = [16, 384], strides = [1, 1]} : vector<64x384xbf16> to vector<16x384xbf16>
    %122 = vector.extract_strided_slice %120 {offsets = [0, 0], sizes = [8, 16], strides = [1, 1]} : vector<8x64xbf16> to vector<8x16xbf16>
    %123 = vector.extract_strided_slice %121 {offsets = [0, 0], sizes = [16, 16], strides = [1, 1]} : vector<16x384xbf16> to vector<16x16xbf16>
    %cst_37 = arith.constant dense<0.000000e+00> : vector<8x16xf32>
    %124 = tpu.matmul %122, %123, %cst_37 {dimension_numbers = #tpu.dot_dimension_numbers<[1], [1], [0], [0], [0, 0, 1, 0], [], []>} : vector<8x16xbf16>, vector<16x16xbf16>, vector<8x16xf32> -> vector<8x16xf32>
    %125 = vector.extract_strided_slice %120 {offsets = [0, 16], sizes = [8, 16], strides = [1, 1]} : vector<8x64xbf16> to vector<8x16xbf16>
    %126 = vector.extract_strided_slice %121 {offsets = [0, 16], sizes = [16, 16], strides = [1, 1]} : vector<16x384xbf16> to vector<16x16xbf16>
    %cst_38 = arith.constant dense<0.000000e+00> : vector<8x16xf32>
    %127 = tpu.matmul %125, %126, %cst_38 {dimension_numbers = #tpu.dot_dimension_numbers<[1], [1], [0], [0], [0, 0, 1, 0], [], []>} : vector<8x16xbf16>, vector<16x16xbf16>, vector<8x16xf32> -> vector<8x16xf32>
    %128 = vector.extract_strided_slice %120 {offsets = [0, 32], sizes = [8, 16], strides = [1, 1]} : vector<8x64xbf16> to vector<8x16xbf16>
    %129 = vector.extract_strided_slice %121 {offsets = [0, 32], sizes = [16, 16], strides = [1, 1]} : vector<16x384xbf16> to vector<16x16xbf16>
    %cst_39 = arith.constant dense<0.000000e+00> : vector<8x16xf32>
    %130 = tpu.matmul %128, %129, %cst_39 {dimension_numbers = #tpu.dot_dimension_numbers<[1], [1], [0], [0], [0, 0, 1, 0], [], []>} : vector<8x16xbf16>, vector<16x16xbf16>, vector<8x16xf32> -> vector<8x16xf32>
    %131 = vector.extract_strided_slice %120 {offsets = [0, 48], sizes = [8, 16], strides = [1, 1]} : vector<8x64xbf16> to vector<8x16xbf16>
    %132 = vector.extract_strided_slice %121 {offsets = [0, 48], sizes = [16, 16], strides = [1, 1]} : vector<16x384xbf16> to vector<16x16xbf16>
    %cst_40 = arith.constant dense<0.000000e+00> : vector<8x16xf32>
    %133 = tpu.matmul %131, %132, %cst_40 {dimension_numbers = #tpu.dot_dimension_numbers<[1], [1], [0], [0], [0, 0, 1, 0], [], []>} : vector<8x16xbf16>, vector<16x16xbf16>, vector<8x16xf32> -> vector<8x16xf32>
    %134 = tpu.concatenate %124, %127, %130, %133 in 0 : vector<8x16xf32>, vector<8x16xf32>, vector<8x16xf32>, vector<8x16xf32> -> vector<32x16xf32>
    %cst_41 = arith.constant dense<0xFF800000> : vector<32xf32>
    %135 = vector.multi_reduction <maximumf>, %134, %cst_41 [1] : vector<32x16xf32> to vector<32xf32>
    %136 = vector.shape_cast %135 : vector<32xf32> to vector<32x1xf32>
    %137 = vector.broadcast %136 : vector<32x1xf32> to vector<32x16xf32>
    %138 = arith.subf %134, %137 : vector<32x16xf32>
    %139 = math.exp %138 : vector<32x16xf32>
    %cst_42 = arith.constant dense<0.000000e+00> : vector<32xf32>
    %140 = vector.multi_reduction <add>, %139, %cst_42 [1] : vector<32x16xf32> to vector<32xf32>
    %141 = vector.shape_cast %140 : vector<32xf32> to vector<32x1xf32>
    %142 = tpu.reciprocal %141 {approx = true} : vector<32x1xf32> -> vector<32x1xf32>
    %143 = vector.broadcast %142 : vector<32x1xf32> to vector<32x16xf32>
    %144 = arith.mulf %139, %143 : vector<32x16xf32>
    %145 = arith.truncf %144 : vector<32x16xf32> to vector<32x16xbf16>
    %146 = vector.extract_strided_slice %121 {offsets = [0, 64], sizes = [16, 64], strides = [1, 1]} : vector<16x384xbf16> to vector<16x64xbf16>
    %147 = vector.extract_strided_slice %145 {offsets = [0, 0], sizes = [8, 16], strides = [1, 1]} : vector<32x16xbf16> to vector<8x16xbf16>
    %cst_43 = arith.constant dense<0.000000e+00> : vector<8x64xf32>
    %148 = tpu.matmul %147, %146, %cst_43 {dimension_numbers = #tpu.dot_dimension_numbers<[1], [0], [0], [1], [0, 0, 1, 1], [], []>} : vector<8x16xbf16>, vector<16x64xbf16>, vector<8x64xf32> -> vector<8x64xf32>
    %149 = vector.extract_strided_slice %121 {offsets = [0, 128], sizes = [16, 64], strides = [1, 1]} : vector<16x384xbf16> to vector<16x64xbf16>
    %150 = vector.extract_strided_slice %145 {offsets = [8, 0], sizes = [8, 16], strides = [1, 1]} : vector<32x16xbf16> to vector<8x16xbf16>
    %cst_44 = arith.constant dense<0.000000e+00> : vector<8x64xf32>
    %151 = tpu.matmul %150, %149, %cst_44 {dimension_numbers = #tpu.dot_dimension_numbers<[1], [0], [0], [1], [0, 0, 1, 1], [], []>} : vector<8x16xbf16>, vector<16x64xbf16>, vector<8x64xf32> -> vector<8x64xf32>
    %152 = arith.addf %148, %151 : vector<8x64xf32>
    %153 = vector.extract_strided_slice %121 {offsets = [0, 192], sizes = [16, 64], strides = [1, 1]} : vector<16x384xbf16> to vector<16x64xbf16>
    %154 = vector.extract_strided_slice %145 {offsets = [16, 0], sizes = [8, 16], strides = [1, 1]} : vector<32x16xbf16> to vector<8x16xbf16>
    %cst_45 = arith.constant dense<0.000000e+00> : vector<8x64xf32>
    %155 = tpu.matmul %154, %153, %cst_45 {dimension_numbers = #tpu.dot_dimension_numbers<[1], [0], [0], [1], [0, 0, 1, 1], [], []>} : vector<8x16xbf16>, vector<16x64xbf16>, vector<8x64xf32> -> vector<8x64xf32>
    %156 = arith.addf %152, %155 : vector<8x64xf32>
    %157 = vector.extract_strided_slice %121 {offsets = [0, 256], sizes = [16, 64], strides = [1, 1]} : vector<16x384xbf16> to vector<16x64xbf16>
    %158 = vector.extract_strided_slice %145 {offsets = [24, 0], sizes = [8, 16], strides = [1, 1]} : vector<32x16xbf16> to vector<8x16xbf16>
    %cst_46 = arith.constant dense<0.000000e+00> : vector<8x64xf32>
    %159 = tpu.matmul %158, %157, %cst_46 {dimension_numbers = #tpu.dot_dimension_numbers<[1], [0], [0], [1], [0, 0, 1, 1], [], []>} : vector<8x16xbf16>, vector<16x64xbf16>, vector<8x64xf32> -> vector<8x64xf32>
    %160 = arith.addf %156, %159 : vector<8x64xf32>
    %161 = vector.extract_strided_slice %33 {offsets = [24, 0], sizes = [8, 64], strides = [1, 1]} : vector<32x64xbf16> to vector<8x64xbf16>
    %162 = vector.extract_strided_slice %37 {offsets = [48, 0], sizes = [16, 384], strides = [1, 1]} : vector<64x384xbf16> to vector<16x384xbf16>
    %163 = vector.extract_strided_slice %161 {offsets = [0, 0], sizes = [8, 16], strides = [1, 1]} : vector<8x64xbf16> to vector<8x16xbf16>
    %164 = vector.extract_strided_slice %162 {offsets = [0, 0], sizes = [16, 16], strides = [1, 1]} : vector<16x384xbf16> to vector<16x16xbf16>
    %cst_47 = arith.constant dense<0.000000e+00> : vector<8x16xf32>
    %165 = tpu.matmul %163, %164, %cst_47 {dimension_numbers = #tpu.dot_dimension_numbers<[1], [1], [0], [0], [0, 0, 1, 0], [], []>} : vector<8x16xbf16>, vector<16x16xbf16>, vector<8x16xf32> -> vector<8x16xf32>
    %166 = vector.extract_strided_slice %161 {offsets = [0, 16], sizes = [8, 16], strides = [1, 1]} : vector<8x64xbf16> to vector<8x16xbf16>
    %167 = vector.extract_strided_slice %162 {offsets = [0, 16], sizes = [16, 16], strides = [1, 1]} : vector<16x384xbf16> to vector<16x16xbf16>
    %cst_48 = arith.constant dense<0.000000e+00> : vector<8x16xf32>
    %168 = tpu.matmul %166, %167, %cst_48 {dimension_numbers = #tpu.dot_dimension_numbers<[1], [1], [0], [0], [0, 0, 1, 0], [], []>} : vector<8x16xbf16>, vector<16x16xbf16>, vector<8x16xf32> -> vector<8x16xf32>
    %169 = vector.extract_strided_slice %161 {offsets = [0, 32], sizes = [8, 16], strides = [1, 1]} : vector<8x64xbf16> to vector<8x16xbf16>
    %170 = vector.extract_strided_slice %162 {offsets = [0, 32], sizes = [16, 16], strides = [1, 1]} : vector<16x384xbf16> to vector<16x16xbf16>
    %cst_49 = arith.constant dense<0.000000e+00> : vector<8x16xf32>
    %171 = tpu.matmul %169, %170, %cst_49 {dimension_numbers = #tpu.dot_dimension_numbers<[1], [1], [0], [0], [0, 0, 1, 0], [], []>} : vector<8x16xbf16>, vector<16x16xbf16>, vector<8x16xf32> -> vector<8x16xf32>
    %172 = vector.extract_strided_slice %161 {offsets = [0, 48], sizes = [8, 16], strides = [1, 1]} : vector<8x64xbf16> to vector<8x16xbf16>
    %173 = vector.extract_strided_slice %162 {offsets = [0, 48], sizes = [16, 16], strides = [1, 1]} : vector<16x384xbf16> to vector<16x16xbf16>
    %cst_50 = arith.constant dense<0.000000e+00> : vector<8x16xf32>
    %174 = tpu.matmul %172, %173, %cst_50 {dimension_numbers = #tpu.dot_dimension_numbers<[1], [1], [0], [0], [0, 0, 1, 0], [], []>} : vector<8x16xbf16>, vector<16x16xbf16>, vector<8x16xf32> -> vector<8x16xf32>
    %175 = tpu.concatenate %165, %168, %171, %174 in 0 : vector<8x16xf32>, vector<8x16xf32>, vector<8x16xf32>, vector<8x16xf32> -> vector<32x16xf32>
    %cst_51 = arith.constant dense<0xFF800000> : vector<32xf32>
    %176 = vector.multi_reduction <maximumf>, %175, %cst_51 [1] : vector<32x16xf32> to vector<32xf32>
    %177 = vector.shape_cast %176 : vector<32xf32> to vector<32x1xf32>
    %178 = vector.broadcast %177 : vector<32x1xf32> to vector<32x16xf32>
    %179 = arith.subf %175, %178 : vector<32x16xf32>
    %180 = math.exp %179 : vector<32x16xf32>
    %cst_52 = arith.constant dense<0.000000e+00> : vector<32xf32>
    %181 = vector.multi_reduction <add>, %180, %cst_52 [1] : vector<32x16xf32> to vector<32xf32>
    %182 = vector.shape_cast %181 : vector<32xf32> to vector<32x1xf32>
    %183 = tpu.reciprocal %182 {approx = true} : vector<32x1xf32> -> vector<32x1xf32>
    %184 = vector.broadcast %183 : vector<32x1xf32> to vector<32x16xf32>
    %185 = arith.mulf %180, %184 : vector<32x16xf32>
    %186 = arith.truncf %185 : vector<32x16xf32> to vector<32x16xbf16>
    %187 = vector.extract_strided_slice %162 {offsets = [0, 64], sizes = [16, 64], strides = [1, 1]} : vector<16x384xbf16> to vector<16x64xbf16>
    %188 = vector.extract_strided_slice %186 {offsets = [0, 0], sizes = [8, 16], strides = [1, 1]} : vector<32x16xbf16> to vector<8x16xbf16>
    %cst_53 = arith.constant dense<0.000000e+00> : vector<8x64xf32>
    %189 = tpu.matmul %188, %187, %cst_53 {dimension_numbers = #tpu.dot_dimension_numbers<[1], [0], [0], [1], [0, 0, 1, 1], [], []>} : vector<8x16xbf16>, vector<16x64xbf16>, vector<8x64xf32> -> vector<8x64xf32>
    %190 = vector.extract_strided_slice %162 {offsets = [0, 128], sizes = [16, 64], strides = [1, 1]} : vector<16x384xbf16> to vector<16x64xbf16>
    %191 = vector.extract_strided_slice %186 {offsets = [8, 0], sizes = [8, 16], strides = [1, 1]} : vector<32x16xbf16> to vector<8x16xbf16>
    %cst_54 = arith.constant dense<0.000000e+00> : vector<8x64xf32>
    %192 = tpu.matmul %191, %190, %cst_54 {dimension_numbers = #tpu.dot_dimension_numbers<[1], [0], [0], [1], [0, 0, 1, 1], [], []>} : vector<8x16xbf16>, vector<16x64xbf16>, vector<8x64xf32> -> vector<8x64xf32>
    %193 = arith.addf %189, %192 : vector<8x64xf32>
    %194 = vector.extract_strided_slice %162 {offsets = [0, 192], sizes = [16, 64], strides = [1, 1]} : vector<16x384xbf16> to vector<16x64xbf16>
    %195 = vector.extract_strided_slice %186 {offsets = [16, 0], sizes = [8, 16], strides = [1, 1]} : vector<32x16xbf16> to vector<8x16xbf16>
    %cst_55 = arith.constant dense<0.000000e+00> : vector<8x64xf32>
    %196 = tpu.matmul %195, %194, %cst_55 {dimension_numbers = #tpu.dot_dimension_numbers<[1], [0], [0], [1], [0, 0, 1, 1], [], []>} : vector<8x16xbf16>, vector<16x64xbf16>, vector<8x64xf32> -> vector<8x64xf32>
    %197 = arith.addf %193, %196 : vector<8x64xf32>
    %198 = vector.extract_strided_slice %162 {offsets = [0, 256], sizes = [16, 64], strides = [1, 1]} : vector<16x384xbf16> to vector<16x64xbf16>
    %199 = vector.extract_strided_slice %186 {offsets = [24, 0], sizes = [8, 16], strides = [1, 1]} : vector<32x16xbf16> to vector<8x16xbf16>
    %cst_56 = arith.constant dense<0.000000e+00> : vector<8x64xf32>
    %200 = tpu.matmul %199, %198, %cst_56 {dimension_numbers = #tpu.dot_dimension_numbers<[1], [0], [0], [1], [0, 0, 1, 1], [], []>} : vector<8x16xbf16>, vector<16x64xbf16>, vector<8x64xf32> -> vector<8x64xf32>
    %201 = arith.addf %197, %200 : vector<8x64xf32>
    %202 = tpu.concatenate %78, %119, %160, %201 in 0 : vector<8x64xf32>, vector<8x64xf32>, vector<8x64xf32>, vector<8x64xf32> -> vector<32x64xf32>
    %c1 = arith.constant 1 : index
    %c0_57 = arith.constant 0 : index
    %203 = vector.load %arg5[%c1, %c0_57] : memref<8x128xf32, #tpu.memory_space<vmem>>, vector<1x64xf32>
    %204 = vector.broadcast %203 : vector<1x64xf32> to vector<32x64xf32>
    %205 = arith.addf %202, %204 : vector<32x64xf32>
    %206 = arith.addf %26, %205 : vector<32x64xf32>
    %c4 = arith.constant 4 : index
    %c0_58 = arith.constant 0 : index
    %207 = vector.load %arg5[%c4, %c0_58] : memref<8x128xf32, #tpu.memory_space<vmem>>, vector<1x64xf32>
    %c4_59 = arith.constant 4 : index
    %c64_60 = arith.constant 64 : index
    %208 = vector.load %arg5[%c4_59, %c64_60] : memref<8x128xf32, #tpu.memory_space<vmem>>, vector<1x64xf32>
    %cst_61 = arith.constant dense<0.000000e+00> : vector<32xf32>
    %209 = vector.multi_reduction <add>, %206, %cst_61 [1] : vector<32x64xf32> to vector<32xf32>
    %210 = vector.shape_cast %209 : vector<32xf32> to vector<32x1xf32>
    %cst_62 = arith.constant 6.400000e+01 : f32
    %211 = vector.broadcast %cst_62 : f32 to vector<32x1xf32>
    %212 = arith.divf %210, %211 : vector<32x1xf32>
    %213 = vector.broadcast %212 : vector<32x1xf32> to vector<32x64xf32>
    %214 = arith.subf %206, %213 : vector<32x64xf32>
    %215 = arith.mulf %214, %214 : vector<32x64xf32>
    %cst_63 = arith.constant dense<0.000000e+00> : vector<32xf32>
    %216 = vector.multi_reduction <add>, %215, %cst_63 [1] : vector<32x64xf32> to vector<32xf32>
    %217 = vector.shape_cast %216 : vector<32xf32> to vector<32x1xf32>
    %cst_64 = arith.constant 6.400000e+01 : f32
    %218 = vector.broadcast %cst_64 : f32 to vector<32x1xf32>
    %219 = arith.divf %217, %218 : vector<32x1xf32>
    %220 = vector.broadcast %212 : vector<32x1xf32> to vector<32x64xf32>
    %221 = arith.subf %206, %220 : vector<32x64xf32>
    %cst_65 = arith.constant 9.99999974E-6 : f32
    %222 = vector.broadcast %cst_65 : f32 to vector<32x1xf32>
    %223 = arith.addf %219, %222 : vector<32x1xf32>
    %224 = math.rsqrt %223 : vector<32x1xf32>
    %225 = vector.broadcast %224 : vector<32x1xf32> to vector<32x64xf32>
    %226 = arith.mulf %221, %225 : vector<32x64xf32>
    %227 = vector.broadcast %207 : vector<1x64xf32> to vector<32x64xf32>
    %228 = arith.mulf %226, %227 : vector<32x64xf32>
    %229 = vector.broadcast %208 : vector<1x64xf32> to vector<32x64xf32>
    %230 = arith.addf %228, %229 : vector<32x64xf32>
    %231 = arith.truncf %230 : vector<32x64xf32> to vector<32x64xbf16>
    %c64_66 = arith.constant 64 : index
    %c0_67 = arith.constant 0 : index
    %232 = vector.load %arg3[%c64_66, %c0_67] : memref<256x128xbf16, #tpu.memory_space<vmem>>, vector<64x128xbf16>
    %cst_68 = arith.constant dense<0.000000e+00> : vector<32x128xf32>
    %233 = tpu.matmul %231, %232, %cst_68 {dimension_numbers = #tpu.dot_dimension_numbers<[1], [0], [0], [1], [0, 0, 1, 1], [], []>} : vector<32x64xbf16>, vector<64x128xbf16>, vector<32x128xf32> -> vector<32x128xf32>
    %c2 = arith.constant 2 : index
    %c0_69 = arith.constant 0 : index
    %234 = vector.load %arg5[%c2, %c0_69] : memref<8x128xf32, #tpu.memory_space<vmem>>, vector<1x128xf32>
    %235 = vector.broadcast %234 : vector<1x128xf32> to vector<32x128xf32>
    %236 = arith.addf %233, %235 : vector<32x128xf32>
    %cst_70 = arith.constant 0.000000e+00 : f32
    %237 = vector.broadcast %cst_70 : f32 to vector<32x128xf32>
    %238 = arith.maximumf %236, %237 : vector<32x128xf32>
    %239 = arith.truncf %238 : vector<32x128xf32> to vector<32x128xbf16>
    %c128 = arith.constant 128 : index
    %c0_71 = arith.constant 0 : index
    %240 = vector.load %arg3[%c128, %c0_71] : memref<256x128xbf16, #tpu.memory_space<vmem>>, vector<128x64xbf16>
    %cst_72 = arith.constant dense<0.000000e+00> : vector<32x64xf32>
    %241 = tpu.matmul %239, %240, %cst_72 {dimension_numbers = #tpu.dot_dimension_numbers<[1], [0], [0], [1], [0, 0, 1, 1], [], []>} : vector<32x128xbf16>, vector<128x64xbf16>, vector<32x64xf32> -> vector<32x64xf32>
    %c1_73 = arith.constant 1 : index
    %c64_74 = arith.constant 64 : index
    %242 = vector.load %arg5[%c1_73, %c64_74] : memref<8x128xf32, #tpu.memory_space<vmem>>, vector<1x64xf32>
    %243 = vector.broadcast %242 : vector<1x64xf32> to vector<32x64xf32>
    %244 = arith.addf %241, %243 : vector<32x64xf32>
    %245 = arith.addf %230, %244 : vector<32x64xf32>
    %c5 = arith.constant 5 : index
    %c0_75 = arith.constant 0 : index
    %246 = vector.load %arg5[%c5, %c0_75] : memref<8x128xf32, #tpu.memory_space<vmem>>, vector<1x64xf32>
    %c5_76 = arith.constant 5 : index
    %c64_77 = arith.constant 64 : index
    %247 = vector.load %arg5[%c5_76, %c64_77] : memref<8x128xf32, #tpu.memory_space<vmem>>, vector<1x64xf32>
    %cst_78 = arith.constant dense<0.000000e+00> : vector<32xf32>
    %248 = vector.multi_reduction <add>, %245, %cst_78 [1] : vector<32x64xf32> to vector<32xf32>
    %249 = vector.shape_cast %248 : vector<32xf32> to vector<32x1xf32>
    %cst_79 = arith.constant 6.400000e+01 : f32
    %250 = vector.broadcast %cst_79 : f32 to vector<32x1xf32>
    %251 = arith.divf %249, %250 : vector<32x1xf32>
    %252 = vector.broadcast %251 : vector<32x1xf32> to vector<32x64xf32>
    %253 = arith.subf %245, %252 : vector<32x64xf32>
    %254 = arith.mulf %253, %253 : vector<32x64xf32>
    %cst_80 = arith.constant dense<0.000000e+00> : vector<32xf32>
    %255 = vector.multi_reduction <add>, %254, %cst_80 [1] : vector<32x64xf32> to vector<32xf32>
    %256 = vector.shape_cast %255 : vector<32xf32> to vector<32x1xf32>
    %cst_81 = arith.constant 6.400000e+01 : f32
    %257 = vector.broadcast %cst_81 : f32 to vector<32x1xf32>
    %258 = arith.divf %256, %257 : vector<32x1xf32>
    %259 = vector.broadcast %251 : vector<32x1xf32> to vector<32x64xf32>
    %260 = arith.subf %245, %259 : vector<32x64xf32>
    %cst_82 = arith.constant 9.99999974E-6 : f32
    %261 = vector.broadcast %cst_82 : f32 to vector<32x1xf32>
    %262 = arith.addf %258, %261 : vector<32x1xf32>
    %263 = math.rsqrt %262 : vector<32x1xf32>
    %264 = vector.broadcast %263 : vector<32x1xf32> to vector<32x64xf32>
    %265 = arith.mulf %260, %264 : vector<32x64xf32>
    %266 = vector.broadcast %246 : vector<1x64xf32> to vector<32x64xf32>
    %267 = arith.mulf %265, %266 : vector<32x64xf32>
    %268 = vector.broadcast %247 : vector<1x64xf32> to vector<32x64xf32>
    %269 = arith.addf %267, %268 : vector<32x64xf32>
    %c0_83 = arith.constant 0 : index
    %c0_84 = arith.constant 0 : index
    %270 = vector.load %arg6[%c0_83, %c0_84] : memref<32x64xf32, #tpu.memory_space<vmem>>, vector<32x64xf32>
    tpu.vector_store %arg6[%c0_83, %c0_84], %269 {strides = array<i32>} : memref<32x64xf32, #tpu.memory_space<vmem>>, vector<32x64xf32>,
    return
  }
  func.func @transform_0(%arg0: i32) -> (i32, i32) {
    %c0_i32 = arith.constant 0 : i32
    %c0_i32_0 = arith.constant 0 : i32
    return %arg0, %c0_i32 : i32, i32
  }
  func.func @transform_1(%arg0: i32) -> (i32, i32) {
    %c0_i32 = arith.constant 0 : i32
    %c0_i32_0 = arith.constant 0 : i32
    return %arg0, %c0_i32 : i32, i32
  }
  func.func @transform_2(%arg0: i32) -> (i32, i32) {
    %c0_i32 = arith.constant 0 : i32
    %c0_i32_0 = arith.constant 0 : i32
    %c0_i32_1 = arith.constant 0 : i32
    return %c0_i32, %c0_i32_0 : i32, i32
  }
  func.func @transform_3(%arg0: i32) -> (i32, i32) {
    %c0_i32 = arith.constant 0 : i32
    %c0_i32_0 = arith.constant 0 : i32
    %c0_i32_1 = arith.constant 0 : i32
    return %c0_i32, %c0_i32_0 : i32, i32
  }
  func.func @transform_4(%arg0: i32) -> (i32, i32) {
    %c0_i32 = arith.constant 0 : i32
    %c0_i32_0 = arith.constant 0 : i32
    %c0_i32_1 = arith.constant 0 : i32
    return %c0_i32, %c0_i32_0 : i32, i32
  }
  func.func @transform_5(%arg0: i32) -> (i32, i32) {
    %c0_i32 = arith.constant 0 : i32
    %c0_i32_0 = arith.constant 0 : i32
    return %arg0, %c0_i32 : i32, i32
  }
}

</mosaic_0001>

<llo_original>
// kernel: tpu_custom_call.1
$region0: #{tpu_custom_call.1}
  #allocation0 [shape = 'u32[]', space=smem, size = 0x4, offset = 0x4, fixed_abs, tag = 'smem constant byte address 0x4 - core index']
  #allocation1 [shape = 'u32[144,128]{1,0:T(1,128)}', space=vmem, size = 0x12000, scoped, tag = 'internal scratch']
  %s0 = inlined_call_operand.hbm [shape: f32[32,64], index: 0, kind: input, shape index: {}]
  %s1 = inlined_call_operand.hbm [shape: f32[64,64], index: 1, kind: input, shape index: {}]
  %s2 = inlined_call_operand.hbm [shape: bf16[256,128], index: 2, kind: input, shape index: {}]
  %s3 = inlined_call_operand.hbm [shape: bf16[64,384], index: 3, kind: input, shape index: {}]
  %s4 = inlined_call_operand.hbm [shape: f32[8,128], index: 4, kind: input, shape index: {}]
  %s5 = inlined_call_operand.hbm [shape: f32[32,64], index: 5, kind: output, shape index: {}]
  %s6 = sld [smem:[#allocation0]]
  $region50: #{tpu_custom_call.1} parent=0
    _
  %s8 = ssub.s32 1, %s6
  %s9 = scalar_select 0, %s8, %s6
  $region1: #{tpu_custom_call.1} parent=0
    #allocation2 [shape = 'u8[16384]{0}', space=vmem, size = 0x4000, scoped, tag = 'input window, operand 0, single buffered']
    #allocation3 [shape = 's32[1]{0}', space=sflag, size = 0x4, scoped, tag = 'scoped memory for tpu_custom_call.1']
    #allocation4 [shape = 's32[1]{0}', space=sflag, size = 0x4, scoped, tag = 'scoped memory for tpu_custom_call.1']
    #allocation5 [shape = 'u8[32768]{0}', space=vmem, size = 0x8000, scoped, tag = 'input window, operand 1, single buffered']
    #allocation6 [shape = 's32[1]{0}', space=sflag, size = 0x4, scoped, tag = 'scoped memory for tpu_custom_call.1']
    #allocation7 [shape = 'u8[65536]{0}', space=vmem, size = 0x10000, scoped, tag = 'input window, operand 2, single buffered']
    #allocation8 [shape = 'u8[49152]{0}', space=vmem, size = 0xc000, scoped, tag = 'input window, operand 3, single buffered']
    #allocation9 [shape = 's32[1]{0}', space=sflag, size = 0x4, scoped, tag = 'scoped memory for tpu_custom_call.1']
    #allocation10 [shape = 'u8[4096]{0}', space=vmem, size = 0x1000, scoped, tag = 'input window, operand 4, single buffered']
    #allocation11 [shape = 'u8[16384]{0}', space=vmem, size = 0x4000, scoped, tag = 'output window, operand 0, single buffered']
    %10 = vsyncpa [#allocation3], 0
    %11 = vsyncpa [#allocation6], 0
    %12 = vsyncpa [#allocation9], 0
    %13 = vsyncpa [#allocation4], 0
    // Predicated region
    $region2: #{tpu_custom_call.1} parent=1 // pred_check
      _
    $region3: #{tpu_custom_call.1} parent=1 // pred_check_branch
      %15 = sbr.rel (0) target = $region5
    $region4: #{tpu_custom_call.1} parent=1 // pred_region
      %s17 = ssub.s32 512, 512
      %18 = vsyncadd [#allocation3], %s17
      %s19 = sshll.u32 [#allocation2], 4
      %s20 = int_to_ptr.vmem [resolvable:$true] %s19
      %25 = dma.hbm_to_vmem [thread:$0]  %s0, 512, %s20, [#allocation3], 128, 128, 8
    $region5: #{tpu_custom_call.1} parent=1 // pred_fallthru
      _
    // Predicated region
    $region6: #{tpu_custom_call.1} parent=1 // pred_check
      _
    $region7: #{tpu_custom_call.1} parent=1 // pred_check_branch
      %27 = sbr.rel (0) target = $region9
    $region8: #{tpu_custom_call.1} parent=1 // pred_region
      %s29 = ssub.s32 1024, 1024
      %30 = vsyncadd [#allocation6], %s29
      %s31 = sshll.u32 [#allocation5], 4
      %s32 = int_to_ptr.vmem [resolvable:$true] %s31
      %37 = dma.hbm_to_vmem [thread:$0]  %s1, 1024, %s32, [#allocation6], 128, 128, 8
    $region9: #{tpu_custom_call.1} parent=1 // pred_fallthru
      _
    // Predicated region
    $region10: #{tpu_custom_call.1} parent=1 // pred_check
      _
    $region11: #{tpu_custom_call.1} parent=1 // pred_check_branch
      %39 = sbr.rel (0) target = $region13
    $region12: #{tpu_custom_call.1} parent=1 // pred_region
      %s41 = ssub.s32 2048, 2048
      %42 = vsyncadd [#allocation6], %s41
      %s43 = sshll.u32 [#allocation7], 4
      %s44 = int_to_ptr.vmem [resolvable:$true] %s43
      %49 = dma.hbm_to_vmem [thread:$0]  %s2, 2048, %s44, [#allocation6], 64, 64, 4
    $region13: #{tpu_custom_call.1} parent=1 // pred_fallthru
      _
    // Predicated region
    $region14: #{tpu_custom_call.1} parent=1 // pred_check
      _
    $region15: #{tpu_custom_call.1} parent=1 // pred_check_branch
      %51 = sbr.rel (0) target = $region17
    $region16: #{tpu_custom_call.1} parent=1 // pred_region
      %s53 = ssub.s32 1536, 1536
      %54 = vsyncadd [#allocation9], %s53
      %s55 = sshll.u32 [#allocation8], 4
      %s56 = int_to_ptr.vmem [resolvable:$true] %s55
      %61 = dma.hbm_to_vmem [thread:$0]  %s3, 1536, %s56, [#allocation9], 192, 192, 12
    $region17: #{tpu_custom_call.1} parent=1 // pred_fallthru
      _
    // Predicated region
    $region18: #{tpu_custom_call.1} parent=1 // pred_check
      _
    $region19: #{tpu_custom_call.1} parent=1 // pred_check_branch
      %63 = sbr.rel (0) target = $region21
    $region20: #{tpu_custom_call.1} parent=1 // pred_region
      %s65 = ssub.s32 128, 128
      %66 = vsyncadd [#allocation9], %s65
      %s68 = sshll.u32 [#allocation10], 4
      %s69 = int_to_ptr.vmem [resolvable:$true] %s68
      %71 = dma.hbm_to_vmem [thread:$0]  %s4, 128, %s69, [#allocation9]
    $region21: #{tpu_custom_call.1} parent=1 // pred_fallthru
      _
    // Predicated region
    $region22: #{tpu_custom_call.1} parent=1 // pred_check
      _
    $region23: #{tpu_custom_call.1} parent=1 // pred_check_branch
      %73 = sbr.rel (0) target = $region25
    $region24: #{tpu_custom_call.1} parent=1 // pred_region
      %74 = dma.done [#allocation3], 512
    $region25: #{tpu_custom_call.1} parent=1 // pred_fallthru
      _
    // Predicated region
    $region26: #{tpu_custom_call.1} parent=1 // pred_check
      _
    $region27: #{tpu_custom_call.1} parent=1 // pred_check_branch
      %76 = sbr.rel (0) target = $region29
    $region28: #{tpu_custom_call.1} parent=1 // pred_region
      %77 = dma.done [#allocation6], 1024
    $region29: #{tpu_custom_call.1} parent=1 // pred_fallthru
      _
    // Predicated region
    $region30: #{tpu_custom_call.1} parent=1 // pred_check
      _
    $region31: #{tpu_custom_call.1} parent=1 // pred_check_branch
      %79 = sbr.rel (0) target = $region33
    $region32: #{tpu_custom_call.1} parent=1 // pred_region
      %80 = dma.done [#allocation6], 2048
    $region33: #{tpu_custom_call.1} parent=1 // pred_fallthru
      _
    // Predicated region
    $region34: #{tpu_custom_call.1} parent=1 // pred_check
      _
    $region35: #{tpu_custom_call.1} parent=1 // pred_check_branch
      %82 = sbr.rel (0) target = $region37
    $region36: #{tpu_custom_call.1} parent=1 // pred_region
      %83 = dma.done [#allocation9], 1536
    $region37: #{tpu_custom_call.1} parent=1 // pred_fallthru
      _
    // Predicated region
    $region38: #{tpu_custom_call.1} parent=1 // pred_check
      _
    $region39: #{tpu_custom_call.1} parent=1 // pred_check_branch
      %85 = sbr.rel (0) target = $region41
    $region40: #{tpu_custom_call.1} parent=1 // pred_region
      %86 = dma.done [#allocation9], 128
    $region41: #{tpu_custom_call.1} parent=1 // pred_fallthru
      _
    %v88 = vld [vmem:[#allocation2] sm:$0xff]
    %v89 = vld [vmem:[#allocation2 + $0x8] sm:$0xff]
    %v90 = vld [vmem:[#allocation2 + $0x10] sm:$0xff]
    %v91 = vld [vmem:[#allocation2 + $0x18] sm:$0xff]
    %v92 = vld [vmem:[#allocation5] sm:$0xff]
    %v93 = vld [vmem:[#allocation5 + $0x8] sm:$0xff]
    %v94 = vld [vmem:[#allocation5 + $0x10] sm:$0xff]
    %v95 = vld [vmem:[#allocation5 + $0x18] sm:$0xff]
    %v96 = vld [vmem:[#allocation5 + $0x20] sm:$0xff]
    %v97 = vld [vmem:[#allocation5 + $0x28] sm:$0xff]
    %v98 = vld [vmem:[#allocation5 + $0x30] sm:$0xff]
    %v99 = vld [vmem:[#allocation5 + $0x38] sm:$0xff]
    %v100 = vadd.f32 %v88, %v88
    %v101 = vadd.f32 %v89, %v89
    %v102 = vadd.f32 %v90, %v90
    %v103 = vadd.f32 %v91, %v91
    %v104 = vld [vmem:[#allocation10 + $0x3] sm:$0x1]
    %vm105 = vcmask 523264
    %v106 = vsel %vm105, %v100, 0.0
    %107 = vadd.xlane.f32.xlu0 %v106
    %v108 = vpop.xlane.xlu0 %107
    %v109 = vsel %vm105, %v101, 0.0
    %110 = vadd.xlane.f32.xlu0 %v109
    %v111 = vpop.xlane.xlu0 %110
    %v112 = vsel %vm105, %v102, 0.0
    %113 = vadd.xlane.f32.xlu0 %v112
    %v114 = vpop.xlane.xlu0 %113
    %v115 = vsel %vm105, %v103, 0.0
    %116 = vadd.xlane.f32.xlu0 %v115
    %v117 = vpop.xlane.xlu0 %116
    %v118 = vrcp.pop 64.0
    %v119 = vmul.f32 %v108, %v118
    %v120 = vmul.f32 %v111, %v118
    %v121 = vmul.f32 %v114, %v118
    %v122 = vmul.f32 %v117, %v118
    %v123 = vsub.f32 %v100, %v119
    %v124 = vsub.f32 %v101, %v120
    %v125 = vsub.f32 %v102, %v121
    %v126 = vsub.f32 %v103, %v122
    %v127 = vmul.f32 %v123, %v123
    %v128 = vmul.f32 %v124, %v124
    %v129 = vmul.f32 %v125, %v125
    %v130 = vmul.f32 %v126, %v126
    %v131 = vsel %vm105, %v127, 0.0
    %132 = vadd.xlane.f32.xlu0 %v131
    %v133 = vpop.xlane.xlu0 %132
    %v134 = vsel %vm105, %v128, 0.0
    %135 = vadd.xlane.f32.xlu0 %v134
    %v136 = vpop.xlane.xlu0 %135
    %v137 = vsel %vm105, %v129, 0.0
    %138 = vadd.xlane.f32.xlu0 %v137
    %v139 = vpop.xlane.xlu0 %138
    %v140 = vsel %vm105, %v130, 0.0
    %141 = vadd.xlane.f32.xlu0 %v140
    %v142 = vpop.xlane.xlu0 %141
    %v143 = vmul.f32 %v133, %v118
    %v144 = vmul.f32 %v136, %v118
    %v145 = vmul.f32 %v139, %v118
    %v146 = vmul.f32 %v142, %v118
    %v147 = vadd.f32 %v143, 1e-05
    %v148 = vadd.f32 %v144, 1e-05
    %v149 = vadd.f32 %v145, 1e-05
    %v150 = vadd.f32 %v146, 1e-05
    %v151 = vrsqrt.pop %v147
    %v152 = vrsqrt.pop %v148
    %v153 = vrsqrt.pop %v149
    %v154 = vrsqrt.pop %v150
    %v155 = vmul.f32 %v123, %v151
    %v156 = vmul.f32 %v124, %v152
    %v157 = vmul.f32 %v125, %v153
    %v158 = vmul.f32 %v126, %v154
    %v159 = vlaneseq
    %v160 = vshrl.u32 %v159, 7
    %v161 = vsub.s32 0, %v160
    %v162 = vrot.slane %v104, %v161
    %v163 = vmul.f32 %v155, %v162
    %v164 = vmul.f32 %v156, %v162
    %v165 = vmul.f32 %v157, %v162
    %v166 = vmul.f32 %v158, %v162
    %168 = vrot.lane.b32.xlu0 %v162, 64
    %v169 = vpop.permute.xlu0 %168
    %v171 = vadd.f32 %v163, %v169
    %v172 = vadd.f32 %v164, %v169
    %v173 = vadd.f32 %v165, %v169
    %v174 = vadd.f32 %v166, %v169
    %v175 = vpack.c.bf16 %v172, %v171
    %v176 = vpack.c.bf16 %v174, %v173
    %v177 = vld [vmem:[#allocation7] sm:$0xf]
    %v178 = vld [vmem:[#allocation7 + $0x4] sm:$0xf]
    %v179 = vld [vmem:[#allocation7 + $0x8] sm:$0xf]
    %v180 = vld [vmem:[#allocation7 + $0xc] sm:$0xf]
    %v181 = vld [vmem:[#allocation7 + $0x10] sm:$0xf]
    %v182 = vld [vmem:[#allocation7 + $0x14] sm:$0xf]
    %v183 = vld [vmem:[#allocation7 + $0x18] sm:$0xf]
    %v184 = vld [vmem:[#allocation7 + $0x1c] sm:$0xf]
    %v185 = vld [vmem:[#allocation10] sm:$0x1]
    %v186 = vlaneseq
    %v187 = vshrl.u32 %v186, 7
    %v188 = vsub.s32 0, %v187
    %v189 = vrot.slane %v185, %v188
    %v198 = vunpack.c.l.b16 %v177
    %v199 = vunpack.c.l.b16 %v178
    %v200 = vunpack.c.l.b16 %v179
    %v201 = vunpack.c.l.b16 %v180
    %v202 = vunpack.c.l.b16 %v181
    %v203 = vunpack.c.l.b16 %v182
    %v204 = vunpack.c.l.b16 %v183
    %v205 = vunpack.c.l.b16 %v184
    %v206 = vpack.c.b16 %v199, %v198
    %v207 = vpack.c.b16 %v201, %v200
    %v208 = vpack.c.b16 %v203, %v202
    %v209 = vpack.c.b16 %v205, %v204
    %v215 = vsel %vm105, %v175, 0
    %v218 = vsel %vm105, %v176, 0
    %220 = vmatprep.subr.bf16.mxu0 0
    %221 = vmatpush1.bf16.msra.mxu0 0
    %222 = vmatprep.subr.bf16.mxu0 0
    %223 = vmatpush1.bf16.msra.mxu0 0
    %224 = vmatprep.subr.bf16.mxu0 0
    %225 = vmatpush1.bf16.msra.mxu0 0
    %226 = vmatprep.subr.bf16.mxu0 0
    %227 = vmatpush1.bf16.msra.mxu0 0
    %228 = vmatprep.subr.bf16.mxu0 0
    %229 = vmatpush1.bf16.msra.mxu0 %v209
    %230 = vmatprep.subr.bf16.mxu0 0
    %231 = vmatpush1.bf16.msra.mxu0 %v208
    %232 = vmatprep.subr.bf16.mxu0 0
    %233 = vmatpush1.bf16.msra.mxu0 %v207
    %234 = vmatprep.subr.bf16.mxu0 0
    %235 = vmatpush1.bf16.msra.mxu0 %v206
    %236 = vmatprep.subr.bf16.mxu0 0
    %237 = vmatpush2.bf16.msra.mxu0 0
    %238 = vmatprep.subr.bf16.mxu0 0
    %239 = vmatpush2.bf16.msra.mxu0 0
    %240 = vmatprep.subr.bf16.mxu0 0
    %241 = vmatpush2.bf16.msra.mxu0 0
    %242 = vmatprep.subr.bf16.mxu0 0
    %243 = vmatpush2.bf16.msra.mxu0 0
    %244 = vmatprep.subr.bf16.mxu0 0
    %245 = vmatpush2.bf16.msra.mxu0 0
    %246 = vmatprep.subr.bf16.mxu0 0
    %247 = vmatpush2.bf16.msra.mxu0 0
    %248 = vmatprep.subr.bf16.mxu0 0
    %249 = vmatpush2.bf16.msra.mxu0 0
    %250 = vmatprep.subr.bf16.mxu0 0
    %251 = vmatpush2.bf16.msra.mxu0 0
    %252 = vmatprep.mubr.bf16.mxu0 0
    %253 = vmatmul.mubr.bf16.gmra.mxu0 %v215
    %v254 = vpop.f32.mrf.mxu0
    %v255 = vadd.f32 %v189, %v254
    %v256 = vpop.f32.mrf.mxu0
    %v257 = vpop.f32.mrf.mxu0
    %v258 = vadd.f32 %v189, %v257
    %v259 = vpop.f32.mrf.mxu0
    %260 = vmatprep.mubr.bf16.mxu0 0
    %261 = vmatmul.mubr.bf16.gmra.mxu0 %v218
    %v262 = vpop.f32.mrf.mxu0
    %v263 = vadd.f32 %v189, %v262
    %v264 = vpop.f32.mrf.mxu0
    %v265 = vpop.f32.mrf.mxu0
    %v266 = vadd.f32 %v189, %v265
    %v267 = vpop.f32.mrf.mxu0
    %268 = vdwg.mxu0
    %v269 = vpack.c.bf16 %v258, %v255
    %v270 = vpack.c.bf16 %v266, %v263
    %v271 = vpack.c.bf16 %v93, %v92
    %v272 = vpack.c.bf16 %v95, %v94
    %v273 = vpack.c.bf16 %v97, %v96
    %v274 = vpack.c.bf16 %v99, %v98
    %v275 = vld [vmem:[#allocation8] sm:$0xff]
    %v276 = vld [vmem:[#allocation8 + $0x8] sm:$0xf]
    %v277 = vld [vmem:[#allocation8 + $0xc] sm:$0xff]
    %v278 = vld [vmem:[#allocation8 + $0x14] sm:$0xf]
    %v279 = vld [vmem:[#allocation8 + $0x18] sm:$0xff]
    %v280 = vld [vmem:[#allocation8 + $0x20] sm:$0xf]
    %v281 = vld [vmem:[#allocation8 + $0x24] sm:$0xff]
    %v282 = vld [vmem:[#allocation8 + $0x2c] sm:$0xf]
    %v283 = vld [vmem:[#allocation8 + $0x30] sm:$0xff]
    %v284 = vld [vmem:[#allocation8 + $0x38] sm:$0xf]
    %v285 = vld [vmem:[#allocation8 + $0x3c] sm:$0xff]
    %v286 = vld [vmem:[#allocation8 + $0x44] sm:$0xf]
    %v287 = vld [vmem:[#allocation8 + $0x48] sm:$0xff]
    %v288 = vld [vmem:[#allocation8 + $0x50] sm:$0xf]
    %v289 = vld [vmem:[#allocation8 + $0x54] sm:$0xff]
    %v290 = vld [vmem:[#allocation8 + $0x5c] sm:$0xf]
    %v307 = vunpack.c.l.b16 %v275
    %v308 = vunpack.c.h.b16 %v275
    %v309 = vunpack.c.l.b16 %v276
    %v310 = vunpack.c.l.b16 %v277
    %v311 = vunpack.c.h.b16 %v277
    %v312 = vunpack.c.l.b16 %v278
    %v313 = vunpack.c.l.b16 %v279
    %v314 = vunpack.c.h.b16 %v279
    %v315 = vunpack.c.l.b16 %v280
    %v316 = vunpack.c.l.b16 %v281
    %v317 = vunpack.c.h.b16 %v281
    %v318 = vunpack.c.l.b16 %v282
    %v319 = vunpack.c.l.b16 %v283
    %v320 = vunpack.c.h.b16 %v283
    %v321 = vunpack.c.l.b16 %v284
    %v322 = vunpack.c.l.b16 %v285
    %v323 = vunpack.c.h.b16 %v285
    %v324 = vunpack.c.l.b16 %v286
    %v325 = vunpack.c.l.b16 %v287
    %v326 = vunpack.c.h.b16 %v287
    %v327 = vunpack.c.l.b16 %v288
    %v328 = vunpack.c.l.b16 %v289
    %v329 = vunpack.c.h.b16 %v289
    %v330 = vunpack.c.l.b16 %v290
    %v331 = vpack.c.b16 %v310, %v307
    %v332 = vpack.c.b16 %v311, %v308
    %v333 = vpack.c.b16 %v312, %v309
    %v334 = vpack.c.b16 %v316, %v313
    %v335 = vpack.c.b16 %v317, %v314
    %v336 = vpack.c.b16 %v318, %v315
    %v337 = vpack.c.b16 %v322, %v319
    %v338 = vpack.c.b16 %v323, %v320
    %v339 = vpack.c.b16 %v324, %v321
    %v340 = vpack.c.b16 %v328, %v325
    %v341 = vpack.c.b16 %v329, %v326
    %v342 = vpack.c.b16 %v330, %v327
    %v356 = vsel %vm105, %v271, 0
    %v359 = vsel %vm105, %v272, 0
    %v362 = vsel %vm105, %v273, 0
    %v365 = vsel %vm105, %v274, 0
    %367 = vmatprep.subr.bf16.mxu0 0
    %368 = vmatpush1.bf16.msra.mxu0 0
    %369 = vmatprep.subr.bf16.mxu0 0
    %370 = vmatpush1.bf16.msra.mxu0 0
    %371 = vmatprep.subr.bf16.mxu0 0
    %372 = vmatpush1.bf16.msra.mxu0 0
    %373 = vmatprep.subr.bf16.mxu0 0
    %374 = vmatpush1.bf16.msra.mxu0 0
    %375 = vmatprep.subr.bf16.mxu0 %v341
    %376 = vmatpush1.bf16.msra.mxu0 %v340
    %377 = vmatprep.subr.bf16.mxu0 %v338
    %378 = vmatpush1.bf16.msra.mxu0 %v337
    %379 = vmatprep.subr.bf16.mxu0 %v335
    %380 = vmatpush1.bf16.msra.mxu0 %v334
    %381 = vmatprep.subr.bf16.mxu0 %v332
    %382 = vmatpush1.bf16.msra.mxu0 %v331
    %383 = vmatprep.subr.bf16.mxu0 0
    %384 = vmatpush2.bf16.msra.mxu0 0
    %385 = vmatprep.subr.bf16.mxu0 0
    %386 = vmatpush2.bf16.msra.mxu0 0
    %387 = vmatprep.subr.bf16.mxu0 0
    %388 = vmatpush2.bf16.msra.mxu0 0
    %389 = vmatprep.subr.bf16.mxu0 0
    %390 = vmatpush2.bf16.msra.mxu0 0
    %391 = vmatprep.subr.bf16.mxu0 0
    %392 = vmatpush2.bf16.msra.mxu0 0
    %393 = vmatprep.subr.bf16.mxu0 0
    %394 = vmatpush2.bf16.msra.mxu0 0
    %395 = vmatprep.subr.bf16.mxu0 0
    %396 = vmatpush2.bf16.msra.mxu0 0
    %397 = vmatprep.subr.bf16.mxu0 0
    %398 = vmatpush2.bf16.msra.mxu0 0
    %399 = vmatprep.mubr.bf16.mxu0 0
    %400 = vmatmul.mubr.bf16.gmra.mxu0 %v356
    %v401 = vpop.f32.mrf.mxu0
    %v402 = vadd.f32 0.0, %v401
    %v403 = vpop.f32.mrf.mxu0
    %v404 = vadd.f32 0.0, %v403
    %v405 = vpop.f32.mrf.mxu0
    %v406 = vadd.f32 0.0, %v405
    %v407 = vpop.f32.mrf.mxu0
    %v408 = vadd.f32 0.0, %v407
    %409 = vmatprep.mubr.bf16.mxu0 0
    %410 = vmatmul.mubr.bf16.gmra.mxu0 %v359
    %v411 = vpop.f32.mrf.mxu0
    %v412 = vadd.f32 0.0, %v411
    %v413 = vpop.f32.mrf.mxu0
    %v414 = vadd.f32 0.0, %v413
    %v415 = vpop.f32.mrf.mxu0
    %v416 = vadd.f32 0.0, %v415
    %v417 = vpop.f32.mrf.mxu0
    %v418 = vadd.f32 0.0, %v417
    %419 = vmatprep.mubr.bf16.mxu0 0
    %420 = vmatmul.mubr.bf16.gmra.mxu0 %v362
    %v421 = vpop.f32.mrf.mxu0
    %v422 = vadd.f32 0.0, %v421
    %v423 = vpop.f32.mrf.mxu0
    %v424 = vadd.f32 0.0, %v423
    %v425 = vpop.f32.mrf.mxu0
    %v426 = vadd.f32 0.0, %v425
    %v427 = vpop.f32.mrf.mxu0
    %v428 = vadd.f32 0.0, %v427
    %429 = vmatprep.mubr.bf16.mxu0 0
    %430 = vmatmul.mubr.bf16.gmra.mxu0 %v365
    %v431 = vpop.f32.mrf.mxu0
    %v432 = vadd.f32 0.0, %v431
    %v433 = vpop.f32.mrf.mxu0
    %v434 = vadd.f32 0.0, %v433
    %v435 = vpop.f32.mrf.mxu0
    %v436 = vadd.f32 0.0, %v435
    %v437 = vpop.f32.mrf.mxu0
    %v438 = vadd.f32 0.0, %v437
    %439 = vdwg.mxu0
    %440 = vmatprep.subr.bf16.mxu0 0
    %441 = vmatpush1.bf16.msra.mxu0 0
    %442 = vmatprep.subr.bf16.mxu0 0
    %443 = vmatpush1.bf16.msra.mxu0 0
    %444 = vmatprep.subr.bf16.mxu0 0
    %445 = vmatpush1.bf16.msra.mxu0 0
    %446 = vmatprep.subr.bf16.mxu0 0
    %447 = vmatpush1.bf16.msra.mxu0 0
    %448 = vmatprep.subr.bf16.mxu0 0
    %449 = vmatpush1.bf16.msra.mxu0 %v342
    %450 = vmatprep.subr.bf16.mxu0 0
    %451 = vmatpush1.bf16.msra.mxu0 %v339
    %452 = vmatprep.subr.bf16.mxu0 0
    %453 = vmatpush1.bf16.msra.mxu0 %v336
    %454 = vmatprep.subr.bf16.mxu0 0
    %455 = vmatpush1.bf16.msra.mxu0 %v333
    %456 = vmatprep.subr.bf16.mxu0 0
    %457 = vmatpush2.bf16.msra.mxu0 0
    %458 = vmatprep.subr.bf16.mxu0 0
    %459 = vmatpush2.bf16.msra.mxu0 0
    %460 = vmatprep.subr.bf16.mxu0 0
    %461 = vmatpush2.bf16.msra.mxu0 0
    %462 = vmatprep.subr.bf16.mxu0 0
    %463 = vmatpush2.bf16.msra.mxu0 0
    %464 = vmatprep.subr.bf16.mxu0 0
    %465 = vmatpush2.bf16.msra.mxu0 0
    %466 = vmatprep.subr.bf16.mxu0 0
    %467 = vmatpush2.bf16.msra.mxu0 0
    %468 = vmatprep.subr.bf16.mxu0 0
    %469 = vmatpush2.bf16.msra.mxu0 0
    %470 = vmatprep.subr.bf16.mxu0 0
    %471 = vmatpush2.bf16.msra.mxu0 0
    %472 = vmatprep.mubr.bf16.mxu0 0
    %473 = vmatmul.mubr.bf16.gmra.mxu0 %v356
    %v474 = vpop.f32.mrf.mxu0
    %v475 = vadd.f32 0.0, %v474
    %v476 = vpop.f32.mrf.mxu0
    %v477 = vpop.f32.mrf.mxu0
    %v478 = vadd.f32 0.0, %v477
    %v479 = vpop.f32.mrf.mxu0
    %480 = vmatprep.mubr.bf16.mxu0 0
    %481 = vmatmul.mubr.bf16.gmra.mxu0 %v359
    %v482 = vpop.f32.mrf.mxu0
    %v483 = vadd.f32 0.0, %v482
    %v484 = vpop.f32.mrf.mxu0
    %v485 = vpop.f32.mrf.mxu0
    %v486 = vadd.f32 0.0, %v485
    %v487 = vpop.f32.mrf.mxu0
    %488 = vmatprep.mubr.bf16.mxu0 0
    %489 = vmatmul.mubr.bf16.gmra.mxu0 %v362
    %v490 = vpop.f32.mrf.mxu0
    %v491 = vadd.f32 0.0, %v490
    %v492 = vpop.f32.mrf.mxu0
    %v493 = vpop.f32.mrf.mxu0
    %v494 = vadd.f32 0.0, %v493
    %v495 = vpop.f32.mrf.mxu0
    %496 = vmatprep.mubr.bf16.mxu0 0
    %497 = vmatmul.mubr.bf16.gmra.mxu0 %v365
    %v498 = vpop.f32.mrf.mxu0
    %v499 = vadd.f32 0.0, %v498
    %v500 = vpop.f32.mrf.mxu0
    %v501 = vpop.f32.mrf.mxu0
    %v502 = vadd.f32 0.0, %v501
    %v503 = vpop.f32.mrf.mxu0
    %504 = vdwg.mxu0
    %v505 = vpack.c.bf16 %v406, %v402
    %v506 = vpack.c.bf16 %v408, %v404
    %v507 = vpack.c.bf16 %v478, %v475
    %v508 = vpack.c.bf16 %v416, %v412
    %v509 = vpack.c.bf16 %v418, %v414
    %v510 = vpack.c.bf16 %v486, %v483
    %v511 = vpack.c.bf16 %v426, %v422
    %v512 = vpack.c.bf16 %v428, %v424
    %v513 = vpack.c.bf16 %v494, %v491
    %v514 = vpack.c.bf16 %v436, %v432
    %v515 = vpack.c.bf16 %v438, %v434
    %v516 = vpack.c.bf16 %v502, %v499
    %vm517 = vcmask 130048
    %v519 = vsel %vm517, %v269, 0
    %v522 = vsel %vm517, %v505, 0
    %524 = vmatprep.subr.bf16.mxu0 0
    %525 = vmatpush1.bf16.xpose.msra.mxu0 0
    %526 = vmatprep.subr.bf16.mxu0 0
    %527 = vmatpush1.bf16.xpose.msra.mxu0 0
    %528 = vmatprep.subr.bf16.mxu0 0
    %529 = vmatpush1.bf16.xpose.msra.mxu0 0
    %530 = vmatprep.subr.bf16.mxu0 0
    %531 = vmatpush1.bf16.xpose.msra.mxu0 0
    %532 = vmatprep.subr.bf16.mxu0 0
    %533 = vmatpush1.bf16.xpose.msra.mxu0 0
    %534 = vmatprep.subr.bf16.mxu0 0
    %535 = vmatpush1.bf16.xpose.msra.mxu0 0
    %536 = vmatprep.subr.bf16.mxu0 0
    %537 = vmatpush1.bf16.xpose.msra.mxu0 0
    %538 = vmatprep.subr.bf16.mxu0 0
    %539 = vmatpush1.bf16.xpose.msra.mxu0 %v522
    %540 = vmatprep.subr.bf16.mxu0 0
    %541 = vmatpush2.bf16.xpose.msra.mxu0 0
    %542 = vmatprep.subr.bf16.mxu0 0
    %543 = vmatpush2.bf16.xpose.msra.mxu0 0
    %544 = vmatprep.subr.bf16.mxu0 0
    %545 = vmatpush2.bf16.xpose.msra.mxu0 0
    %546 = vmatprep.subr.bf16.mxu0 0
    %547 = vmatpush2.bf16.xpose.msra.mxu0 0
    %548 = vmatprep.subr.bf16.mxu0 0
    %549 = vmatpush2.bf16.xpose.msra.mxu0 0
    %550 = vmatprep.subr.bf16.mxu0 0
    %551 = vmatpush2.bf16.xpose.msra.mxu0 0
    %552 = vmatprep.subr.bf16.mxu0 0
    %553 = vmatpush2.bf16.xpose.msra.mxu0 0
    %554 = vmatprep.subr.bf16.mxu0 0
    %555 = vmatpush2.bf16.xpose.msra.mxu0 0
    %556 = vmatprep.mubr.bf16.mxu0 0
    %557 = vmatmul.mubr.bf16.gmra.mxu0 %v519
    %v558 = vpop.f32.mrf.mxu0
    %v559 = vadd.f32 0.0, %v558
    %v560 = vpop.f32.mrf.mxu0
    %v561 = vpop.f32.mrf.mxu0
    %v562 = vpop.f32.mrf.mxu0
    %563 = vdwg.mxu0
    %565 = vrot.lane.b32.xlu0 %v269, 112
    %v566 = vpop.permute.xlu0 %565
    %568 = vrot.lane.b32.xlu0 %v505, 112
    %v569 = vpop.permute.xlu0 %568
    %v571 = vsel %vm517, %v566, 0
    %v574 = vsel %vm517, %v569, 0
    %576 = vmatprep.subr.bf16.mxu0 0
    %577 = vmatpush1.bf16.xpose.msra.mxu0 0
    %578 = vmatprep.subr.bf16.mxu0 0
    %579 = vmatpush1.bf16.xpose.msra.mxu0 0
    %580 = vmatprep.subr.bf16.mxu0 0
    %581 = vmatpush1.bf16.xpose.msra.mxu0 0
    %582 = vmatprep.subr.bf16.mxu0 0
    %583 = vmatpush1.bf16.xpose.msra.mxu0 0
    %584 = vmatprep.subr.bf16.mxu0 0
    %585 = vmatpush1.bf16.xpose.msra.mxu0 0
    %586 = vmatprep.subr.bf16.mxu0 0
    %587 = vmatpush1.bf16.xpose.msra.mxu0 0
    %588 = vmatprep.subr.bf16.mxu0 0
    %589 = vmatpush1.bf16.xpose.msra.mxu0 0
    %590 = vmatprep.subr.bf16.mxu0 0
    %591 = vmatpush1.bf16.xpose.msra.mxu0 %v574
    %592 = vmatprep.subr.bf16.mxu0 0
    %593 = vmatpush2.bf16.xpose.msra.mxu0 0
    %594 = vmatprep.subr.bf16.mxu0 0
    %595 = vmatpush2.bf16.xpose.msra.mxu0 0
    %596 = vmatprep.subr.bf16.mxu0 0
    %597 = vmatpush2.bf16.xpose.msra.mxu0 0
    %598 = vmatprep.subr.bf16.mxu0 0
    %599 = vmatpush2.bf16.xpose.msra.mxu0 0
    %600 = vmatprep.subr.bf16.mxu0 0
    %601 = vmatpush2.bf16.xpose.msra.mxu0 0
    %602 = vmatprep.subr.bf16.mxu0 0
    %603 = vmatpush2.bf16.xpose.msra.mxu0 0
    %604 = vmatprep.subr.bf16.mxu0 0
    %605 = vmatpush2.bf16.xpose.msra.mxu0 0
    %606 = vmatprep.subr.bf16.mxu0 0
    %607 = vmatpush2.bf16.xpose.msra.mxu0 0
    %608 = vmatprep.mubr.bf16.mxu0 0
    %609 = vmatmul.mubr.bf16.gmra.mxu0 %v571
    %v610 = vpop.f32.mrf.mxu0
    %v611 = vadd.f32 0.0, %v610
    %v612 = vpop.f32.mrf.mxu0
    %v613 = vpop.f32.mrf.mxu0
    %v614 = vpop.f32.mrf.mxu0
    %615 = vdwg.mxu0
    %616 = vrot.lane.b32.xlu0 %v269, 96
    %v617 = vpop.permute.xlu0 %616
    %618 = vrot.lane.b32.xlu0 %v505, 96
    %v619 = vpop.permute.xlu0 %618
    %v621 = vsel %vm517, %v617, 0
    %v624 = vsel %vm517, %v619, 0
    %626 = vmatprep.subr.bf16.mxu0 0
    %627 = vmatpush1.bf16.xpose.msra.mxu0 0
    %628 = vmatprep.subr.bf16.mxu0 0
    %629 = vmatpush1.bf16.xpose.msra.mxu0 0
    %630 = vmatprep.subr.bf16.mxu0 0
    %631 = vmatpush1.bf16.xpose.msra.mxu0 0
    %632 = vmatprep.subr.bf16.mxu0 0
    %633 = vmatpush1.bf16.xpose.msra.mxu0 0
    %634 = vmatprep.subr.bf16.mxu0 0
    %635 = vmatpush1.bf16.xpose.msra.mxu0 0
    %636 = vmatprep.subr.bf16.mxu0 0
    %637 = vmatpush1.bf16.xpose.msra.mxu0 0
    %638 = vmatprep.subr.bf16.mxu0 0
    %639 = vmatpush1.bf16.xpose.msra.mxu0 0
    %640 = vmatprep.subr.bf16.mxu0 0
    %641 = vmatpush1.bf16.xpose.msra.mxu0 %v624
    %642 = vmatprep.subr.bf16.mxu0 0
    %643 = vmatpush2.bf16.xpose.msra.mxu0 0
    %644 = vmatprep.subr.bf16.mxu0 0
    %645 = vmatpush2.bf16.xpose.msra.mxu0 0
    %646 = vmatprep.subr.bf16.mxu0 0
    %647 = vmatpush2.bf16.xpose.msra.mxu0 0
    %648 = vmatprep.subr.bf16.mxu0 0
    %649 = vmatpush2.bf16.xpose.msra.mxu0 0
    %650 = vmatprep.subr.bf16.mxu0 0
    %651 = vmatpush2.bf16.xpose.msra.mxu0 0
    %652 = vmatprep.subr.bf16.mxu0 0
    %653 = vmatpush2.bf16.xpose.msra.mxu0 0
    %654 = vmatprep.subr.bf16.mxu0 0
    %655 = vmatpush2.bf16.xpose.msra.mxu0 0
    %656 = vmatprep.subr.bf16.mxu0 0
    %657 = vmatpush2.bf16.xpose.msra.mxu0 0
    %658 = vmatprep.mubr.bf16.mxu0 0
    %659 = vmatmul.mubr.bf16.gmra.mxu0 %v621
    %v660 = vpop.f32.mrf.mxu0
    %v661 = vadd.f32 0.0, %v660
    %v662 = vpop.f32.mrf.mxu0
    %v663 = vpop.f32.mrf.mxu0
    %v664 = vpop.f32.mrf.mxu0
    %665 = vdwg.mxu0
    %666 = vrot.lane.b32.xlu0 %v269, 80
    %v667 = vpop.permute.xlu0 %666
    %668 = vrot.lane.b32.xlu0 %v505, 80
    %v669 = vpop.permute.xlu0 %668
    %v671 = vsel %vm517, %v667, 0
    %v674 = vsel %vm517, %v669, 0
    %676 = vmatprep.subr.bf16.mxu0 0
    %677 = vmatpush1.bf16.xpose.msra.mxu0 0
    %678 = vmatprep.subr.bf16.mxu0 0
    %679 = vmatpush1.bf16.xpose.msra.mxu0 0
    %680 = vmatprep.subr.bf16.mxu0 0
    %681 = vmatpush1.bf16.xpose.msra.mxu0 0
    %682 = vmatprep.subr.bf16.mxu0 0
    %683 = vmatpush1.bf16.xpose.msra.mxu0 0
    %684 = vmatprep.subr.bf16.mxu0 0
    %685 = vmatpush1.bf16.xpose.msra.mxu0 0
    %686 = vmatprep.subr.bf16.mxu0 0
    %687 = vmatpush1.bf16.xpose.msra.mxu0 0
    %688 = vmatprep.subr.bf16.mxu0 0
    %689 = vmatpush1.bf16.xpose.msra.mxu0 0
    %690 = vmatprep.subr.bf16.mxu0 0
    %691 = vmatpush1.bf16.xpose.msra.mxu0 %v674
    %692 = vmatprep.subr.bf16.mxu0 0
    %693 = vmatpush2.bf16.xpose.msra.mxu0 0
    %694 = vmatprep.subr.bf16.mxu0 0
    %695 = vmatpush2.bf16.xpose.msra.mxu0 0
    %696 = vmatprep.subr.bf16.mxu0 0
    %697 = vmatpush2.bf16.xpose.msra.mxu0 0
    %698 = vmatprep.subr.bf16.mxu0 0
    %699 = vmatpush2.bf16.xpose.msra.mxu0 0
    %700 = vmatprep.subr.bf16.mxu0 0
    %701 = vmatpush2.bf16.xpose.msra.mxu0 0
    %702 = vmatprep.subr.bf16.mxu0 0
    %703 = vmatpush2.bf16.xpose.msra.mxu0 0
    %704 = vmatprep.subr.bf16.mxu0 0
    %705 = vmatpush2.bf16.xpose.msra.mxu0 0
    %706 = vmatprep.subr.bf16.mxu0 0
    %707 = vmatpush2.bf16.xpose.msra.mxu0 0
    %708 = vmatprep.mubr.bf16.mxu0 0
    %709 = vmatmul.mubr.bf16.gmra.mxu0 %v671
    %v710 = vpop.f32.mrf.mxu0
    %v711 = vadd.f32 0.0, %v710
    %v712 = vpop.f32.mrf.mxu0
    %v713 = vpop.f32.mrf.mxu0
    %v714 = vpop.f32.mrf.mxu0
    %715 = vdwg.mxu0
    %v716 = vsel %vm517, %v559, -inf
    %717 = vmax.xlane.f32.xlu0 %v716
    %v718 = vpop.xlane.xlu0 %717
    %v719 = vsel %vm517, %v611, -inf
    %720 = vmax.xlane.f32.xlu0 %v719
    %v721 = vpop.xlane.xlu0 %720
    %v722 = vsel %vm517, %v661, -inf
    %723 = vmax.xlane.f32.xlu0 %v722
    %v724 = vpop.xlane.xlu0 %723
    %v725 = vsel %vm517, %v711, -inf
    %726 = vmax.xlane.f32.xlu0 %v725
    %v727 = vpop.xlane.xlu0 %726
    %v728 = vsub.f32 %v559, %v718
    %v729 = vsub.f32 %v611, %v721
    %v730 = vsub.f32 %v661, %v724
    %v731 = vsub.f32 %v711, %v727
    %v732 = vmul.f32 %v728, 1.442695
    %v733 = vpow.pop %v732
    %v734 = vmul.f32 %v729, 1.442695
    %v735 = vpow.pop %v734
    %v736 = vmul.f32 %v730, 1.442695
    %v737 = vpow.pop %v736
    %v738 = vmul.f32 %v731, 1.442695
    %v739 = vpow.pop %v738
    %v740 = vsel %vm517, %v733, 0.0
    %741 = vadd.xlane.f32.xlu0 %v740
    %v742 = vpop.xlane.xlu0 %741
    %v743 = vsel %vm517, %v735, 0.0
    %744 = vadd.xlane.f32.xlu0 %v743
    %v745 = vpop.xlane.xlu0 %744
    %v746 = vsel %vm517, %v737, 0.0
    %747 = vadd.xlane.f32.xlu0 %v746
    %v748 = vpop.xlane.xlu0 %747
    %v749 = vsel %vm517, %v739, 0.0
    %750 = vadd.xlane.f32.xlu0 %v749
    %v751 = vpop.xlane.xlu0 %750
    %v752 = vrcp.pop %v742
    %v753 = vrcp.pop %v745
    %v754 = vrcp.pop %v748
    %v755 = vrcp.pop %v751
    %v756 = vmul.f32 %v733, %v752
    %v757 = vmul.f32 %v735, %v753
    %v758 = vmul.f32 %v737, %v754
    %v759 = vmul.f32 %v739, %v755
    %v760 = vpack.c.bf16 %v757, %v756
    %v761 = vpack.c.bf16 %v759, %v758
    %v763 = vrot.slane %v760, 4
    %v765 = vsel %vm517, %v763, 0
    %767 = vmatprep.subr.bf16.mxu0 0
    %768 = vmatpush1.bf16.msra.mxu0 0
    %769 = vmatprep.subr.bf16.mxu0 0
    %770 = vmatpush1.bf16.msra.mxu0 0
    %771 = vmatprep.subr.bf16.mxu0 0
    %772 = vmatpush1.bf16.msra.mxu0 0
    %773 = vmatprep.subr.bf16.mxu0 0
    %774 = vmatpush1.bf16.msra.mxu0 0
    %775 = vmatprep.subr.bf16.mxu0 0
    %776 = vmatpush1.bf16.msra.mxu0 0
    %777 = vmatprep.subr.bf16.mxu0 0
    %778 = vmatpush1.bf16.msra.mxu0 0
    %779 = vmatprep.subr.bf16.mxu0 0
    %780 = vmatpush1.bf16.msra.mxu0 0
    %781 = vmatprep.subr.bf16.mxu0 0
    %782 = vmatpush1.bf16.msra.mxu0 %v506
    %783 = vmatprep.subr.bf16.mxu0 0
    %784 = vmatpush2.bf16.msra.mxu0 0
    %785 = vmatprep.subr.bf16.mxu0 0
    %786 = vmatpush2.bf16.msra.mxu0 0
    %787 = vmatprep.subr.bf16.mxu0 0
    %788 = vmatpush2.bf16.msra.mxu0 0
    %789 = vmatprep.subr.bf16.mxu0 0
    %790 = vmatpush2.bf16.msra.mxu0 0
    %791 = vmatprep.subr.bf16.mxu0 0
    %792 = vmatpush2.bf16.msra.mxu0 0
    %793 = vmatprep.subr.bf16.mxu0 0
    %794 = vmatpush2.bf16.msra.mxu0 0
    %795 = vmatprep.subr.bf16.mxu0 0
    %796 = vmatpush2.bf16.msra.mxu0 0
    %797 = vmatprep.subr.bf16.mxu0 0
    %798 = vmatpush2.bf16.msra.mxu0 0
    %799 = vmatprep.mubr.bf16.mxu0 0
    %800 = vmatmul.mubr.bf16.gmra.mxu0 %v765
    %v801 = vpop.f32.mrf.mxu0
    %v802 = vadd.f32 0.0, %v801
    %v803 = vpop.f32.mrf.mxu0
    %v804 = vpop.f32.mrf.mxu0
    %v805 = vpop.f32.mrf.mxu0
    %806 = vdwg.mxu0
    %807 = vrot.lane.b32.xlu0 %v505, 64
    %v808 = vpop.permute.xlu0 %807
    %v811 = vsel %vm517, %v760, 0
    %813 = vmatprep.subr.bf16.mxu0 0
    %814 = vmatpush1.bf16.msra.mxu0 0
    %815 = vmatprep.subr.bf16.mxu0 0
    %816 = vmatpush1.bf16.msra.mxu0 0
    %817 = vmatprep.subr.bf16.mxu0 0
    %818 = vmatpush1.bf16.msra.mxu0 0
    %819 = vmatprep.subr.bf16.mxu0 0
    %820 = vmatpush1.bf16.msra.mxu0 0
    %821 = vmatprep.subr.bf16.mxu0 0
    %822 = vmatpush1.bf16.msra.mxu0 0
    %823 = vmatprep.subr.bf16.mxu0 0
    %824 = vmatpush1.bf16.msra.mxu0 0
    %825 = vmatprep.subr.bf16.mxu0 0
    %826 = vmatpush1.bf16.msra.mxu0 0
    %827 = vmatprep.subr.bf16.mxu0 0
    %828 = vmatpush1.bf16.msra.mxu0 %v808
    %829 = vmatprep.subr.bf16.mxu0 0
    %830 = vmatpush2.bf16.msra.mxu0 0
    %831 = vmatprep.subr.bf16.mxu0 0
    %832 = vmatpush2.bf16.msra.mxu0 0
    %833 = vmatprep.subr.bf16.mxu0 0
    %834 = vmatpush2.bf16.msra.mxu0 0
    %835 = vmatprep.subr.bf16.mxu0 0
    %836 = vmatpush2.bf16.msra.mxu0 0
    %837 = vmatprep.subr.bf16.mxu0 0
    %838 = vmatpush2.bf16.msra.mxu0 0
    %839 = vmatprep.subr.bf16.mxu0 0
    %840 = vmatpush2.bf16.msra.mxu0 0
    %841 = vmatprep.subr.bf16.mxu0 0
    %842 = vmatpush2.bf16.msra.mxu0 0
    %843 = vmatprep.subr.bf16.mxu0 0
    %844 = vmatpush2.bf16.msra.mxu0 0
    %845 = vmatprep.mubr.bf16.mxu0 0
    %846 = vmatmul.mubr.bf16.gmra.mxu0 %v811
    %v847 = vpop.f32.mrf.mxu0
    %v848 = vadd.f32 %v802, %v847
    %v849 = vpop.f32.mrf.mxu0
    %v850 = vpop.f32.mrf.mxu0
    %v851 = vpop.f32.mrf.mxu0
    %852 = vdwg.mxu0
    %854 = vrot.lane.b32.xlu0 %v506, 64
    %v855 = vpop.permute.xlu0 %854
    %v858 = vsel %vm517, %v761, 0
    %860 = vmatprep.subr.bf16.mxu0 0
    %861 = vmatpush1.bf16.msra.mxu0 0
    %862 = vmatprep.subr.bf16.mxu0 0
    %863 = vmatpush1.bf16.msra.mxu0 0
    %864 = vmatprep.subr.bf16.mxu0 0
    %865 = vmatpush1.bf16.msra.mxu0 0
    %866 = vmatprep.subr.bf16.mxu0 0
    %867 = vmatpush1.bf16.msra.mxu0 0
    %868 = vmatprep.subr.bf16.mxu0 0
    %869 = vmatpush1.bf16.msra.mxu0 0
    %870 = vmatprep.subr.bf16.mxu0 0
    %871 = vmatpush1.bf16.msra.mxu0 0
    %872 = vmatprep.subr.bf16.mxu0 0
    %873 = vmatpush1.bf16.msra.mxu0 0
    %874 = vmatprep.subr.bf16.mxu0 0
    %875 = vmatpush1.bf16.msra.mxu0 %v855
    %876 = vmatprep.subr.bf16.mxu0 0
    %877 = vmatpush2.bf16.msra.mxu0 0
    %878 = vmatprep.subr.bf16.mxu0 0
    %879 = vmatpush2.bf16.msra.mxu0 0
    %880 = vmatprep.subr.bf16.mxu0 0
    %881 = vmatpush2.bf16.msra.mxu0 0
    %882 = vmatprep.subr.bf16.mxu0 0
    %883 = vmatpush2.bf16.msra.mxu0 0
    %884 = vmatprep.subr.bf16.mxu0 0
    %885 = vmatpush2.bf16.msra.mxu0 0
    %886 = vmatprep.subr.bf16.mxu0 0
    %887 = vmatpush2.bf16.msra.mxu0 0
    %888 = vmatprep.subr.bf16.mxu0 0
    %889 = vmatpush2.bf16.msra.mxu0 0
    %890 = vmatprep.subr.bf16.mxu0 0
    %891 = vmatpush2.bf16.msra.mxu0 0
    %892 = vmatprep.mubr.bf16.mxu0 0
    %893 = vmatmul.mubr.bf16.gmra.mxu0 %v858
    %v894 = vpop.f32.mrf.mxu0
    %v895 = vadd.f32 0.0, %v894
    %v896 = vpop.f32.mrf.mxu0
    %v897 = vpop.f32.mrf.mxu0
    %v898 = vpop.f32.mrf.mxu0
    %899 = vdwg.mxu0
    %v900 = vadd.f32 %v848, %v895
    %v902 = vrot.slane %v761, 4
    %v904 = vsel %vm517, %v902, 0
    %906 = vmatprep.subr.bf16.mxu0 0
    %907 = vmatpush1.bf16.msra.mxu0 0
    %908 = vmatprep.subr.bf16.mxu0 0
    %909 = vmatpush1.bf16.msra.mxu0 0
    %910 = vmatprep.subr.bf16.mxu0 0
    %911 = vmatpush1.bf16.msra.mxu0 0
    %912 = vmatprep.subr.bf16.mxu0 0
    %913 = vmatpush1.bf16.msra.mxu0 0
    %914 = vmatprep.subr.bf16.mxu0 0
    %915 = vmatpush1.bf16.msra.mxu0 0
    %916 = vmatprep.subr.bf16.mxu0 0
    %917 = vmatpush1.bf16.msra.mxu0 0
    %918 = vmatprep.subr.bf16.mxu0 0
    %919 = vmatpush1.bf16.msra.mxu0 0
    %920 = vmatprep.subr.bf16.mxu0 0
    %921 = vmatpush1.bf16.msra.mxu0 %v507
    %922 = vmatprep.subr.bf16.mxu0 0
    %923 = vmatpush2.bf16.msra.mxu0 0
    %924 = vmatprep.subr.bf16.mxu0 0
    %925 = vmatpush2.bf16.msra.mxu0 0
    %926 = vmatprep.subr.bf16.mxu0 0
    %927 = vmatpush2.bf16.msra.mxu0 0
    %928 = vmatprep.subr.bf16.mxu0 0
    %929 = vmatpush2.bf16.msra.mxu0 0
    %930 = vmatprep.subr.bf16.mxu0 0
    %931 = vmatpush2.bf16.msra.mxu0 0
    %932 = vmatprep.subr.bf16.mxu0 0
    %933 = vmatpush2.bf16.msra.mxu0 0
    %934 = vmatprep.subr.bf16.mxu0 0
    %935 = vmatpush2.bf16.msra.mxu0 0
    %936 = vmatprep.subr.bf16.mxu0 0
    %937 = vmatpush2.bf16.msra.mxu0 0
    %938 = vmatprep.mubr.bf16.mxu0 0
    %939 = vmatmul.mubr.bf16.gmra.mxu0 %v904
    %v940 = vpop.f32.mrf.mxu0
    %v941 = vadd.f32 0.0, %v940
    %v942 = vpop.f32.mrf.mxu0
    %v943 = vpop.f32.mrf.mxu0
    %v944 = vpop.f32.mrf.mxu0
    %945 = vdwg.mxu0
    %v946 = vadd.f32 %v900, %v941
    %v947 = vrot.slane %v269, 4
    %v949 = vsel %vm517, %v947, 0
    %v952 = vsel %vm517, %v508, 0
    %954 = vmatprep.subr.bf16.mxu0 0
    %955 = vmatpush1.bf16.xpose.msra.mxu0 0
    %956 = vmatprep.subr.bf16.mxu0 0
    %957 = vmatpush1.bf16.xpose.msra.mxu0 0
    %958 = vmatprep.subr.bf16.mxu0 0
    %959 = vmatpush1.bf16.xpose.msra.mxu0 0
    %960 = vmatprep.subr.bf16.mxu0 0
    %961 = vmatpush1.bf16.xpose.msra.mxu0 0
    %962 = vmatprep.subr.bf16.mxu0 0
    %963 = vmatpush1.bf16.xpose.msra.mxu0 0
    %964 = vmatprep.subr.bf16.mxu0 0
    %965 = vmatpush1.bf16.xpose.msra.mxu0 0
    %966 = vmatprep.subr.bf16.mxu0 0
    %967 = vmatpush1.bf16.xpose.msra.mxu0 0
    %968 = vmatprep.subr.bf16.mxu0 0
    %969 = vmatpush1.bf16.xpose.msra.mxu0 %v952
    %970 = vmatprep.subr.bf16.mxu0 0
    %971 = vmatpush2.bf16.xpose.msra.mxu0 0
    %972 = vmatprep.subr.bf16.mxu0 0
    %973 = vmatpush2.bf16.xpose.msra.mxu0 0
    %974 = vmatprep.subr.bf16.mxu0 0
    %975 = vmatpush2.bf16.xpose.msra.mxu0 0
    %976 = vmatprep.subr.bf16.mxu0 0
    %977 = vmatpush2.bf16.xpose.msra.mxu0 0
    %978 = vmatprep.subr.bf16.mxu0 0
    %979 = vmatpush2.bf16.xpose.msra.mxu0 0
    %980 = vmatprep.subr.bf16.mxu0 0
    %981 = vmatpush2.bf16.xpose.msra.mxu0 0
    %982 = vmatprep.subr.bf16.mxu0 0
    %983 = vmatpush2.bf16.xpose.msra.mxu0 0
    %984 = vmatprep.subr.bf16.mxu0 0
    %985 = vmatpush2.bf16.xpose.msra.mxu0 0
    %986 = vmatprep.mubr.bf16.mxu0 0
    %987 = vmatmul.mubr.bf16.gmra.mxu0 %v949
    %v988 = vpop.f32.mrf.mxu0
    %v989 = vadd.f32 0.0, %v988
    %v990 = vpop.f32.mrf.mxu0
    %v991 = vpop.f32.mrf.mxu0
    %v992 = vpop.f32.mrf.mxu0
    %993 = vdwg.mxu0
    %994 = vrot.lane.b32.xlu0 %v947, 112
    %v995 = vpop.permute.xlu0 %994
    %997 = vrot.lane.b32.xlu0 %v508, 112
    %v998 = vpop.permute.xlu0 %997
    %v1000 = vsel %vm517, %v995, 0
    %v1003 = vsel %vm517, %v998, 0
    %1005 = vmatprep.subr.bf16.mxu0 0
    %1006 = vmatpush1.bf16.xpose.msra.mxu0 0
    %1007 = vmatprep.subr.bf16.mxu0 0
    %1008 = vmatpush1.bf16.xpose.msra.mxu0 0
    %1009 = vmatprep.subr.bf16.mxu0 0
    %1010 = vmatpush1.bf16.xpose.msra.mxu0 0
    %1011 = vmatprep.subr.bf16.mxu0 0
    %1012 = vmatpush1.bf16.xpose.msra.mxu0 0
    %1013 = vmatprep.subr.bf16.mxu0 0
    %1014 = vmatpush1.bf16.xpose.msra.mxu0 0
    %1015 = vmatprep.subr.bf16.mxu0 0
    %1016 = vmatpush1.bf16.xpose.msra.mxu0 0
    %1017 = vmatprep.subr.bf16.mxu0 0
    %1018 = vmatpush1.bf16.xpose.msra.mxu0 0
    %1019 = vmatprep.subr.bf16.mxu0 0
    %1020 = vmatpush1.bf16.xpose.msra.mxu0 %v1003
    %1021 = vmatprep.subr.bf16.mxu0 0
    %1022 = vmatpush2.bf16.xpose.msra.mxu0 0
    %1023 = vmatprep.subr.bf16.mxu0 0
    %1024 = vmatpush2.bf16.xpose.msra.mxu0 0
    %1025 = vmatprep.subr.bf16.mxu0 0
    %1026 = vmatpush2.bf16.xpose.msra.mxu0 0
    %1027 = vmatprep.subr.bf16.mxu0 0
    %1028 = vmatpush2.bf16.xpose.msra.mxu0 0
    %1029 = vmatprep.subr.bf16.mxu0 0
    %1030 = vmatpush2.bf16.xpose.msra.mxu0 0
    %1031 = vmatprep.subr.bf16.mxu0 0
    %1032 = vmatpush2.bf16.xpose.msra.mxu0 0
    %1033 = vmatprep.subr.bf16.mxu0 0
    %1034 = vmatpush2.bf16.xpose.msra.mxu0 0
    %1035 = vmatprep.subr.bf16.mxu0 0
    %1036 = vmatpush2.bf16.xpose.msra.mxu0 0
    %1037 = vmatprep.mubr.bf16.mxu0 0
    %1038 = vmatmul.mubr.bf16.gmra.mxu0 %v1000
    %v1039 = vpop.f32.mrf.mxu0
    %v1040 = vadd.f32 0.0, %v1039
    %v1041 = vpop.f32.mrf.mxu0
    %v1042 = vpop.f32.mrf.mxu0
    %v1043 = vpop.f32.mrf.mxu0
    %1044 = vdwg.mxu0
    %1045 = vrot.lane.b32.xlu0 %v947, 96
    %v1046 = vpop.permute.xlu0 %1045
    %1047 = vrot.lane.b32.xlu0 %v508, 96
    %v1048 = vpop.permute.xlu0 %1047
    %v1050 = vsel %vm517, %v1046, 0
    %v1053 = vsel %vm517, %v1048, 0
    %1055 = vmatprep.subr.bf16.mxu0 0
    %1056 = vmatpush1.bf16.xpose.msra.mxu0 0
    %1057 = vmatprep.subr.bf16.mxu0 0
    %1058 = vmatpush1.bf16.xpose.msra.mxu0 0
    %1059 = vmatprep.subr.bf16.mxu0 0
    %1060 = vmatpush1.bf16.xpose.msra.mxu0 0
    %1061 = vmatprep.subr.bf16.mxu0 0
    %1062 = vmatpush1.bf16.xpose.msra.mxu0 0
    %1063 = vmatprep.subr.bf16.mxu0 0
    %1064 = vmatpush1.bf16.xpose.msra.mxu0 0
    %1065 = vmatprep.subr.bf16.mxu0 0
    %1066 = vmatpush1.bf16.xpose.msra.mxu0 0
    %1067 = vmatprep.subr.bf16.mxu0 0
    %1068 = vmatpush1.bf16.xpose.msra.mxu0 0
    %1069 = vmatprep.subr.bf16.mxu0 0
    %1070 = vmatpush1.bf16.xpose.msra.mxu0 %v1053
    %1071 = vmatprep.subr.bf16.mxu0 0
    %1072 = vmatpush2.bf16.xpose.msra.mxu0 0
    %1073 = vmatprep.subr.bf16.mxu0 0
    %1074 = vmatpush2.bf16.xpose.msra.mxu0 0
    %1075 = vmatprep.subr.bf16.mxu0 0
    %1076 = vmatpush2.bf16.xpose.msra.mxu0 0
    %1077 = vmatprep.subr.bf16.mxu0 0
    %1078 = vmatpush2.bf16.xpose.msra.mxu0 0
    %1079 = vmatprep.subr.bf16.mxu0 0
    %1080 = vmatpush2.bf16.xpose.msra.mxu0 0
    %1081 = vmatprep.subr.bf16.mxu0 0
    %1082 = vmatpush2.bf16.xpose.msra.mxu0 0
    %1083 = vmatprep.subr.bf16.mxu0 0
    %1084 = vmatpush2.bf16.xpose.msra.mxu0 0
    %1085 = vmatprep.subr.bf16.mxu0 0
    %1086 = vmatpush2.bf16.xpose.msra.mxu0 0
    %1087 = vmatprep.mubr.bf16.mxu0 0
    %1088 = vmatmul.mubr.bf16.gmra.mxu0 %v1050
    %v1089 = vpop.f32.mrf.mxu0
    %v1090 = vadd.f32 0.0, %v1089
    %v1091 = vpop.f32.mrf.mxu0
    %v1092 = vpop.f32.mrf.mxu0
    %v1093 = vpop.f32.mrf.mxu0
    %1094 = vdwg.mxu0
    %1095 = vrot.lane.b32.xlu0 %v947, 80
    %v1096 = vpop.permute.xlu0 %1095
    %1097 = vrot.lane.b32.xlu0 %v508, 80
    %v1098 = vpop.permute.xlu0 %1097
    %v1100 = vsel %vm517, %v1096, 0
    %v1103 = vsel %vm517, %v1098, 0
    %1105 = vmatprep.subr.bf16.mxu0 0
    %1106 = vmatpush1.bf16.xpose.msra.mxu0 0
    %1107 = vmatprep.subr.bf16.mxu0 0
    %1108 = vmatpush1.bf16.xpose.msra.mxu0 0
    %1109 = vmatprep.subr.bf16.mxu0 0
    %1110 = vmatpush1.bf16.xpose.msra.mxu0 0
    %1111 = vmatprep.subr.bf16.mxu0 0
    %1112 = vmatpush1.bf16.xpose.msra.mxu0 0
    %1113 = vmatprep.subr.bf16.mxu0 0
    %1114 = vmatpush1.bf16.xpose.msra.mxu0 0
    %1115 = vmatprep.subr.bf16.mxu0 0
    %1116 = vmatpush1.bf16.xpose.msra.mxu0 0
    %1117 = vmatprep.subr.bf16.mxu0 0
    %1118 = vmatpush1.bf16.xpose.msra.mxu0 0
    %1119 = vmatprep.subr.bf16.mxu0 0
    %1120 = vmatpush1.bf16.xpose.msra.mxu0 %v1103
    %1121 = vmatprep.subr.bf16.mxu0 0
    %1122 = vmatpush2.bf16.xpose.msra.mxu0 0
    %1123 = vmatprep.subr.bf16.mxu0 0
    %1124 = vmatpush2.bf16.xpose.msra.mxu0 0
    %1125 = vmatprep.subr.bf16.mxu0 0
    %1126 = vmatpush2.bf16.xpose.msra.mxu0 0
    %1127 = vmatprep.subr.bf16.mxu0 0
    %1128 = vmatpush2.bf16.xpose.msra.mxu0 0
    %1129 = vmatprep.subr.bf16.mxu0 0
    %1130 = vmatpush2.bf16.xpose.msra.mxu0 0
    %1131 = vmatprep.subr.bf16.mxu0 0
    %1132 = vmatpush2.bf16.xpose.msra.mxu0 0
    %1133 = vmatprep.subr.bf16.mxu0 0
    %1134 = vmatpush2.bf16.xpose.msra.mxu0 0
    %1135 = vmatprep.subr.bf16.mxu0 0
    %1136 = vmatpush2.bf16.xpose.msra.mxu0 0
    %1137 = vmatprep.mubr.bf16.mxu0 0
    %1138 = vmatmul.mubr.bf16.gmra.mxu0 %v1100
    %v1139 = vpop.f32.mrf.mxu0
    %v1140 = vadd.f32 0.0, %v1139
    %v1141 = vpop.f32.mrf.mxu0
    %v1142 = vpop.f32.mrf.mxu0
    %v1143 = vpop.f32.mrf.mxu0
    %1144 = vdwg.mxu0
    %v1145 = vsel %vm517, %v989, -inf
    %1146 = vmax.xlane.f32.xlu0 %v1145
    %v1147 = vpop.xlane.xlu0 %1146
    %v1148 = vsel %vm517, %v1040, -inf
    %1149 = vmax.xlane.f32.xlu0 %v1148
    %v1150 = vpop.xlane.xlu0 %1149
    %v1151 = vsel %vm517, %v1090, -inf
    %1152 = vmax.xlane.f32.xlu0 %v1151
    %v1153 = vpop.xlane.xlu0 %1152
    %v1154 = vsel %vm517, %v1140, -inf
    %1155 = vmax.xlane.f32.xlu0 %v1154
    %v1156 = vpop.xlane.xlu0 %1155
    %v1157 = vsub.f32 %v989, %v1147
    %v1158 = vsub.f32 %v1040, %v1150
    %v1159 = vsub.f32 %v1090, %v1153
    %v1160 = vsub.f32 %v1140, %v1156
    %v1161 = vmul.f32 %v1157, 1.442695
    %v1162 = vpow.pop %v1161
    %v1163 = vmul.f32 %v1158, 1.442695
    %v1164 = vpow.pop %v1163
    %v1165 = vmul.f32 %v1159, 1.442695
    %v1166 = vpow.pop %v1165
    %v1167 = vmul.f32 %v1160, 1.442695
    %v1168 = vpow.pop %v1167
    %v1169 = vsel %vm517, %v1162, 0.0
    %1170 = vadd.xlane.f32.xlu0 %v1169
    %v1171 = vpop.xlane.xlu0 %1170
    %v1172 = vsel %vm517, %v1164, 0.0
    %1173 = vadd.xlane.f32.xlu0 %v1172
    %v1174 = vpop.xlane.xlu0 %1173
    %v1175 = vsel %vm517, %v1166, 0.0
    %1176 = vadd.xlane.f32.xlu0 %v1175
    %v1177 = vpop.xlane.xlu0 %1176
    %v1178 = vsel %vm517, %v1168, 0.0
    %1179 = vadd.xlane.f32.xlu0 %v1178
    %v1180 = vpop.xlane.xlu0 %1179
    %v1181 = vrcp.pop %v1171
    %v1182 = vrcp.pop %v1174
    %v1183 = vrcp.pop %v1177
    %v1184 = vrcp.pop %v1180
    %v1185 = vmul.f32 %v1162, %v1181
    %v1186 = vmul.f32 %v1164, %v1182
    %v1187 = vmul.f32 %v1166, %v1183
    %v1188 = vmul.f32 %v1168, %v1184
    %v1189 = vpack.c.bf16 %v1186, %v1185
    %v1190 = vpack.c.bf16 %v1188, %v1187
    %v1192 = vrot.slane %v1189, 4
    %v1194 = vsel %vm517, %v1192, 0
    %1196 = vmatprep.subr.bf16.mxu0 0
    %1197 = vmatpush1.bf16.msra.mxu0 0
    %1198 = vmatprep.subr.bf16.mxu0 0
    %1199 = vmatpush1.bf16.msra.mxu0 0
    %1200 = vmatprep.subr.bf16.mxu0 0
    %1201 = vmatpush1.bf16.msra.mxu0 0
    %1202 = vmatprep.subr.bf16.mxu0 0
    %1203 = vmatpush1.bf16.msra.mxu0 0
    %1204 = vmatprep.subr.bf16.mxu0 0
    %1205 = vmatpush1.bf16.msra.mxu0 0
    %1206 = vmatprep.subr.bf16.mxu0 0
    %1207 = vmatpush1.bf16.msra.mxu0 0
    %1208 = vmatprep.subr.bf16.mxu0 0
    %1209 = vmatpush1.bf16.msra.mxu0 0
    %1210 = vmatprep.subr.bf16.mxu0 0
    %1211 = vmatpush1.bf16.msra.mxu0 %v509
    %1212 = vmatprep.subr.bf16.mxu0 0
    %1213 = vmatpush2.bf16.msra.mxu0 0
    %1214 = vmatprep.subr.bf16.mxu0 0
    %1215 = vmatpush2.bf16.msra.mxu0 0
    %1216 = vmatprep.subr.bf16.mxu0 0
    %1217 = vmatpush2.bf16.msra.mxu0 0
    %1218 = vmatprep.subr.bf16.mxu0 0
    %1219 = vmatpush2.bf16.msra.mxu0 0
    %1220 = vmatprep.subr.bf16.mxu0 0
    %1221 = vmatpush2.bf16.msra.mxu0 0
    %1222 = vmatprep.subr.bf16.mxu0 0
    %1223 = vmatpush2.bf16.msra.mxu0 0
    %1224 = vmatprep.subr.bf16.mxu0 0
    %1225 = vmatpush2.bf16.msra.mxu0 0
    %1226 = vmatprep.subr.bf16.mxu0 0
    %1227 = vmatpush2.bf16.msra.mxu0 0
    %1228 = vmatprep.mubr.bf16.mxu0 0
    %1229 = vmatmul.mubr.bf16.gmra.mxu0 %v1194
    %v1230 = vpop.f32.mrf.mxu0
    %v1231 = vadd.f32 0.0, %v1230
    %v1232 = vpop.f32.mrf.mxu0
    %v1233 = vpop.f32.mrf.mxu0
    %v1234 = vpop.f32.mrf.mxu0
    %1235 = vdwg.mxu0
    %1236 = vrot.lane.b32.xlu0 %v508, 64
    %v1237 = vpop.permute.xlu0 %1236
    %v1240 = vsel %vm517, %v1189, 0
    %1242 = vmatprep.subr.bf16.mxu0 0
    %1243 = vmatpush1.bf16.msra.mxu0 0
    %1244 = vmatprep.subr.bf16.mxu0 0
    %1245 = vmatpush1.bf16.msra.mxu0 0
    %1246 = vmatprep.subr.bf16.mxu0 0
    %1247 = vmatpush1.bf16.msra.mxu0 0
    %1248 = vmatprep.subr.bf16.mxu0 0
    %1249 = vmatpush1.bf16.msra.mxu0 0
    %1250 = vmatprep.subr.bf16.mxu0 0
    %1251 = vmatpush1.bf16.msra.mxu0 0
    %1252 = vmatprep.subr.bf16.mxu0 0
    %1253 = vmatpush1.bf16.msra.mxu0 0
    %1254 = vmatprep.subr.bf16.mxu0 0
    %1255 = vmatpush1.bf16.msra.mxu0 0
    %1256 = vmatprep.subr.bf16.mxu0 0
    %1257 = vmatpush1.bf16.msra.mxu0 %v1237
    %1258 = vmatprep.subr.bf16.mxu0 0
    %1259 = vmatpush2.bf16.msra.mxu0 0
    %1260 = vmatprep.subr.bf16.mxu0 0
    %1261 = vmatpush2.bf16.msra.mxu0 0
    %1262 = vmatprep.subr.bf16.mxu0 0
    %1263 = vmatpush2.bf16.msra.mxu0 0
    %1264 = vmatprep.subr.bf16.mxu0 0
    %1265 = vmatpush2.bf16.msra.mxu0 0
    %1266 = vmatprep.subr.bf16.mxu0 0
    %1267 = vmatpush2.bf16.msra.mxu0 0
    %1268 = vmatprep.subr.bf16.mxu0 0
    %1269 = vmatpush2.bf16.msra.mxu0 0
    %1270 = vmatprep.subr.bf16.mxu0 0
    %1271 = vmatpush2.bf16.msra.mxu0 0
    %1272 = vmatprep.subr.bf16.mxu0 0
    %1273 = vmatpush2.bf16.msra.mxu0 0
    %1274 = vmatprep.mubr.bf16.mxu0 0
    %1275 = vmatmul.mubr.bf16.gmra.mxu0 %v1240
    %v1276 = vpop.f32.mrf.mxu0
    %v1277 = vadd.f32 %v1231, %v1276
    %v1278 = vpop.f32.mrf.mxu0
    %v1279 = vpop.f32.mrf.mxu0
    %v1280 = vpop.f32.mrf.mxu0
    %1281 = vdwg.mxu0
    %1283 = vrot.lane.b32.xlu0 %v509, 64
    %v1284 = vpop.permute.xlu0 %1283
    %v1287 = vsel %vm517, %v1190, 0
    %1289 = vmatprep.subr.bf16.mxu0 0
    %1290 = vmatpush1.bf16.msra.mxu0 0
    %1291 = vmatprep.subr.bf16.mxu0 0
    %1292 = vmatpush1.bf16.msra.mxu0 0
    %1293 = vmatprep.subr.bf16.mxu0 0
    %1294 = vmatpush1.bf16.msra.mxu0 0
    %1295 = vmatprep.subr.bf16.mxu0 0
    %1296 = vmatpush1.bf16.msra.mxu0 0
    %1297 = vmatprep.subr.bf16.mxu0 0
    %1298 = vmatpush1.bf16.msra.mxu0 0
    %1299 = vmatprep.subr.bf16.mxu0 0
    %1300 = vmatpush1.bf16.msra.mxu0 0
    %1301 = vmatprep.subr.bf16.mxu0 0
    %1302 = vmatpush1.bf16.msra.mxu0 0
    %1303 = vmatprep.subr.bf16.mxu0 0
    %1304 = vmatpush1.bf16.msra.mxu0 %v1284
    %1305 = vmatprep.subr.bf16.mxu0 0
    %1306 = vmatpush2.bf16.msra.mxu0 0
    %1307 = vmatprep.subr.bf16.mxu0 0
    %1308 = vmatpush2.bf16.msra.mxu0 0
    %1309 = vmatprep.subr.bf16.mxu0 0
    %1310 = vmatpush2.bf16.msra.mxu0 0
    %1311 = vmatprep.subr.bf16.mxu0 0
    %1312 = vmatpush2.bf16.msra.mxu0 0
    %1313 = vmatprep.subr.bf16.mxu0 0
    %1314 = vmatpush2.bf16.msra.mxu0 0
    %1315 = vmatprep.subr.bf16.mxu0 0
    %1316 = vmatpush2.bf16.msra.mxu0 0
    %1317 = vmatprep.subr.bf16.mxu0 0
    %1318 = vmatpush2.bf16.msra.mxu0 0
    %1319 = vmatprep.subr.bf16.mxu0 0
    %1320 = vmatpush2.bf16.msra.mxu0 0
    %1321 = vmatprep.mubr.bf16.mxu0 0
    %1322 = vmatmul.mubr.bf16.gmra.mxu0 %v1287
    %v1323 = vpop.f32.mrf.mxu0
    %v1324 = vadd.f32 0.0, %v1323
    %v1325 = vpop.f32.mrf.mxu0
    %v1326 = vpop.f32.mrf.mxu0
    %v1327 = vpop.f32.mrf.mxu0
    %1328 = vdwg.mxu0
    %v1329 = vadd.f32 %v1277, %v1324
    %v1331 = vrot.slane %v1190, 4
    %v1333 = vsel %vm517, %v1331, 0
    %1335 = vmatprep.subr.bf16.mxu0 0
    %1336 = vmatpush1.bf16.msra.mxu0 0
    %1337 = vmatprep.subr.bf16.mxu0 0
    %1338 = vmatpush1.bf16.msra.mxu0 0
    %1339 = vmatprep.subr.bf16.mxu0 0
    %1340 = vmatpush1.bf16.msra.mxu0 0
    %1341 = vmatprep.subr.bf16.mxu0 0
    %1342 = vmatpush1.bf16.msra.mxu0 0
    %1343 = vmatprep.subr.bf16.mxu0 0
    %1344 = vmatpush1.bf16.msra.mxu0 0
    %1345 = vmatprep.subr.bf16.mxu0 0
    %1346 = vmatpush1.bf16.msra.mxu0 0
    %1347 = vmatprep.subr.bf16.mxu0 0
    %1348 = vmatpush1.bf16.msra.mxu0 0
    %1349 = vmatprep.subr.bf16.mxu0 0
    %1350 = vmatpush1.bf16.msra.mxu0 %v510
    %1351 = vmatprep.subr.bf16.mxu0 0
    %1352 = vmatpush2.bf16.msra.mxu0 0
    %1353 = vmatprep.subr.bf16.mxu0 0
    %1354 = vmatpush2.bf16.msra.mxu0 0
    %1355 = vmatprep.subr.bf16.mxu0 0
    %1356 = vmatpush2.bf16.msra.mxu0 0
    %1357 = vmatprep.subr.bf16.mxu0 0
    %1358 = vmatpush2.bf16.msra.mxu0 0
    %1359 = vmatprep.subr.bf16.mxu0 0
    %1360 = vmatpush2.bf16.msra.mxu0 0
    %1361 = vmatprep.subr.bf16.mxu0 0
    %1362 = vmatpush2.bf16.msra.mxu0 0
    %1363 = vmatprep.subr.bf16.mxu0 0
    %1364 = vmatpush2.bf16.msra.mxu0 0
    %1365 = vmatprep.subr.bf16.mxu0 0
    %1366 = vmatpush2.bf16.msra.mxu0 0
    %1367 = vmatprep.mubr.bf16.mxu0 0
    %1368 = vmatmul.mubr.bf16.gmra.mxu0 %v1333
    %v1369 = vpop.f32.mrf.mxu0
    %v1370 = vadd.f32 0.0, %v1369
    %v1371 = vpop.f32.mrf.mxu0
    %v1372 = vpop.f32.mrf.mxu0
    %v1373 = vpop.f32.mrf.mxu0
    %1374 = vdwg.mxu0
    %v1375 = vadd.f32 %v1329, %v1370
    %v1377 = vsel %vm517, %v270, 0
    %v1380 = vsel %vm517, %v511, 0
    %1382 = vmatprep.subr.bf16.mxu0 0
    %1383 = vmatpush1.bf16.xpose.msra.mxu0 0
    %1384 = vmatprep.subr.bf16.mxu0 0
    %1385 = vmatpush1.bf16.xpose.msra.mxu0 0
    %1386 = vmatprep.subr.bf16.mxu0 0
    %1387 = vmatpush1.bf16.xpose.msra.mxu0 0
    %1388 = vmatprep.subr.bf16.mxu0 0
    %1389 = vmatpush1.bf16.xpose.msra.mxu0 0
    %1390 = vmatprep.subr.bf16.mxu0 0
    %1391 = vmatpush1.bf16.xpose.msra.mxu0 0
    %1392 = vmatprep.subr.bf16.mxu0 0
    %1393 = vmatpush1.bf16.xpose.msra.mxu0 0
    %1394 = vmatprep.subr.bf16.mxu0 0
    %1395 = vmatpush1.bf16.xpose.msra.mxu0 0
    %1396 = vmatprep.subr.bf16.mxu0 0
    %1397 = vmatpush1.bf16.xpose.msra.mxu0 %v1380
    %1398 = vmatprep.subr.bf16.mxu0 0
    %1399 = vmatpush2.bf16.xpose.msra.mxu0 0
    %1400 = vmatprep.subr.bf16.mxu0 0
    %1401 = vmatpush2.bf16.xpose.msra.mxu0 0
    %1402 = vmatprep.subr.bf16.mxu0 0
    %1403 = vmatpush2.bf16.xpose.msra.mxu0 0
    %1404 = vmatprep.subr.bf16.mxu0 0
    %1405 = vmatpush2.bf16.xpose.msra.mxu0 0
    %1406 = vmatprep.subr.bf16.mxu0 0
    %1407 = vmatpush2.bf16.xpose.msra.mxu0 0
    %1408 = vmatprep.subr.bf16.mxu0 0
    %1409 = vmatpush2.bf16.xpose.msra.mxu0 0
    %1410 = vmatprep.subr.bf16.mxu0 0
    %1411 = vmatpush2.bf16.xpose.msra.mxu0 0
    %1412 = vmatprep.subr.bf16.mxu0 0
    %1413 = vmatpush2.bf16.xpose.msra.mxu0 0
    %1414 = vmatprep.mubr.bf16.mxu0 0
    %1415 = vmatmul.mubr.bf16.gmra.mxu0 %v1377
    %v1416 = vpop.f32.mrf.mxu0
    %v1417 = vadd.f32 0.0, %v1416
    %v1418 = vpop.f32.mrf.mxu0
    %v1419 = vpop.f32.mrf.mxu0
    %v1420 = vpop.f32.mrf.mxu0
    %1421 = vdwg.mxu0
    %1423 = vrot.lane.b32.xlu0 %v270, 112
    %v1424 = vpop.permute.xlu0 %1423
    %1426 = vrot.lane.b32.xlu0 %v511, 112
    %v1427 = vpop.permute.xlu0 %1426
    %v1429 = vsel %vm517, %v1424, 0
    %v1432 = vsel %vm517, %v1427, 0
    %1434 = vmatprep.subr.bf16.mxu0 0
    %1435 = vmatpush1.bf16.xpose.msra.mxu0 0
    %1436 = vmatprep.subr.bf16.mxu0 0
    %1437 = vmatpush1.bf16.xpose.msra.mxu0 0
    %1438 = vmatprep.subr.bf16.mxu0 0
    %1439 = vmatpush1.bf16.xpose.msra.mxu0 0
    %1440 = vmatprep.subr.bf16.mxu0 0
    %1441 = vmatpush1.bf16.xpose.msra.mxu0 0
    %1442 = vmatprep.subr.bf16.mxu0 0
    %1443 = vmatpush1.bf16.xpose.msra.mxu0 0
    %1444 = vmatprep.subr.bf16.mxu0 0
    %1445 = vmatpush1.bf16.xpose.msra.mxu0 0
    %1446 = vmatprep.subr.bf16.mxu0 0
    %1447 = vmatpush1.bf16.xpose.msra.mxu0 0
    %1448 = vmatprep.subr.bf16.mxu0 0
    %1449 = vmatpush1.bf16.xpose.msra.mxu0 %v1432
    %1450 = vmatprep.subr.bf16.mxu0 0
    %1451 = vmatpush2.bf16.xpose.msra.mxu0 0
    %1452 = vmatprep.subr.bf16.mxu0 0
    %1453 = vmatpush2.bf16.xpose.msra.mxu0 0
    %1454 = vmatprep.subr.bf16.mxu0 0
    %1455 = vmatpush2.bf16.xpose.msra.mxu0 0
    %1456 = vmatprep.subr.bf16.mxu0 0
    %1457 = vmatpush2.bf16.xpose.msra.mxu0 0
    %1458 = vmatprep.subr.bf16.mxu0 0
    %1459 = vmatpush2.bf16.xpose.msra.mxu0 0
    %1460 = vmatprep.subr.bf16.mxu0 0
    %1461 = vmatpush2.bf16.xpose.msra.mxu0 0
    %1462 = vmatprep.subr.bf16.mxu0 0
    %1463 = vmatpush2.bf16.xpose.msra.mxu0 0
    %1464 = vmatprep.subr.bf16.mxu0 0
    %1465 = vmatpush2.bf16.xpose.msra.mxu0 0
    %1466 = vmatprep.mubr.bf16.mxu0 0
    %1467 = vmatmul.mubr.bf16.gmra.mxu0 %v1429
    %v1468 = vpop.f32.mrf.mxu0
    %v1469 = vadd.f32 0.0, %v1468
    %v1470 = vpop.f32.mrf.mxu0
    %v1471 = vpop.f32.mrf.mxu0
    %v1472 = vpop.f32.mrf.mxu0
    %1473 = vdwg.mxu0
    %1474 = vrot.lane.b32.xlu0 %v270, 96
    %v1475 = vpop.permute.xlu0 %1474
    %1476 = vrot.lane.b32.xlu0 %v511, 96
    %v1477 = vpop.permute.xlu0 %1476
    %v1479 = vsel %vm517, %v1475, 0
    %v1482 = vsel %vm517, %v1477, 0
    %1484 = vmatprep.subr.bf16.mxu0 0
    %1485 = vmatpush1.bf16.xpose.msra.mxu0 0
    %1486 = vmatprep.subr.bf16.mxu0 0
    %1487 = vmatpush1.bf16.xpose.msra.mxu0 0
    %1488 = vmatprep.subr.bf16.mxu0 0
    %1489 = vmatpush1.bf16.xpose.msra.mxu0 0
    %1490 = vmatprep.subr.bf16.mxu0 0
    %1491 = vmatpush1.bf16.xpose.msra.mxu0 0
    %1492 = vmatprep.subr.bf16.mxu0 0
    %1493 = vmatpush1.bf16.xpose.msra.mxu0 0
    %1494 = vmatprep.subr.bf16.mxu0 0
    %1495 = vmatpush1.bf16.xpose.msra.mxu0 0
    %1496 = vmatprep.subr.bf16.mxu0 0
    %1497 = vmatpush1.bf16.xpose.msra.mxu0 0
    %1498 = vmatprep.subr.bf16.mxu0 0
    %1499 = vmatpush1.bf16.xpose.msra.mxu0 %v1482
    %1500 = vmatprep.subr.bf16.mxu0 0
    %1501 = vmatpush2.bf16.xpose.msra.mxu0 0
    %1502 = vmatprep.subr.bf16.mxu0 0
    %1503 = vmatpush2.bf16.xpose.msra.mxu0 0
    %1504 = vmatprep.subr.bf16.mxu0 0
    %1505 = vmatpush2.bf16.xpose.msra.mxu0 0
    %1506 = vmatprep.subr.bf16.mxu0 0
    %1507 = vmatpush2.bf16.xpose.msra.mxu0 0
    %1508 = vmatprep.subr.bf16.mxu0 0
    %1509 = vmatpush2.bf16.xpose.msra.mxu0 0
    %1510 = vmatprep.subr.bf16.mxu0 0
    %1511 = vmatpush2.bf16.xpose.msra.mxu0 0
    %1512 = vmatprep.subr.bf16.mxu0 0
    %1513 = vmatpush2.bf16.xpose.msra.mxu0 0
    %1514 = vmatprep.subr.bf16.mxu0 0
    %1515 = vmatpush2.bf16.xpose.msra.mxu0 0
    %1516 = vmatprep.mubr.bf16.mxu0 0
    %1517 = vmatmul.mubr.bf16.gmra.mxu0 %v1479
    %v1518 = vpop.f32.mrf.mxu0
    %v1519 = vadd.f32 0.0, %v1518
    %v1520 = vpop.f32.mrf.mxu0
    %v1521 = vpop.f32.mrf.mxu0
    %v1522 = vpop.f32.mrf.mxu0
    %1523 = vdwg.mxu0
    %1524 = vrot.lane.b32.xlu0 %v270, 80
    %v1525 = vpop.permute.xlu0 %1524
    %1526 = vrot.lane.b32.xlu0 %v511, 80
    %v1527 = vpop.permute.xlu0 %1526
    %v1529 = vsel %vm517, %v1525, 0
    %v1532 = vsel %vm517, %v1527, 0
    %1534 = vmatprep.subr.bf16.mxu0 0
    %1535 = vmatpush1.bf16.xpose.msra.mxu0 0
    %1536 = vmatprep.subr.bf16.mxu0 0
    %1537 = vmatpush1.bf16.xpose.msra.mxu0 0
    %1538 = vmatprep.subr.bf16.mxu0 0
    %1539 = vmatpush1.bf16.xpose.msra.mxu0 0
    %1540 = vmatprep.subr.bf16.mxu0 0
    %1541 = vmatpush1.bf16.xpose.msra.mxu0 0
    %1542 = vmatprep.subr.bf16.mxu0 0
    %1543 = vmatpush1.bf16.xpose.msra.mxu0 0
    %1544 = vmatprep.subr.bf16.mxu0 0
    %1545 = vmatpush1.bf16.xpose.msra.mxu0 0
    %1546 = vmatprep.subr.bf16.mxu0 0
    %1547 = vmatpush1.bf16.xpose.msra.mxu0 0
    %1548 = vmatprep.subr.bf16.mxu0 0
    %1549 = vmatpush1.bf16.xpose.msra.mxu0 %v1532
    %1550 = vmatprep.subr.bf16.mxu0 0
    %1551 = vmatpush2.bf16.xpose.msra.mxu0 0
    %1552 = vmatprep.subr.bf16.mxu0 0
    %1553 = vmatpush2.bf16.xpose.msra.mxu0 0
    %1554 = vmatprep.subr.bf16.mxu0 0
    %1555 = vmatpush2.bf16.xpose.msra.mxu0 0
    %1556 = vmatprep.subr.bf16.mxu0 0
    %1557 = vmatpush2.bf16.xpose.msra.mxu0 0
    %1558 = vmatprep.subr.bf16.mxu0 0
    %1559 = vmatpush2.bf16.xpose.msra.mxu0 0
    %1560 = vmatprep.subr.bf16.mxu0 0
    %1561 = vmatpush2.bf16.xpose.msra.mxu0 0
    %1562 = vmatprep.subr.bf16.mxu0 0
    %1563 = vmatpush2.bf16.xpose.msra.mxu0 0
    %1564 = vmatprep.subr.bf16.mxu0 0
    %1565 = vmatpush2.bf16.xpose.msra.mxu0 0
    %1566 = vmatprep.mubr.bf16.mxu0 0
    %1567 = vmatmul.mubr.bf16.gmra.mxu0 %v1529
    %v1568 = vpop.f32.mrf.mxu0
    %v1569 = vadd.f32 0.0, %v1568
    %v1570 = vpop.f32.mrf.mxu0
    %v1571 = vpop.f32.mrf.mxu0
    %v1572 = vpop.f32.mrf.mxu0
    %1573 = vdwg.mxu0
    %v1574 = vsel %vm517, %v1417, -inf
    %1575 = vmax.xlane.f32.xlu0 %v1574
    %v1576 = vpop.xlane.xlu0 %1575
    %v1577 = vsel %vm517, %v1469, -inf
    %1578 = vmax.xlane.f32.xlu0 %v1577
    %v1579 = vpop.xlane.xlu0 %1578
    %v1580 = vsel %vm517, %v1519, -inf
    %1581 = vmax.xlane.f32.xlu0 %v1580
    %v1582 = vpop.xlane.xlu0 %1581
    %v1583 = vsel %vm517, %v1569, -inf
    %1584 = vmax.xlane.f32.xlu0 %v1583
    %v1585 = vpop.xlane.xlu0 %1584
    %v1586 = vsub.f32 %v1417, %v1576
    %v1587 = vsub.f32 %v1469, %v1579
    %v1588 = vsub.f32 %v1519, %v1582
    %v1589 = vsub.f32 %v1569, %v1585
    %v1590 = vmul.f32 %v1586, 1.442695
    %v1591 = vpow.pop %v1590
    %v1592 = vmul.f32 %v1587, 1.442695
    %v1593 = vpow.pop %v1592
    %v1594 = vmul.f32 %v1588, 1.442695
    %v1595 = vpow.pop %v1594
    %v1596 = vmul.f32 %v1589, 1.442695
    %v1597 = vpow.pop %v1596
    %v1598 = vsel %vm517, %v1591, 0.0
    %1599 = vadd.xlane.f32.xlu0 %v1598
    %v1600 = vpop.xlane.xlu0 %1599
    %v1601 = vsel %vm517, %v1593, 0.0
    %1602 = vadd.xlane.f32.xlu0 %v1601
    %v1603 = vpop.xlane.xlu0 %1602
    %v1604 = vsel %vm517, %v1595, 0.0
    %1605 = vadd.xlane.f32.xlu0 %v1604
    %v1606 = vpop.xlane.xlu0 %1605
    %v1607 = vsel %vm517, %v1597, 0.0
    %1608 = vadd.xlane.f32.xlu0 %v1607
    %v1609 = vpop.xlane.xlu0 %1608
    %v1610 = vrcp.pop %v1600
    %v1611 = vrcp.pop %v1603
    %v1612 = vrcp.pop %v1606
    %v1613 = vrcp.pop %v1609
    %v1614 = vmul.f32 %v1591, %v1610
    %v1615 = vmul.f32 %v1593, %v1611
    %v1616 = vmul.f32 %v1595, %v1612
    %v1617 = vmul.f32 %v1597, %v1613
    %v1618 = vpack.c.bf16 %v1615, %v1614
    %v1619 = vpack.c.bf16 %v1617, %v1616
    %v1621 = vrot.slane %v1618, 4
    %v1623 = vsel %vm517, %v1621, 0
    %1625 = vmatprep.subr.bf16.mxu0 0
    %1626 = vmatpush1.bf16.msra.mxu0 0
    %1627 = vmatprep.subr.bf16.mxu0 0
    %1628 = vmatpush1.bf16.msra.mxu0 0
    %1629 = vmatprep.subr.bf16.mxu0 0
    %1630 = vmatpush1.bf16.msra.mxu0 0
    %1631 = vmatprep.subr.bf16.mxu0 0
    %1632 = vmatpush1.bf16.msra.mxu0 0
    %1633 = vmatprep.subr.bf16.mxu0 0
    %1634 = vmatpush1.bf16.msra.mxu0 0
    %1635 = vmatprep.subr.bf16.mxu0 0
    %1636 = vmatpush1.bf16.msra.mxu0 0
    %1637 = vmatprep.subr.bf16.mxu0 0
    %1638 = vmatpush1.bf16.msra.mxu0 0
    %1639 = vmatprep.subr.bf16.mxu0 0
    %1640 = vmatpush1.bf16.msra.mxu0 %v512
    %1641 = vmatprep.subr.bf16.mxu0 0
    %1642 = vmatpush2.bf16.msra.mxu0 0
    %1643 = vmatprep.subr.bf16.mxu0 0
    %1644 = vmatpush2.bf16.msra.mxu0 0
    %1645 = vmatprep.subr.bf16.mxu0 0
    %1646 = vmatpush2.bf16.msra.mxu0 0
    %1647 = vmatprep.subr.bf16.mxu0 0
    %1648 = vmatpush2.bf16.msra.mxu0 0
    %1649 = vmatprep.subr.bf16.mxu0 0
    %1650 = vmatpush2.bf16.msra.mxu0 0
    %1651 = vmatprep.subr.bf16.mxu0 0
    %1652 = vmatpush2.bf16.msra.mxu0 0
    %1653 = vmatprep.subr.bf16.mxu0 0
    %1654 = vmatpush2.bf16.msra.mxu0 0
    %1655 = vmatprep.subr.bf16.mxu0 0
    %1656 = vmatpush2.bf16.msra.mxu0 0
    %1657 = vmatprep.mubr.bf16.mxu0 0
    %1658 = vmatmul.mubr.bf16.gmra.mxu0 %v1623
    %v1659 = vpop.f32.mrf.mxu0
    %v1660 = vadd.f32 0.0, %v1659
    %v1661 = vpop.f32.mrf.mxu0
    %v1662 = vpop.f32.mrf.mxu0
    %v1663 = vpop.f32.mrf.mxu0
    %1664 = vdwg.mxu0
    %1665 = vrot.lane.b32.xlu0 %v511, 64
    %v1666 = vpop.permute.xlu0 %1665
    %v1669 = vsel %vm517, %v1618, 0
    %1671 = vmatprep.subr.bf16.mxu0 0
    %1672 = vmatpush1.bf16.msra.mxu0 0
    %1673 = vmatprep.subr.bf16.mxu0 0
    %1674 = vmatpush1.bf16.msra.mxu0 0
    %1675 = vmatprep.subr.bf16.mxu0 0
    %1676 = vmatpush1.bf16.msra.mxu0 0
    %1677 = vmatprep.subr.bf16.mxu0 0
    %1678 = vmatpush1.bf16.msra.mxu0 0
    %1679 = vmatprep.subr.bf16.mxu0 0
    %1680 = vmatpush1.bf16.msra.mxu0 0
    %1681 = vmatprep.subr.bf16.mxu0 0
    %1682 = vmatpush1.bf16.msra.mxu0 0
    %1683 = vmatprep.subr.bf16.mxu0 0
    %1684 = vmatpush1.bf16.msra.mxu0 0
    %1685 = vmatprep.subr.bf16.mxu0 0
    %1686 = vmatpush1.bf16.msra.mxu0 %v1666
    %1687 = vmatprep.subr.bf16.mxu0 0
    %1688 = vmatpush2.bf16.msra.mxu0 0
    %1689 = vmatprep.subr.bf16.mxu0 0
    %1690 = vmatpush2.bf16.msra.mxu0 0
    %1691 = vmatprep.subr.bf16.mxu0 0
    %1692 = vmatpush2.bf16.msra.mxu0 0
    %1693 = vmatprep.subr.bf16.mxu0 0
    %1694 = vmatpush2.bf16.msra.mxu0 0
    %1695 = vmatprep.subr.bf16.mxu0 0
    %1696 = vmatpush2.bf16.msra.mxu0 0
    %1697 = vmatprep.subr.bf16.mxu0 0
    %1698 = vmatpush2.bf16.msra.mxu0 0
    %1699 = vmatprep.subr.bf16.mxu0 0
    %1700 = vmatpush2.bf16.msra.mxu0 0
    %1701 = vmatprep.subr.bf16.mxu0 0
    %1702 = vmatpush2.bf16.msra.mxu0 0
    %1703 = vmatprep.mubr.bf16.mxu0 0
    %1704 = vmatmul.mubr.bf16.gmra.mxu0 %v1669
    %v1705 = vpop.f32.mrf.mxu0
    %v1706 = vadd.f32 %v1660, %v1705
    %v1707 = vpop.f32.mrf.mxu0
    %v1708 = vpop.f32.mrf.mxu0
    %v1709 = vpop.f32.mrf.mxu0
    %1710 = vdwg.mxu0
    %1712 = vrot.lane.b32.xlu0 %v512, 64
    %v1713 = vpop.permute.xlu0 %1712
    %v1716 = vsel %vm517, %v1619, 0
    %1718 = vmatprep.subr.bf16.mxu0 0
    %1719 = vmatpush1.bf16.msra.mxu0 0
    %1720 = vmatprep.subr.bf16.mxu0 0
    %1721 = vmatpush1.bf16.msra.mxu0 0
    %1722 = vmatprep.subr.bf16.mxu0 0
    %1723 = vmatpush1.bf16.msra.mxu0 0
    %1724 = vmatprep.subr.bf16.mxu0 0
    %1725 = vmatpush1.bf16.msra.mxu0 0
    %1726 = vmatprep.subr.bf16.mxu0 0
    %1727 = vmatpush1.bf16.msra.mxu0 0
    %1728 = vmatprep.subr.bf16.mxu0 0
    %1729 = vmatpush1.bf16.msra.mxu0 0
    %1730 = vmatprep.subr.bf16.mxu0 0
    %1731 = vmatpush1.bf16.msra.mxu0 0
    %1732 = vmatprep.subr.bf16.mxu0 0
    %1733 = vmatpush1.bf16.msra.mxu0 %v1713
    %1734 = vmatprep.subr.bf16.mxu0 0
    %1735 = vmatpush2.bf16.msra.mxu0 0
    %1736 = vmatprep.subr.bf16.mxu0 0
    %1737 = vmatpush2.bf16.msra.mxu0 0
    %1738 = vmatprep.subr.bf16.mxu0 0
    %1739 = vmatpush2.bf16.msra.mxu0 0
    %1740 = vmatprep.subr.bf16.mxu0 0
    %1741 = vmatpush2.bf16.msra.mxu0 0
    %1742 = vmatprep.subr.bf16.mxu0 0
    %1743 = vmatpush2.bf16.msra.mxu0 0
    %1744 = vmatprep.subr.bf16.mxu0 0
    %1745 = vmatpush2.bf16.msra.mxu0 0
    %1746 = vmatprep.subr.bf16.mxu0 0
    %1747 = vmatpush2.bf16.msra.mxu0 0
    %1748 = vmatprep.subr.bf16.mxu0 0
    %1749 = vmatpush2.bf16.msra.mxu0 0
    %1750 = vmatprep.mubr.bf16.mxu0 0
    %1751 = vmatmul.mubr.bf16.gmra.mxu0 %v1716
    %v1752 = vpop.f32.mrf.mxu0
    %v1753 = vadd.f32 0.0, %v1752
    %v1754 = vpop.f32.mrf.mxu0
    %v1755 = vpop.f32.mrf.mxu0
    %v1756 = vpop.f32.mrf.mxu0
    %1757 = vdwg.mxu0
    %v1758 = vadd.f32 %v1706, %v1753
    %v1760 = vrot.slane %v1619, 4
    %v1762 = vsel %vm517, %v1760, 0
    %1764 = vmatprep.subr.bf16.mxu0 0
    %1765 = vmatpush1.bf16.msra.mxu0 0
    %1766 = vmatprep.subr.bf16.mxu0 0
    %1767 = vmatpush1.bf16.msra.mxu0 0
    %1768 = vmatprep.subr.bf16.mxu0 0
    %1769 = vmatpush1.bf16.msra.mxu0 0
    %1770 = vmatprep.subr.bf16.mxu0 0
    %1771 = vmatpush1.bf16.msra.mxu0 0
    %1772 = vmatprep.subr.bf16.mxu0 0
    %1773 = vmatpush1.bf16.msra.mxu0 0
    %1774 = vmatprep.subr.bf16.mxu0 0
    %1775 = vmatpush1.bf16.msra.mxu0 0
    %1776 = vmatprep.subr.bf16.mxu0 0
    %1777 = vmatpush1.bf16.msra.mxu0 0
    %1778 = vmatprep.subr.bf16.mxu0 0
    %1779 = vmatpush1.bf16.msra.mxu0 %v513
    %1780 = vmatprep.subr.bf16.mxu0 0
    %1781 = vmatpush2.bf16.msra.mxu0 0
    %1782 = vmatprep.subr.bf16.mxu0 0
    %1783 = vmatpush2.bf16.msra.mxu0 0
    %1784 = vmatprep.subr.bf16.mxu0 0
    %1785 = vmatpush2.bf16.msra.mxu0 0
    %1786 = vmatprep.subr.bf16.mxu0 0
    %1787 = vmatpush2.bf16.msra.mxu0 0
    %1788 = vmatprep.subr.bf16.mxu0 0
    %1789 = vmatpush2.bf16.msra.mxu0 0
    %1790 = vmatprep.subr.bf16.mxu0 0
    %1791 = vmatpush2.bf16.msra.mxu0 0
    %1792 = vmatprep.subr.bf16.mxu0 0
    %1793 = vmatpush2.bf16.msra.mxu0 0
    %1794 = vmatprep.subr.bf16.mxu0 0
    %1795 = vmatpush2.bf16.msra.mxu0 0
    %1796 = vmatprep.mubr.bf16.mxu0 0
    %1797 = vmatmul.mubr.bf16.gmra.mxu0 %v1762
    %v1798 = vpop.f32.mrf.mxu0
    %v1799 = vadd.f32 0.0, %v1798
    %v1800 = vpop.f32.mrf.mxu0
    %v1801 = vpop.f32.mrf.mxu0
    %v1802 = vpop.f32.mrf.mxu0
    %1803 = vdwg.mxu0
    %v1804 = vadd.f32 %v1758, %v1799
    %v1805 = vrot.slane %v270, 4
    %v1807 = vsel %vm517, %v1805, 0
    %v1810 = vsel %vm517, %v514, 0
    %1812 = vmatprep.subr.bf16.mxu0 0
    %1813 = vmatpush1.bf16.xpose.msra.mxu0 0
    %1814 = vmatprep.subr.bf16.mxu0 0
    %1815 = vmatpush1.bf16.xpose.msra.mxu0 0
    %1816 = vmatprep.subr.bf16.mxu0 0
    %1817 = vmatpush1.bf16.xpose.msra.mxu0 0
    %1818 = vmatprep.subr.bf16.mxu0 0
    %1819 = vmatpush1.bf16.xpose.msra.mxu0 0
    %1820 = vmatprep.subr.bf16.mxu0 0
    %1821 = vmatpush1.bf16.xpose.msra.mxu0 0
    %1822 = vmatprep.subr.bf16.mxu0 0
    %1823 = vmatpush1.bf16.xpose.msra.mxu0 0
    %1824 = vmatprep.subr.bf16.mxu0 0
    %1825 = vmatpush1.bf16.xpose.msra.mxu0 0
    %1826 = vmatprep.subr.bf16.mxu0 0
    %1827 = vmatpush1.bf16.xpose.msra.mxu0 %v1810
    %1828 = vmatprep.subr.bf16.mxu0 0
    %1829 = vmatpush2.bf16.xpose.msra.mxu0 0
    %1830 = vmatprep.subr.bf16.mxu0 0
    %1831 = vmatpush2.bf16.xpose.msra.mxu0 0
    %1832 = vmatprep.subr.bf16.mxu0 0
    %1833 = vmatpush2.bf16.xpose.msra.mxu0 0
    %1834 = vmatprep.subr.bf16.mxu0 0
    %1835 = vmatpush2.bf16.xpose.msra.mxu0 0
    %1836 = vmatprep.subr.bf16.mxu0 0
    %1837 = vmatpush2.bf16.xpose.msra.mxu0 0
    %1838 = vmatprep.subr.bf16.mxu0 0
    %1839 = vmatpush2.bf16.xpose.msra.mxu0 0
    %1840 = vmatprep.subr.bf16.mxu0 0
    %1841 = vmatpush2.bf16.xpose.msra.mxu0 0
    %1842 = vmatprep.subr.bf16.mxu0 0
    %1843 = vmatpush2.bf16.xpose.msra.mxu0 0
    %1844 = vmatprep.mubr.bf16.mxu0 0
    %1845 = vmatmul.mubr.bf16.gmra.mxu0 %v1807
    %v1846 = vpop.f32.mrf.mxu0
    %v1847 = vadd.f32 0.0, %v1846
    %v1848 = vpop.f32.mrf.mxu0
    %v1849 = vpop.f32.mrf.mxu0
    %v1850 = vpop.f32.mrf.mxu0
    %1851 = vdwg.mxu0
    %1852 = vrot.lane.b32.xlu0 %v1805, 112
    %v1853 = vpop.permute.xlu0 %1852
    %1855 = vrot.lane.b32.xlu0 %v514, 112
    %v1856 = vpop.permute.xlu0 %1855
    %v1858 = vsel %vm517, %v1853, 0
    %v1861 = vsel %vm517, %v1856, 0
    %1863 = vmatprep.subr.bf16.mxu0 0
    %1864 = vmatpush1.bf16.xpose.msra.mxu0 0
    %1865 = vmatprep.subr.bf16.mxu0 0
    %1866 = vmatpush1.bf16.xpose.msra.mxu0 0
    %1867 = vmatprep.subr.bf16.mxu0 0
    %1868 = vmatpush1.bf16.xpose.msra.mxu0 0
    %1869 = vmatprep.subr.bf16.mxu0 0
    %1870 = vmatpush1.bf16.xpose.msra.mxu0 0
    %1871 = vmatprep.subr.bf16.mxu0 0
    %1872 = vmatpush1.bf16.xpose.msra.mxu0 0
    %1873 = vmatprep.subr.bf16.mxu0 0
    %1874 = vmatpush1.bf16.xpose.msra.mxu0 0
    %1875 = vmatprep.subr.bf16.mxu0 0
    %1876 = vmatpush1.bf16.xpose.msra.mxu0 0
    %1877 = vmatprep.subr.bf16.mxu0 0
    %1878 = vmatpush1.bf16.xpose.msra.mxu0 %v1861
    %1879 = vmatprep.subr.bf16.mxu0 0
    %1880 = vmatpush2.bf16.xpose.msra.mxu0 0
    %1881 = vmatprep.subr.bf16.mxu0 0
    %1882 = vmatpush2.bf16.xpose.msra.mxu0 0
    %1883 = vmatprep.subr.bf16.mxu0 0
    %1884 = vmatpush2.bf16.xpose.msra.mxu0 0
    %1885 = vmatprep.subr.bf16.mxu0 0
    %1886 = vmatpush2.bf16.xpose.msra.mxu0 0
    %1887 = vmatprep.subr.bf16.mxu0 0
    %1888 = vmatpush2.bf16.xpose.msra.mxu0 0
    %1889 = vmatprep.subr.bf16.mxu0 0
    %1890 = vmatpush2.bf16.xpose.msra.mxu0 0
    %1891 = vmatprep.subr.bf16.mxu0 0
    %1892 = vmatpush2.bf16.xpose.msra.mxu0 0
    %1893 = vmatprep.subr.bf16.mxu0 0
    %1894 = vmatpush2.bf16.xpose.msra.mxu0 0
    %1895 = vmatprep.mubr.bf16.mxu0 0
    %1896 = vmatmul.mubr.bf16.gmra.mxu0 %v1858
    %v1897 = vpop.f32.mrf.mxu0
    %v1898 = vadd.f32 0.0, %v1897
    %v1899 = vpop.f32.mrf.mxu0
    %v1900 = vpop.f32.mrf.mxu0
    %v1901 = vpop.f32.mrf.mxu0
    %1902 = vdwg.mxu0
    %1903 = vrot.lane.b32.xlu0 %v1805, 96
    %v1904 = vpop.permute.xlu0 %1903
    %1905 = vrot.lane.b32.xlu0 %v514, 96
    %v1906 = vpop.permute.xlu0 %1905
    %v1908 = vsel %vm517, %v1904, 0
    %v1911 = vsel %vm517, %v1906, 0
    %1913 = vmatprep.subr.bf16.mxu0 0
    %1914 = vmatpush1.bf16.xpose.msra.mxu0 0
    %1915 = vmatprep.subr.bf16.mxu0 0
    %1916 = vmatpush1.bf16.xpose.msra.mxu0 0
    %1917 = vmatprep.subr.bf16.mxu0 0
    %1918 = vmatpush1.bf16.xpose.msra.mxu0 0
    %1919 = vmatprep.subr.bf16.mxu0 0
    %1920 = vmatpush1.bf16.xpose.msra.mxu0 0
    %1921 = vmatprep.subr.bf16.mxu0 0
    %1922 = vmatpush1.bf16.xpose.msra.mxu0 0
    %1923 = vmatprep.subr.bf16.mxu0 0
    %1924 = vmatpush1.bf16.xpose.msra.mxu0 0
    %1925 = vmatprep.subr.bf16.mxu0 0
    %1926 = vmatpush1.bf16.xpose.msra.mxu0 0
    %1927 = vmatprep.subr.bf16.mxu0 0
    %1928 = vmatpush1.bf16.xpose.msra.mxu0 %v1911
    %1929 = vmatprep.subr.bf16.mxu0 0
    %1930 = vmatpush2.bf16.xpose.msra.mxu0 0
    %1931 = vmatprep.subr.bf16.mxu0 0
    %1932 = vmatpush2.bf16.xpose.msra.mxu0 0
    %1933 = vmatprep.subr.bf16.mxu0 0
    %1934 = vmatpush2.bf16.xpose.msra.mxu0 0
    %1935 = vmatprep.subr.bf16.mxu0 0
    %1936 = vmatpush2.bf16.xpose.msra.mxu0 0
    %1937 = vmatprep.subr.bf16.mxu0 0
    %1938 = vmatpush2.bf16.xpose.msra.mxu0 0
    %1939 = vmatprep.subr.bf16.mxu0 0
    %1940 = vmatpush2.bf16.xpose.msra.mxu0 0
    %1941 = vmatprep.subr.bf16.mxu0 0
    %1942 = vmatpush2.bf16.xpose.msra.mxu0 0
    %1943 = vmatprep.subr.bf16.mxu0 0
    %1944 = vmatpush2.bf16.xpose.msra.mxu0 0
    %1945 = vmatprep.mubr.bf16.mxu0 0
    %1946 = vmatmul.mubr.bf16.gmra.mxu0 %v1908
    %v1947 = vpop.f32.mrf.mxu0
    %v1948 = vadd.f32 0.0, %v1947
    %v1949 = vpop.f32.mrf.mxu0
    %v1950 = vpop.f32.mrf.mxu0
    %v1951 = vpop.f32.mrf.mxu0
    %1952 = vdwg.mxu0
    %1953 = vrot.lane.b32.xlu0 %v1805, 80
    %v1954 = vpop.permute.xlu0 %1953
    %1955 = vrot.lane.b32.xlu0 %v514, 80
    %v1956 = vpop.permute.xlu0 %1955
    %v1958 = vsel %vm517, %v1954, 0
    %v1961 = vsel %vm517, %v1956, 0
    %1963 = vmatprep.subr.bf16.mxu0 0
    %1964 = vmatpush1.bf16.xpose.msra.mxu0 0
    %1965 = vmatprep.subr.bf16.mxu0 0
    %1966 = vmatpush1.bf16.xpose.msra.mxu0 0
    %1967 = vmatprep.subr.bf16.mxu0 0
    %1968 = vmatpush1.bf16.xpose.msra.mxu0 0
    %1969 = vmatprep.subr.bf16.mxu0 0
    %1970 = vmatpush1.bf16.xpose.msra.mxu0 0
    %1971 = vmatprep.subr.bf16.mxu0 0
    %1972 = vmatpush1.bf16.xpose.msra.mxu0 0
    %1973 = vmatprep.subr.bf16.mxu0 0
    %1974 = vmatpush1.bf16.xpose.msra.mxu0 0
    %1975 = vmatprep.subr.bf16.mxu0 0
    %1976 = vmatpush1.bf16.xpose.msra.mxu0 0
    %1977 = vmatprep.subr.bf16.mxu0 0
    %1978 = vmatpush1.bf16.xpose.msra.mxu0 %v1961
    %1979 = vmatprep.subr.bf16.mxu0 0
    %1980 = vmatpush2.bf16.xpose.msra.mxu0 0
    %1981 = vmatprep.subr.bf16.mxu0 0
    %1982 = vmatpush2.bf16.xpose.msra.mxu0 0
    %1983 = vmatprep.subr.bf16.mxu0 0
    %1984 = vmatpush2.bf16.xpose.msra.mxu0 0
    %1985 = vmatprep.subr.bf16.mxu0 0
    %1986 = vmatpush2.bf16.xpose.msra.mxu0 0
    %1987 = vmatprep.subr.bf16.mxu0 0
    %1988 = vmatpush2.bf16.xpose.msra.mxu0 0
    %1989 = vmatprep.subr.bf16.mxu0 0
    %1990 = vmatpush2.bf16.xpose.msra.mxu0 0
    %1991 = vmatprep.subr.bf16.mxu0 0
    %1992 = vmatpush2.bf16.xpose.msra.mxu0 0
    %1993 = vmatprep.subr.bf16.mxu0 0
    %1994 = vmatpush2.bf16.xpose.msra.mxu0 0
    %1995 = vmatprep.mubr.bf16.mxu0 0
    %1996 = vmatmul.mubr.bf16.gmra.mxu0 %v1958
    %v1997 = vpop.f32.mrf.mxu0
    %v1998 = vadd.f32 0.0, %v1997
    %v1999 = vpop.f32.mrf.mxu0
    %v2000 = vpop.f32.mrf.mxu0
    %v2001 = vpop.f32.mrf.mxu0
    %2002 = vdwg.mxu0
    %v2003 = vsel %vm517, %v1847, -inf
    %2004 = vmax.xlane.f32.xlu0 %v2003
    %v2005 = vpop.xlane.xlu0 %2004
    %v2006 = vsel %vm517, %v1898, -inf
    %2007 = vmax.xlane.f32.xlu0 %v2006
    %v2008 = vpop.xlane.xlu0 %2007
    %v2009 = vsel %vm517, %v1948, -inf
    %2010 = vmax.xlane.f32.xlu0 %v2009
    %v2011 = vpop.xlane.xlu0 %2010
    %v2012 = vsel %vm517, %v1998, -inf
    %2013 = vmax.xlane.f32.xlu0 %v2012
    %v2014 = vpop.xlane.xlu0 %2013
    %v2015 = vsub.f32 %v1847, %v2005
    %v2016 = vsub.f32 %v1898, %v2008
    %v2017 = vsub.f32 %v1948, %v2011
    %v2018 = vsub.f32 %v1998, %v2014
    %v2019 = vmul.f32 %v2015, 1.442695
    %v2020 = vpow.pop %v2019
    %v2021 = vmul.f32 %v2016, 1.442695
    %v2022 = vpow.pop %v2021
    %v2023 = vmul.f32 %v2017, 1.442695
    %v2024 = vpow.pop %v2023
    %v2025 = vmul.f32 %v2018, 1.442695
    %v2026 = vpow.pop %v2025
    %v2027 = vsel %vm517, %v2020, 0.0
    %2028 = vadd.xlane.f32.xlu0 %v2027
    %v2029 = vpop.xlane.xlu0 %2028
    %v2030 = vsel %vm517, %v2022, 0.0
    %2031 = vadd.xlane.f32.xlu0 %v2030
    %v2032 = vpop.xlane.xlu0 %2031
    %v2033 = vsel %vm517, %v2024, 0.0
    %2034 = vadd.xlane.f32.xlu0 %v2033
    %v2035 = vpop.xlane.xlu0 %2034
    %v2036 = vsel %vm517, %v2026, 0.0
    %2037 = vadd.xlane.f32.xlu0 %v2036
    %v2038 = vpop.xlane.xlu0 %2037
    %v2039 = vrcp.pop %v2029
    %v2040 = vrcp.pop %v2032
    %v2041 = vrcp.pop %v2035
    %v2042 = vrcp.pop %v2038
    %v2043 = vmul.f32 %v2020, %v2039
    %v2044 = vmul.f32 %v2022, %v2040
    %v2045 = vmul.f32 %v2024, %v2041
    %v2046 = vmul.f32 %v2026, %v2042
    %v2047 = vpack.c.bf16 %v2044, %v2043
    %v2048 = vpack.c.bf16 %v2046, %v2045
    %v2050 = vrot.slane %v2047, 4
    %v2052 = vsel %vm517, %v2050, 0
    %2054 = vmatprep.subr.bf16.mxu0 0
    %2055 = vmatpush1.bf16.msra.mxu0 0
    %2056 = vmatprep.subr.bf16.mxu0 0
    %2057 = vmatpush1.bf16.msra.mxu0 0
    %2058 = vmatprep.subr.bf16.mxu0 0
    %2059 = vmatpush1.bf16.msra.mxu0 0
    %2060 = vmatprep.subr.bf16.mxu0 0
    %2061 = vmatpush1.bf16.msra.mxu0 0
    %2062 = vmatprep.subr.bf16.mxu0 0
    %2063 = vmatpush1.bf16.msra.mxu0 0
    %2064 = vmatprep.subr.bf16.mxu0 0
    %2065 = vmatpush1.bf16.msra.mxu0 0
    %2066 = vmatprep.subr.bf16.mxu0 0
    %2067 = vmatpush1.bf16.msra.mxu0 0
    %2068 = vmatprep.subr.bf16.mxu0 0
    %2069 = vmatpush1.bf16.msra.mxu0 %v515
    %2070 = vmatprep.subr.bf16.mxu0 0
    %2071 = vmatpush2.bf16.msra.mxu0 0
    %2072 = vmatprep.subr.bf16.mxu0 0
    %2073 = vmatpush2.bf16.msra.mxu0 0
    %2074 = vmatprep.subr.bf16.mxu0 0
    %2075 = vmatpush2.bf16.msra.mxu0 0
    %2076 = vmatprep.subr.bf16.mxu0 0
    %2077 = vmatpush2.bf16.msra.mxu0 0
    %2078 = vmatprep.subr.bf16.mxu0 0
    %2079 = vmatpush2.bf16.msra.mxu0 0
    %2080 = vmatprep.subr.bf16.mxu0 0
    %2081 = vmatpush2.bf16.msra.mxu0 0
    %2082 = vmatprep.subr.bf16.mxu0 0
    %2083 = vmatpush2.bf16.msra.mxu0 0
    %2084 = vmatprep.subr.bf16.mxu0 0
    %2085 = vmatpush2.bf16.msra.mxu0 0
    %2086 = vmatprep.mubr.bf16.mxu0 0
    %2087 = vmatmul.mubr.bf16.gmra.mxu0 %v2052
    %v2088 = vpop.f32.mrf.mxu0
    %v2089 = vadd.f32 0.0, %v2088
    %v2090 = vpop.f32.mrf.mxu0
    %v2091 = vpop.f32.mrf.mxu0
    %v2092 = vpop.f32.mrf.mxu0
    %2093 = vdwg.mxu0
    %2094 = vrot.lane.b32.xlu0 %v514, 64
    %v2095 = vpop.permute.xlu0 %2094
    %v2098 = vsel %vm517, %v2047, 0
    %2100 = vmatprep.subr.bf16.mxu0 0
    %2101 = vmatpush1.bf16.msra.mxu0 0
    %2102 = vmatprep.subr.bf16.mxu0 0
    %2103 = vmatpush1.bf16.msra.mxu0 0
    %2104 = vmatprep.subr.bf16.mxu0 0
    %2105 = vmatpush1.bf16.msra.mxu0 0
    %2106 = vmatprep.subr.bf16.mxu0 0
    %2107 = vmatpush1.bf16.msra.mxu0 0
    %2108 = vmatprep.subr.bf16.mxu0 0
    %2109 = vmatpush1.bf16.msra.mxu0 0
    %2110 = vmatprep.subr.bf16.mxu0 0
    %2111 = vmatpush1.bf16.msra.mxu0 0
    %2112 = vmatprep.subr.bf16.mxu0 0
    %2113 = vmatpush1.bf16.msra.mxu0 0
    %2114 = vmatprep.subr.bf16.mxu0 0
    %2115 = vmatpush1.bf16.msra.mxu0 %v2095
    %2116 = vmatprep.subr.bf16.mxu0 0
    %2117 = vmatpush2.bf16.msra.mxu0 0
    %2118 = vmatprep.subr.bf16.mxu0 0
    %2119 = vmatpush2.bf16.msra.mxu0 0
    %2120 = vmatprep.subr.bf16.mxu0 0
    %2121 = vmatpush2.bf16.msra.mxu0 0
    %2122 = vmatprep.subr.bf16.mxu0 0
    %2123 = vmatpush2.bf16.msra.mxu0 0
    %2124 = vmatprep.subr.bf16.mxu0 0
    %2125 = vmatpush2.bf16.msra.mxu0 0
    %2126 = vmatprep.subr.bf16.mxu0 0
    %2127 = vmatpush2.bf16.msra.mxu0 0
    %2128 = vmatprep.subr.bf16.mxu0 0
    %2129 = vmatpush2.bf16.msra.mxu0 0
    %2130 = vmatprep.subr.bf16.mxu0 0
    %2131 = vmatpush2.bf16.msra.mxu0 0
    %2132 = vmatprep.mubr.bf16.mxu0 0
    %2133 = vmatmul.mubr.bf16.gmra.mxu0 %v2098
    %v2134 = vpop.f32.mrf.mxu0
    %v2135 = vadd.f32 %v2089, %v2134
    %v2136 = vpop.f32.mrf.mxu0
    %v2137 = vpop.f32.mrf.mxu0
    %v2138 = vpop.f32.mrf.mxu0
    %2139 = vdwg.mxu0
    %2141 = vrot.lane.b32.xlu0 %v515, 64
    %v2142 = vpop.permute.xlu0 %2141
    %v2145 = vsel %vm517, %v2048, 0
    %2147 = vmatprep.subr.bf16.mxu0 0
    %2148 = vmatpush1.bf16.msra.mxu0 0
    %2149 = vmatprep.subr.bf16.mxu0 0
    %2150 = vmatpush1.bf16.msra.mxu0 0
    %2151 = vmatprep.subr.bf16.mxu0 0
    %2152 = vmatpush1.bf16.msra.mxu0 0
    %2153 = vmatprep.subr.bf16.mxu0 0
    %2154 = vmatpush1.bf16.msra.mxu0 0
    %2155 = vmatprep.subr.bf16.mxu0 0
    %2156 = vmatpush1.bf16.msra.mxu0 0
    %2157 = vmatprep.subr.bf16.mxu0 0
    %2158 = vmatpush1.bf16.msra.mxu0 0
    %2159 = vmatprep.subr.bf16.mxu0 0
    %2160 = vmatpush1.bf16.msra.mxu0 0
    %2161 = vmatprep.subr.bf16.mxu0 0
    %2162 = vmatpush1.bf16.msra.mxu0 %v2142
    %2163 = vmatprep.subr.bf16.mxu0 0
    %2164 = vmatpush2.bf16.msra.mxu0 0
    %2165 = vmatprep.subr.bf16.mxu0 0
    %2166 = vmatpush2.bf16.msra.mxu0 0
    %2167 = vmatprep.subr.bf16.mxu0 0
    %2168 = vmatpush2.bf16.msra.mxu0 0
    %2169 = vmatprep.subr.bf16.mxu0 0
    %2170 = vmatpush2.bf16.msra.mxu0 0
    %2171 = vmatprep.subr.bf16.mxu0 0
    %2172 = vmatpush2.bf16.msra.mxu0 0
    %2173 = vmatprep.subr.bf16.mxu0 0
    %2174 = vmatpush2.bf16.msra.mxu0 0
    %2175 = vmatprep.subr.bf16.mxu0 0
    %2176 = vmatpush2.bf16.msra.mxu0 0
    %2177 = vmatprep.subr.bf16.mxu0 0
    %2178 = vmatpush2.bf16.msra.mxu0 0
    %2179 = vmatprep.mubr.bf16.mxu0 0
    %2180 = vmatmul.mubr.bf16.gmra.mxu0 %v2145
    %v2181 = vpop.f32.mrf.mxu0
    %v2182 = vadd.f32 0.0, %v2181
    %v2183 = vpop.f32.mrf.mxu0
    %v2184 = vpop.f32.mrf.mxu0
    %v2185 = vpop.f32.mrf.mxu0
    %2186 = vdwg.mxu0
    %v2187 = vadd.f32 %v2135, %v2182
    %v2189 = vrot.slane %v2048, 4
    %v2191 = vsel %vm517, %v2189, 0
    %2193 = vmatprep.subr.bf16.mxu0 0
    %2194 = vmatpush1.bf16.msra.mxu0 0
    %2195 = vmatprep.subr.bf16.mxu0 0
    %2196 = vmatpush1.bf16.msra.mxu0 0
    %2197 = vmatprep.subr.bf16.mxu0 0
    %2198 = vmatpush1.bf16.msra.mxu0 0
    %2199 = vmatprep.subr.bf16.mxu0 0
    %2200 = vmatpush1.bf16.msra.mxu0 0
    %2201 = vmatprep.subr.bf16.mxu0 0
    %2202 = vmatpush1.bf16.msra.mxu0 0
    %2203 = vmatprep.subr.bf16.mxu0 0
    %2204 = vmatpush1.bf16.msra.mxu0 0
    %2205 = vmatprep.subr.bf16.mxu0 0
    %2206 = vmatpush1.bf16.msra.mxu0 0
    %2207 = vmatprep.subr.bf16.mxu0 0
    %2208 = vmatpush1.bf16.msra.mxu0 %v516
    %2209 = vmatprep.subr.bf16.mxu0 0
    %2210 = vmatpush2.bf16.msra.mxu0 0
    %2211 = vmatprep.subr.bf16.mxu0 0
    %2212 = vmatpush2.bf16.msra.mxu0 0
    %2213 = vmatprep.subr.bf16.mxu0 0
    %2214 = vmatpush2.bf16.msra.mxu0 0
    %2215 = vmatprep.subr.bf16.mxu0 0
    %2216 = vmatpush2.bf16.msra.mxu0 0
    %2217 = vmatprep.subr.bf16.mxu0 0
    %2218 = vmatpush2.bf16.msra.mxu0 0
    %2219 = vmatprep.subr.bf16.mxu0 0
    %2220 = vmatpush2.bf16.msra.mxu0 0
    %2221 = vmatprep.subr.bf16.mxu0 0
    %2222 = vmatpush2.bf16.msra.mxu0 0
    %2223 = vmatprep.subr.bf16.mxu0 0
    %2224 = vmatpush2.bf16.msra.mxu0 0
    %2225 = vmatprep.mubr.bf16.mxu0 0
    %2226 = vmatmul.mubr.bf16.gmra.mxu0 %v2191
    %v2227 = vpop.f32.mrf.mxu0
    %v2228 = vadd.f32 0.0, %v2227
    %v2229 = vpop.f32.mrf.mxu0
    %v2230 = vpop.f32.mrf.mxu0
    %v2231 = vpop.f32.mrf.mxu0
    %2232 = vdwg.mxu0
    %v2233 = vadd.f32 %v2187, %v2228
    %v2234 = vld [vmem:[#allocation10 + $0x1] sm:$0x1]
    %v2235 = vlaneseq
    %v2236 = vshrl.u32 %v2235, 7
    %v2237 = vsub.s32 0, %v2236
    %v2238 = vrot.slane %v2234, %v2237
    %v2239 = vadd.f32 %v946, %v2238
    %v2240 = vadd.f32 %v1375, %v2238
    %v2241 = vadd.f32 %v1804, %v2238
    %v2242 = vadd.f32 %v2233, %v2238
    %v2243 = vadd.f32 %v171, %v2239
    %v2244 = vadd.f32 %v172, %v2240
    %v2245 = vadd.f32 %v173, %v2241
    %v2246 = vadd.f32 %v174, %v2242
    %v2247 = vld [vmem:[#allocation10 + $0x4] sm:$0x1]
    %v2248 = vsel %vm105, %v2243, 0.0
    %2249 = vadd.xlane.f32.xlu0 %v2248
    %v2250 = vpop.xlane.xlu0 %2249
    %v2251 = vsel %vm105, %v2244, 0.0
    %2252 = vadd.xlane.f32.xlu0 %v2251
    %v2253 = vpop.xlane.xlu0 %2252
    %v2254 = vsel %vm105, %v2245, 0.0
    %2255 = vadd.xlane.f32.xlu0 %v2254
    %v2256 = vpop.xlane.xlu0 %2255
    %v2257 = vsel %vm105, %v2246, 0.0
    %2258 = vadd.xlane.f32.xlu0 %v2257
    %v2259 = vpop.xlane.xlu0 %2258
    %v2260 = vmul.f32 %v2250, %v118
    %v2261 = vmul.f32 %v2253, %v118
    %v2262 = vmul.f32 %v2256, %v118
    %v2263 = vmul.f32 %v2259, %v118
    %v2264 = vsub.f32 %v2243, %v2260
    %v2265 = vsub.f32 %v2244, %v2261
    %v2266 = vsub.f32 %v2245, %v2262
    %v2267 = vsub.f32 %v2246, %v2263
    %v2268 = vmul.f32 %v2264, %v2264
    %v2269 = vmul.f32 %v2265, %v2265
    %v2270 = vmul.f32 %v2266, %v2266
    %v2271 = vmul.f32 %v2267, %v2267
    %v2272 = vsel %vm105, %v2268, 0.0
    %2273 = vadd.xlane.f32.xlu0 %v2272
    %v2274 = vpop.xlane.xlu0 %2273
    %v2275 = vsel %vm105, %v2269, 0.0
    %2276 = vadd.xlane.f32.xlu0 %v2275
    %v2277 = vpop.xlane.xlu0 %2276
    %v2278 = vsel %vm105, %v2270, 0.0
    %2279 = vadd.xlane.f32.xlu0 %v2278
    %v2280 = vpop.xlane.xlu0 %2279
    %v2281 = vsel %vm105, %v2271, 0.0
    %2282 = vadd.xlane.f32.xlu0 %v2281
    %v2283 = vpop.xlane.xlu0 %2282
    %v2284 = vmul.f32 %v2274, %v118
    %v2285 = vmul.f32 %v2277, %v118
    %v2286 = vmul.f32 %v2280, %v118
    %v2287 = vmul.f32 %v2283, %v118
    %v2288 = vadd.f32 %v2284, 1e-05
    %v2289 = vadd.f32 %v2285, 1e-05
    %v2290 = vadd.f32 %v2286, 1e-05
    %v2291 = vadd.f32 %v2287, 1e-05
    %v2292 = vrsqrt.pop %v2288
    %v2293 = vrsqrt.pop %v2289
    %v2294 = vrsqrt.pop %v2290
    %v2295 = vrsqrt.pop %v2291
    %v2296 = vmul.f32 %v2264, %v2292
    %v2297 = vmul.f32 %v2265, %v2293
    %v2298 = vmul.f32 %v2266, %v2294
    %v2299 = vmul.f32 %v2267, %v2295
    %v2300 = vlaneseq
    %v2301 = vshrl.u32 %v2300, 7
    %v2302 = vsub.s32 0, %v2301
    %v2303 = vrot.slane %v2247, %v2302
    %v2304 = vmul.f32 %v2296, %v2303
    %v2305 = vmul.f32 %v2297, %v2303
    %v2306 = vmul.f32 %v2298, %v2303
    %v2307 = vmul.f32 %v2299, %v2303
    %2309 = vrot.lane.b32.xlu0 %v2303, 64
    %v2310 = vpop.permute.xlu0 %2309
    %v2312 = vadd.f32 %v2304, %v2310
    %v2313 = vadd.f32 %v2305, %v2310
    %v2314 = vadd.f32 %v2306, %v2310
    %v2315 = vadd.f32 %v2307, %v2310
    %v2316 = vpack.c.bf16 %v2313, %v2312
    %v2317 = vpack.c.bf16 %v2315, %v2314
    %v2318 = vld [vmem:[#allocation7 + $0x20] sm:$0xf]
    %v2319 = vld [vmem:[#allocation7 + $0x24] sm:$0xf]
    %v2320 = vld [vmem:[#allocation7 + $0x28] sm:$0xf]
    %v2321 = vld [vmem:[#allocation7 + $0x2c] sm:$0xf]
    %v2322 = vld [vmem:[#allocation7 + $0x30] sm:$0xf]
    %v2323 = vld [vmem:[#allocation7 + $0x34] sm:$0xf]
    %v2324 = vld [vmem:[#allocation7 + $0x38] sm:$0xf]
    %v2325 = vld [vmem:[#allocation7 + $0x3c] sm:$0xf]
    %v2326 = vld [vmem:[#allocation10 + $0x2] sm:$0x1]
    %v2327 = vlaneseq
    %v2328 = vshrl.u32 %v2327, 7
    %v2329 = vsub.s32 0, %v2328
    %v2330 = vrot.slane %v2326, %v2329
    %v2339 = vunpack.c.l.b16 %v2318
    %v2340 = vunpack.c.l.b16 %v2319
    %v2341 = vunpack.c.l.b16 %v2320
    %v2342 = vunpack.c.l.b16 %v2321
    %v2343 = vunpack.c.l.b16 %v2322
    %v2344 = vunpack.c.l.b16 %v2323
    %v2345 = vunpack.c.l.b16 %v2324
    %v2346 = vunpack.c.l.b16 %v2325
    %v2347 = vpack.c.b16 %v2340, %v2339
    %v2348 = vpack.c.b16 %v2342, %v2341
    %v2349 = vpack.c.b16 %v2344, %v2343
    %v2350 = vpack.c.b16 %v2346, %v2345
    %v2356 = vsel %vm105, %v2316, 0
    %v2359 = vsel %vm105, %v2317, 0
    %2361 = vmatprep.subr.bf16.mxu0 0
    %2362 = vmatpush1.bf16.msra.mxu0 0
    %2363 = vmatprep.subr.bf16.mxu0 0
    %2364 = vmatpush1.bf16.msra.mxu0 0
    %2365 = vmatprep.subr.bf16.mxu0 0
    %2366 = vmatpush1.bf16.msra.mxu0 0
    %2367 = vmatprep.subr.bf16.mxu0 0
    %2368 = vmatpush1.bf16.msra.mxu0 0
    %2369 = vmatprep.subr.bf16.mxu0 0
    %2370 = vmatpush1.bf16.msra.mxu0 %v2350
    %2371 = vmatprep.subr.bf16.mxu0 0
    %2372 = vmatpush1.bf16.msra.mxu0 %v2349
    %2373 = vmatprep.subr.bf16.mxu0 0
    %2374 = vmatpush1.bf16.msra.mxu0 %v2348
    %2375 = vmatprep.subr.bf16.mxu0 0
    %2376 = vmatpush1.bf16.msra.mxu0 %v2347
    %2377 = vmatprep.subr.bf16.mxu0 0
    %2378 = vmatpush2.bf16.msra.mxu0 0
    %2379 = vmatprep.subr.bf16.mxu0 0
    %2380 = vmatpush2.bf16.msra.mxu0 0
    %2381 = vmatprep.subr.bf16.mxu0 0
    %2382 = vmatpush2.bf16.msra.mxu0 0
    %2383 = vmatprep.subr.bf16.mxu0 0
    %2384 = vmatpush2.bf16.msra.mxu0 0
    %2385 = vmatprep.subr.bf16.mxu0 0
    %2386 = vmatpush2.bf16.msra.mxu0 0
    %2387 = vmatprep.subr.bf16.mxu0 0
    %2388 = vmatpush2.bf16.msra.mxu0 0
    %2389 = vmatprep.subr.bf16.mxu0 0
    %2390 = vmatpush2.bf16.msra.mxu0 0
    %2391 = vmatprep.subr.bf16.mxu0 0
    %2392 = vmatpush2.bf16.msra.mxu0 0
    %2393 = vmatprep.mubr.bf16.mxu0 0
    %2394 = vmatmul.mubr.bf16.gmra.mxu0 %v2356
    %v2395 = vpop.f32.mrf.mxu0
    %v2396 = vadd.f32 %v2330, %v2395
    %v2397 = vpop.f32.mrf.mxu0
    %v2398 = vpop.f32.mrf.mxu0
    %v2399 = vadd.f32 %v2330, %v2398
    %v2400 = vpop.f32.mrf.mxu0
    %2401 = vmatprep.mubr.bf16.mxu0 0
    %2402 = vmatmul.mubr.bf16.gmra.mxu0 %v2359
    %v2403 = vpop.f32.mrf.mxu0
    %v2404 = vadd.f32 %v2330, %v2403
    %v2405 = vpop.f32.mrf.mxu0
    %v2406 = vpop.f32.mrf.mxu0
    %v2407 = vadd.f32 %v2330, %v2406
    %v2408 = vpop.f32.mrf.mxu0
    %2409 = vdwg.mxu0
    %v2410 = vmax.f32 %v2396, 0.0
    %v2411 = vmax.f32 %v2399, 0.0
    %v2412 = vmax.f32 %v2404, 0.0
    %v2413 = vmax.f32 %v2407, 0.0
    %v2414 = vpack.c.bf16 %v2411, %v2410
    %v2415 = vpack.c.bf16 %v2413, %v2412
    %v2416 = vld [vmem:[#allocation7 + $0x40] sm:$0xf]
    %v2417 = vld [vmem:[#allocation7 + $0x44] sm:$0xf]
    %v2418 = vld [vmem:[#allocation7 + $0x48] sm:$0xf]
    %v2419 = vld [vmem:[#allocation7 + $0x4c] sm:$0xf]
    %v2420 = vld [vmem:[#allocation7 + $0x50] sm:$0xf]
    %v2421 = vld [vmem:[#allocation7 + $0x54] sm:$0xf]
    %v2422 = vld [vmem:[#allocation7 + $0x58] sm:$0xf]
    %v2423 = vld [vmem:[#allocation7 + $0x5c] sm:$0xf]
    %v2424 = vld [vmem:[#allocation7 + $0x60] sm:$0xf]
    %v2425 = vld [vmem:[#allocation7 + $0x64] sm:$0xf]
    %v2426 = vld [vmem:[#allocation7 + $0x68] sm:$0xf]
    %v2427 = vld [vmem:[#allocation7 + $0x6c] sm:$0xf]
    %v2428 = vld [vmem:[#allocation7 + $0x70] sm:$0xf]
    %v2429 = vld [vmem:[#allocation7 + $0x74] sm:$0xf]
    %v2430 = vld [vmem:[#allocation7 + $0x78] sm:$0xf]
    %v2431 = vld [vmem:[#allocation7 + $0x7c] sm:$0xf]
    %v2448 = vunpack.c.l.b16 %v2416
    %v2449 = vunpack.c.l.b16 %v2417
    %v2450 = vunpack.c.l.b16 %v2418
    %v2451 = vunpack.c.l.b16 %v2419
    %v2452 = vunpack.c.l.b16 %v2420
    %v2453 = vunpack.c.l.b16 %v2421
    %v2454 = vunpack.c.l.b16 %v2422
    %v2455 = vunpack.c.l.b16 %v2423
    %v2456 = vunpack.c.l.b16 %v2424
    %v2457 = vunpack.c.l.b16 %v2425
    %v2458 = vunpack.c.l.b16 %v2426
    %v2459 = vunpack.c.l.b16 %v2427
    %v2460 = vunpack.c.l.b16 %v2428
    %v2461 = vunpack.c.l.b16 %v2429
    %v2462 = vunpack.c.l.b16 %v2430
    %v2463 = vunpack.c.l.b16 %v2431
    %v2464 = vpack.c.b16 %v2449, %v2448
    %v2465 = vpack.c.b16 %v2451, %v2450
    %v2466 = vpack.c.b16 %v2453, %v2452
    %v2467 = vpack.c.b16 %v2455, %v2454
    %v2468 = vpack.c.b16 %v2457, %v2456
    %v2469 = vpack.c.b16 %v2459, %v2458
    %v2470 = vpack.c.b16 %v2461, %v2460
    %v2471 = vpack.c.b16 %v2463, %v2462
    %2481 = vrot.lane.b32.xlu0 %v2238, 64
    %v2482 = vpop.permute.xlu0 %2481
    %2484 = vmatprep.subr.bf16.mxu0 0
    %2485 = vmatpush1.bf16.msra.mxu0 %v2471
    %2486 = vmatprep.subr.bf16.mxu0 0
    %2487 = vmatpush1.bf16.msra.mxu0 %v2470
    %2488 = vmatprep.subr.bf16.mxu0 0
    %2489 = vmatpush1.bf16.msra.mxu0 %v2469
    %2490 = vmatprep.subr.bf16.mxu0 0
    %2491 = vmatpush1.bf16.msra.mxu0 %v2468
    %2492 = vmatprep.subr.bf16.mxu0 0
    %2493 = vmatpush1.bf16.msra.mxu0 %v2467
    %2494 = vmatprep.subr.bf16.mxu0 0
    %2495 = vmatpush1.bf16.msra.mxu0 %v2466
    %2496 = vmatprep.subr.bf16.mxu0 0
    %2497 = vmatpush1.bf16.msra.mxu0 %v2465
    %2498 = vmatprep.subr.bf16.mxu0 0
    %2499 = vmatpush1.bf16.msra.mxu0 %v2464
    %2500 = vmatprep.subr.bf16.mxu0 0
    %2501 = vmatpush2.bf16.msra.mxu0 0
    %2502 = vmatprep.subr.bf16.mxu0 0
    %2503 = vmatpush2.bf16.msra.mxu0 0
    %2504 = vmatprep.subr.bf16.mxu0 0
    %2505 = vmatpush2.bf16.msra.mxu0 0
    %2506 = vmatprep.subr.bf16.mxu0 0
    %2507 = vmatpush2.bf16.msra.mxu0 0
    %2508 = vmatprep.subr.bf16.mxu0 0
    %2509 = vmatpush2.bf16.msra.mxu0 0
    %2510 = vmatprep.subr.bf16.mxu0 0
    %2511 = vmatpush2.bf16.msra.mxu0 0
    %2512 = vmatprep.subr.bf16.mxu0 0
    %2513 = vmatpush2.bf16.msra.mxu0 0
    %2514 = vmatprep.subr.bf16.mxu0 0
    %2515 = vmatpush2.bf16.msra.mxu0 0
    %2516 = vmatprep.mubr.bf16.mxu0 0
    %2517 = vmatmul.mubr.bf16.gmra.mxu0 %v2414
    %v2518 = vpop.f32.mrf.mxu0
    %v2519 = vadd.f32 %v2482, %v2518
    %v2520 = vpop.f32.mrf.mxu0
    %v2521 = vpop.f32.mrf.mxu0
    %v2522 = vadd.f32 %v2482, %v2521
    %v2523 = vpop.f32.mrf.mxu0
    %2524 = vmatprep.mubr.bf16.mxu0 0
    %2525 = vmatmul.mubr.bf16.gmra.mxu0 %v2415
    %v2526 = vpop.f32.mrf.mxu0
    %v2527 = vadd.f32 %v2482, %v2526
    %v2528 = vpop.f32.mrf.mxu0
    %v2529 = vpop.f32.mrf.mxu0
    %v2530 = vadd.f32 %v2482, %v2529
    %v2531 = vpop.f32.mrf.mxu0
    %2532 = vdwg.mxu0
    %v2533 = vadd.f32 %v2312, %v2519
    %v2534 = vadd.f32 %v2313, %v2522
    %v2535 = vadd.f32 %v2314, %v2527
    %v2536 = vadd.f32 %v2315, %v2530
    %v2537 = vld [vmem:[#allocation10 + $0x5] sm:$0x1]
    %v2538 = vsel %vm105, %v2533, 0.0
    %2539 = vadd.xlane.f32.xlu0 %v2538
    %v2540 = vpop.xlane.xlu0 %2539
    %v2541 = vsel %vm105, %v2534, 0.0
    %2542 = vadd.xlane.f32.xlu0 %v2541
    %v2543 = vpop.xlane.xlu0 %2542
    %v2544 = vsel %vm105, %v2535, 0.0
    %2545 = vadd.xlane.f32.xlu0 %v2544
    %v2546 = vpop.xlane.xlu0 %2545
    %v2547 = vsel %vm105, %v2536, 0.0
    %2548 = vadd.xlane.f32.xlu0 %v2547
    %v2549 = vpop.xlane.xlu0 %2548
    %v2550 = vmul.f32 %v2540, %v118
    %v2551 = vmul.f32 %v2543, %v118
    %v2552 = vmul.f32 %v2546, %v118
    %v2553 = vmul.f32 %v2549, %v118
    %v2554 = vsub.f32 %v2533, %v2550
    %v2555 = vsub.f32 %v2534, %v2551
    %v2556 = vsub.f32 %v2535, %v2552
    %v2557 = vsub.f32 %v2536, %v2553
    %v2558 = vmul.f32 %v2554, %v2554
    %v2559 = vmul.f32 %v2555, %v2555
    %v2560 = vmul.f32 %v2556, %v2556
    %v2561 = vmul.f32 %v2557, %v2557
    %v2562 = vsel %vm105, %v2558, 0.0
    %2563 = vadd.xlane.f32.xlu0 %v2562
    %v2564 = vpop.xlane.xlu0 %2563
    %v2565 = vsel %vm105, %v2559, 0.0
    %2566 = vadd.xlane.f32.xlu0 %v2565
    %v2567 = vpop.xlane.xlu0 %2566
    %v2568 = vsel %vm105, %v2560, 0.0
    %2569 = vadd.xlane.f32.xlu0 %v2568
    %v2570 = vpop.xlane.xlu0 %2569
    %v2571 = vsel %vm105, %v2561, 0.0
    %2572 = vadd.xlane.f32.xlu0 %v2571
    %v2573 = vpop.xlane.xlu0 %2572
    %v2574 = vmul.f32 %v2564, %v118
    %v2575 = vmul.f32 %v2567, %v118
    %v2576 = vmul.f32 %v2570, %v118
    %v2577 = vmul.f32 %v2573, %v118
    %v2578 = vadd.f32 %v2574, 1e-05
    %v2579 = vadd.f32 %v2575, 1e-05
    %v2580 = vadd.f32 %v2576, 1e-05
    %v2581 = vadd.f32 %v2577, 1e-05
    %v2582 = vrsqrt.pop %v2578
    %v2583 = vrsqrt.pop %v2579
    %v2584 = vrsqrt.pop %v2580
    %v2585 = vrsqrt.pop %v2581
    %v2586 = vmul.f32 %v2554, %v2582
    %v2587 = vmul.f32 %v2555, %v2583
    %v2588 = vmul.f32 %v2556, %v2584
    %v2589 = vmul.f32 %v2557, %v2585
    %v2590 = vlaneseq
    %v2591 = vshrl.u32 %v2590, 7
    %v2592 = vsub.s32 0, %v2591
    %v2593 = vrot.slane %v2537, %v2592
    %v2594 = vmul.f32 %v2586, %v2593
    %v2595 = vmul.f32 %v2587, %v2593
    %v2596 = vmul.f32 %v2588, %v2593
    %v2597 = vmul.f32 %v2589, %v2593
    %2599 = vrot.lane.b32.xlu0 %v2593, 64
    %v2600 = vpop.permute.xlu0 %2599
    %v2602 = vadd.f32 %v2594, %v2600
    %v2603 = vadd.f32 %v2595, %v2600
    %v2604 = vadd.f32 %v2596, %v2600
    %v2605 = vadd.f32 %v2597, %v2600
    %2606 = vst.msk [vmem:[#allocation11] sm:$0xff] %vm105, %v2602
    %2607 = vst.msk [vmem:[#allocation11 + $0x8] sm:$0xff] %vm105, %v2603
    %2608 = vst.msk [vmem:[#allocation11 + $0x10] sm:$0xff] %vm105, %v2604
    %2609 = vst.msk [vmem:[#allocation11 + $0x18] sm:$0xff] %vm105, %v2605
    // Predicated region
    $region42: #{tpu_custom_call.1} parent=1 // pred_check
      _
    $region43: #{tpu_custom_call.1} parent=1 // pred_check_branch
      %2611 = sbr.rel (0) target = $region45
    $region44: #{tpu_custom_call.1} parent=1 // pred_region
      %s2613 = ssub.s32 512, 512
      %2614 = vsyncadd [#allocation4], %s2613
      %s2615 = sshll.u32 [#allocation11], 4
      %s2616 = int_to_ptr.vmem [resolvable:$true] %s2615
      %2621 = dma.vmem_to_hbm [thread:$0]  %s2616, 512, %s5, [#allocation4], 128, 128, 8
    $region45: #{tpu_custom_call.1} parent=1 // pred_fallthru
      _
    // Predicated region
    $region46: #{tpu_custom_call.1} parent=1 // pred_check
      _
    $region47: #{tpu_custom_call.1} parent=1 // pred_check_branch
      %2623 = sbr.rel (0) target = $region49
    $region48: #{tpu_custom_call.1} parent=1 // pred_region
      %2624 = dma.done [#allocation4], 512
    $region49: #{tpu_custom_call.1} parent=1 // pred_fallthru
      _
    %2625 = vsyncpa [#allocation3], 1
    %2626 = vsyncpa [#allocation6], 1
    %2627 = vsyncpa [#allocation9], 1
    %2628 = vsyncpa [#allocation4], 1

</llo_original>
